<compile_context>
chip_gen: v5e
topology: v5e:2x2
jax: 0.10.0
libtpu: 0.0.40
codegen_flags: <defaults>
</compile_context>

<pallas_src>
import functools

import jax
import jax.numpy as jnp
from jax import lax
from jax.experimental import pallas as pl
from jax.experimental.pallas import tpu as pltpu  # noqa: F401  (TPU backend)


def trn_kernel(D_inpseq, D_future, H, D_out, C_pad,
               gx_seq_ref, h0_ref, c0_ref,
               w_init_ref, b_init_ref,
               w_hh_dec_ref, b_dec0_ref,
               w_dec_comb_ref, b_dec_comb_ref,
               w_cls_fut_ref, b_cls_fut_ref,
               w_enc_fh_ref,
               out_ref):
    # Hoist every weight / bias load out of the loops (single vld each).
    w_init = w_init_ref[...]          # (2H, 2H) block-diag [w_hxt^T, w_cxt^T]
    b_init = b_init_ref[...]          # (1, 2H)
    w_hh_dec = w_hh_dec_ref[...]      # (H, 4H)  decoder hh weight (first step)
    b_dec0 = b_dec0_ref[...]          # (1, 4H)  b_ih_dec + b_hh_dec
    w_dec_comb = w_dec_comb_ref[...]  # (H, 4H)  fused fusion+hh decoder weight
    b_dec_comb = b_dec_comb_ref[...]  # (1, 4H)
    w_cls_fut = w_cls_fut_ref[...]    # (H, D_out + H)  [w_cls | w_fut/Df]
    b_cls_fut = b_cls_fut_ref[...]    # (1, D_out + H)
    w_enc_fh = w_enc_fh_ref[...]      # (2H, 4H)  [w_ih_enc_future ; w_hh_enc]

    Bp = h0_ref.shape[0]
    C = (1 + D_future) * D_out
    pad_block = None
    if C_pad > C:
        # Hoisted constant so the per-step store is a full 128-lane-multiple write.
        pad_block = jnp.zeros((Bp, C_pad - C), jnp.float32)

    def lstm_gates(gates, c):
        # Gates stay in the (B, 4H) lane layout (4H == 128 lanes -> one vreg).
        ig = jax.nn.sigmoid(gates[:, 0 * H:1 * H])
        fg = jax.nn.sigmoid(gates[:, 1 * H:2 * H])
        gg = jnp.tanh(gates[:, 2 * H:3 * H])
        og = jax.nn.sigmoid(gates[:, 3 * H:4 * H])
        c_new = fg * c + ig * gg
        return og * jnp.tanh(c_new), c_new

    def step(t, carry):
        hx, cx = carry

        # Fused decoder-state init: [hx|cx] @ blockdiag(w_hxt^T, w_cxt^T) + bias.
        hc = jnp.concatenate([hx, cx], axis=1)
        init = jax.nn.relu(
            jnp.dot(hc, w_init, preferred_element_type=jnp.float32) + b_init)
        dec_hx = init[:, :H]
        dec_cx = init[:, H:]

        # First decoder gates: fusion == 0, so only the hh path contributes.
        gates = jnp.dot(dec_hx, w_hh_dec,
                        preferred_element_type=jnp.float32) + b_dec0

        fut_acc = jnp.zeros((Bp, H), jnp.float32)
        scores = []
        for s in range(D_future):
            dec_hx, dec_cx = lstm_gates(gates, dec_cx)
            # Fused classifier + (pre-scaled) future projection, shared LHS.
            sf = jnp.dot(dec_hx, w_cls_fut,
                         preferred_element_type=jnp.float32) + b_cls_fut
            scores.append(sf[:, :D_out])
            fut_acc = fut_acc + sf[:, D_out:]
            if s + 1 < D_future:
                # gates_{s+1} = fusion_s @ W_ih^T + dec_h_s @ W_hh^T + b, with the
                # linear fusion path pre-folded into one (H,4H) weight.
                gates = jnp.dot(dec_hx, w_dec_comb,
                                preferred_element_type=jnp.float32) + b_dec_comb

        # Encoder LSTM.  gx_seq already holds x_t @ W_ih_x + (b_ih + b_hh);
        # the future- and hx-projections are fused into one (B,2H)@(2H,4H) matmul.
        fh = jnp.concatenate([fut_acc, hx], axis=1)
        enc_gates = gx_seq_ref[t] + jnp.dot(fh, w_enc_fh,
                                            preferred_element_type=jnp.float32)
        hx, cx = lstm_gates(enc_gates, cx)

        # Act reuses the fused classifier weight; pack Act + all scores (+ zero
        # pad up to a 128-lane multiple) into one lane-dense store per step.
        actf = jnp.dot(hx, w_cls_fut, preferred_element_type=jnp.float32) + b_cls_fut
        pieces = [actf[:, :D_out]] + scores
        if pad_block is not None:
            pieces.append(pad_block)
        out_ref[t] = jnp.concatenate(pieces, axis=-1)
        return hx, cx

    lax.fori_loop(0, D_inpseq, step, (h0_ref[...], c0_ref[...]),
                  unroll=(D_inpseq <= 16))


@functools.partial(jax.jit, static_argnames=("D_future",))
def trn_pallas(x, h0, c0, params, *, D_future):
    D_inpseq, B, D_in = x.shape
    H = h0.shape[1]
    D_out = params["w_cls"].shape[0]
    f32 = jnp.float32
    hi = lax.Precision.HIGHEST   # one-off weight-fusion matmuls: keep them exact-ish

    # Pad batch to the f32 sublane minimum (8) so vregs / MXU LHS rows are dense.
    Bp = max(8, ((B + 7) // 8) * 8)
    pad_b = Bp - B
    x_p = jnp.pad(x, ((0, 0), (0, pad_b), (0, 0)))
    h0_p = jnp.pad(h0, ((0, pad_b), (0, 0)))
    c0_p = jnp.pad(c0, ((0, pad_b), (0, 0)))

    # Split encoder input weight; precompute the full-sequence input projection
    # (one big matmul) with the summed encoder biases folded in.
    w_ih_enc_T = params["w_ih_enc"].T            # (D_in + H, 4H)
    w_ih_enc_x = w_ih_enc_T[:D_in]               # (D_in, 4H)
    w_ih_enc_f = w_ih_enc_T[D_in:]               # (H, 4H)
    b_enc = (params["b_ih_enc"] + params["b_hh_enc"]).reshape(1, 1, -1)
    gx_seq = jnp.einsum("tbi,ig->tbg", x_p, w_ih_enc_x, precision=hi) + b_enc

    # Fused encoder recurrent weight: [future | hx] path.
    w_hh_enc = params["w_hh_enc"].T              # (H, 4H)
    w_enc_fh = jnp.concatenate([w_ih_enc_f, w_hh_enc], axis=0)   # (2H, 4H)

    # Decoder weights.  Fold the linear fusion path into the recurrent weight:
    # gates_{s+1} = dec_h_s @ (W_cls^T W_fus^T W_ih^T + W_hh^T)
    #              + (b_cls @ W_fus^T + b_fus) @ W_ih^T + (b_ih + b_hh)
    w_ih_dec_T = params["w_ih_dec"].T            # (H, 4H)
    w_hh_dec_T = params["w_hh_dec"].T            # (H, 4H)
    b_dec0 = (params["b_ih_dec"] + params["b_hh_dec"]).reshape(1, -1)
    w_fus_T = params["w_fus"].T                  # (D_out, H)
    w_dec_comb = jnp.dot(jnp.dot(params["w_cls"].T, w_fus_T, precision=hi),
                         w_ih_dec_T, precision=hi) + w_hh_dec_T
    b_dec_comb = jnp.dot(params["b_cls"] @ w_fus_T + params["b_fus"],
                         w_ih_dec_T, precision=hi).reshape(1, -1) + b_dec0

    # Fused classifier + future-projection weight (shared LHS dec_h / hx);
    # 1/D_future folded into the future half.
    inv_f = 1.0 / float(D_future)
    w_cls_fut = jnp.concatenate(
        [params["w_cls"].T, params["w_fut"].T * inv_f], axis=1)
    b_cls_fut = jnp.concatenate(
        [params["b_cls"], params["b_fut"] * inv_f]).reshape(1, -1)

    # Block-diagonal fused decoder-init weight.
    zHH = jnp.zeros((H, H), f32)
    w_init = jnp.concatenate(
        [jnp.concatenate([params["w_hxt"].T, zHH], axis=1),
         jnp.concatenate([zHH, params["w_cxt"].T], axis=1)], axis=0)
    b_init = jnp.concatenate([params["b_hxt"], params["b_cxt"]]).reshape(1, -1)

    C = (1 + D_future) * D_out
    C_pad = ((C + 127) // 128) * 128             # unmasked lane-dense stores

    kernel = functools.partial(trn_kernel, D_inpseq, D_future, H, D_out, C_pad)

    # No grid: the whole (tiny) problem is resident in VMEM; the time recurrence
    # is an in-kernel fori_loop, so there is no per-grid-step pipeline overhead.
    out = pl.pallas_call(
        kernel,
        out_shape=jax.ShapeDtypeStruct((D_inpseq, Bp, C_pad), f32),
    )(gx_seq, h0_p, c0_p,
      w_init, b_init,
      w_hh_dec_T, b_dec0,
      w_dec_comb, b_dec_comb,
      w_cls_fut, b_cls_fut,
      w_enc_fh)

    act = out[:, :B, :D_out]
    act_bar = out[:, :B, D_out:C].reshape(D_inpseq, B, D_future, D_out)
    act_bar = act_bar.transpose(0, 2, 1, 3)
    return act, act_bar


def trn_reference(x, h0, c0, p, D_future):
    """Pure-JAX reference mirroring the reconstructed TRNCell semantics."""
    H = h0.shape[1]

    def lstm(inp, h, c, w_ih, w_hh, b_ih, b_hh):
        gates = inp @ w_ih.T + b_ih + h @ w_hh.T + b_hh
        ig = jax.nn.sigmoid(gates[:, :H])
        fg = jax.nn.sigmoid(gates[:, H:2 * H])
        gg = jnp.tanh(gates[:, 2 * H:3 * H])
        og = jax.nn.sigmoid(gates[:, 3 * H:])
        c_new = fg * c + ig * gg
        return og * jnp.tanh(c_new), c_new

    hx, cx = h0, c0
    acts, actbars = [], []
    for t in range(x.shape[0]):
        xt = x[t]
        dec_hx = jax.nn.relu(hx @ p["w_hxt"].T + p["b_hxt"])
        dec_cx = jax.nn.relu(cx @ p["w_cxt"].T + p["b_cxt"])
        fusion = jnp.zeros_like(hx)
        future = jnp.zeros_like(hx)
        scores = []
        for _ in range(D_future):
            dec_hx, dec_cx = lstm(fusion, dec_hx, dec_cx,
                                  p["w_ih_dec"], p["w_hh_dec"],
                                  p["b_ih_dec"], p["b_hh_dec"])
            sc = dec_hx @ p["w_cls"].T + p["b_cls"]
            scores.append(sc)
            fusion = sc @ p["w_fus"].T + p["b_fus"]
            future = future + dec_hx @ p["w_fut"].T + p["b_fut"]
        future = future / D_future
        enc_in = jnp.concatenate([xt, future], axis=1)
        hx, cx = lstm(enc_in, hx, cx,
                      p["w_ih_enc"], p["w_hh_enc"], p["b_ih_enc"], p["b_hh_enc"])
        acts.append(hx @ p["w_cls"].T + p["b_cls"])
        actbars.append(jnp.stack(scores))
    return jnp.stack(acts), jnp.stack(actbars)


def make_params(key, D_in, D_hid, D_out):
    """Deterministic PyTorch-style uniform init (no checkpoint loading)."""
    ks = jax.random.split(key, 18)
    H = D_hid

    def u(k, shape, fan):
        bound = 1.0 / float(fan) ** 0.5
        return jax.random.uniform(k, shape, jnp.float32, -bound, bound)

    return dict(
        w_ih_enc=u(ks[0], (4 * H, D_in + H), H),
        w_hh_enc=u(ks[1], (4 * H, H), H),
        b_ih_enc=u(ks[2], (4 * H,), H),
        b_hh_enc=u(ks[3], (4 * H,), H),
        w_ih_dec=u(ks[4], (4 * H, H), H),
        w_hh_dec=u(ks[5], (4 * H, H), H),
        b_ih_dec=u(ks[6], (4 * H,), H),
        b_hh_dec=u(ks[7], (4 * H,), H),
        w_cls=u(ks[8], (D_out, H), H),
        b_cls=u(ks[9], (D_out,), H),
        w_fus=u(ks[10], (H, D_out), D_out),
        b_fus=u(ks[11], (H,), D_out),
        w_fut=u(ks[12], (H, H), H),
        b_fut=u(ks[13], (H,), H),
        w_hxt=u(ks[14], (H, H), H),
        b_hxt=u(ks[15], (H,), H),
        w_cxt=u(ks[16], (H, H), H),
        b_cxt=u(ks[17], (H,), H),
    )


if __name__ == "__main__":
    D_in, D_hid, D_out, D_future, D_inpseq, batch = 32, 32, 16, 4, 8, 4

    key = jax.random.PRNGKey(0)
    kx, kp = jax.random.split(key)
    x = jax.random.normal(kx, (D_inpseq, batch, D_in), jnp.float32)
    h0 = jnp.zeros((batch, D_hid), jnp.float32)   # initialise_hidden_parameters()
    c0 = jnp.zeros((batch, D_hid), jnp.float32)
    params = make_params(kp, D_in, D_hid, D_out)

    act, act_bar = trn_pallas(x, h0, c0, params, D_future=D_future)
    jax.block_until_ready((act, act_bar))

    ref_act, ref_bar = trn_reference(x, h0, c0, params, D_future)
    assert act.shape == (D_inpseq, batch, D_out)
    assert act_bar.shape == (D_inpseq, D_future, batch, D_out)
    assert jnp.allclose(act, ref_act, atol=2e-4, rtol=2e-4)
    assert jnp.allclose(act_bar, ref_bar, atol=2e-4, rtol=2e-4)

    print("KERNEL_OK")
</pallas_src>

<mosaic_0001>
module attributes {stable_mosaic.version = 11 : i64} {
  func.func @trn_kernel(%arg0: memref<8x8x128xf32, #tpu.memory_space<vmem>>, %arg1: memref<8x32xf32, #tpu.memory_space<vmem>>, %arg2: memref<8x32xf32, #tpu.memory_space<vmem>>, %arg3: memref<64x64xf32, #tpu.memory_space<vmem>>, %arg4: memref<1x64xf32, #tpu.memory_space<vmem>>, %arg5: memref<32x128xf32, #tpu.memory_space<vmem>>, %arg6: memref<1x128xf32, #tpu.memory_space<vmem>>, %arg7: memref<32x128xf32, #tpu.memory_space<vmem>>, %arg8: memref<1x128xf32, #tpu.memory_space<vmem>>, %arg9: memref<32x48xf32, #tpu.memory_space<vmem>>, %arg10: memref<1x48xf32, #tpu.memory_space<vmem>>, %arg11: memref<64x128xf32, #tpu.memory_space<vmem>>, %arg12: memref<8x8x128xf32, #tpu.memory_space<vmem>>) attributes {dimension_semantics = [], scalar_prefetch = 0 : i64, scratch_operands = 0 : i64, tpu.core_type = #tpu.core_type<tc>} {
    %c0 = arith.constant 0 : index
    %c0_0 = arith.constant 0 : index
    %0 = vector.load %arg3[%c0, %c0_0] : memref<64x64xf32, #tpu.memory_space<vmem>>, vector<64x64xf32>
    %c0_1 = arith.constant 0 : index
    %c0_2 = arith.constant 0 : index
    %1 = vector.load %arg4[%c0_1, %c0_2] : memref<1x64xf32, #tpu.memory_space<vmem>>, vector<1x64xf32>
    %c0_3 = arith.constant 0 : index
    %c0_4 = arith.constant 0 : index
    %2 = vector.load %arg5[%c0_3, %c0_4] : memref<32x128xf32, #tpu.memory_space<vmem>>, vector<32x128xf32>
    %c0_5 = arith.constant 0 : index
    %c0_6 = arith.constant 0 : index
    %3 = vector.load %arg6[%c0_5, %c0_6] : memref<1x128xf32, #tpu.memory_space<vmem>>, vector<1x128xf32>
    %c0_7 = arith.constant 0 : index
    %c0_8 = arith.constant 0 : index
    %4 = vector.load %arg7[%c0_7, %c0_8] : memref<32x128xf32, #tpu.memory_space<vmem>>, vector<32x128xf32>
    %c0_9 = arith.constant 0 : index
    %c0_10 = arith.constant 0 : index
    %5 = vector.load %arg8[%c0_9, %c0_10] : memref<1x128xf32, #tpu.memory_space<vmem>>, vector<1x128xf32>
    %c0_11 = arith.constant 0 : index
    %c0_12 = arith.constant 0 : index
    %6 = vector.load %arg9[%c0_11, %c0_12] : memref<32x48xf32, #tpu.memory_space<vmem>>, vector<32x48xf32>
    %c0_13 = arith.constant 0 : index
    %c0_14 = arith.constant 0 : index
    %7 = vector.load %arg10[%c0_13, %c0_14] : memref<1x48xf32, #tpu.memory_space<vmem>>, vector<1x48xf32>
    %c0_15 = arith.constant 0 : index
    %c0_16 = arith.constant 0 : index
    %8 = vector.load %arg11[%c0_15, %c0_16] : memref<64x128xf32, #tpu.memory_space<vmem>>, vector<64x128xf32>
    %cst = arith.constant 0.000000e+00 : f32
    %9 = vector.broadcast %cst : f32 to vector<8x48xf32>
    %c0_17 = arith.constant 0 : index
    %c0_18 = arith.constant 0 : index
    %10 = vector.load %arg1[%c0_17, %c0_18] : memref<8x32xf32, #tpu.memory_space<vmem>>, vector<8x32xf32>
    %c0_19 = arith.constant 0 : index
    %c0_20 = arith.constant 0 : index
    %11 = vector.load %arg2[%c0_19, %c0_20] : memref<8x32xf32, #tpu.memory_space<vmem>>, vector<8x32xf32>
    %c0_i32 = arith.constant 0 : i32
    %12 = tpu.concatenate %10, %11 in 1 : vector<8x32xf32>, vector<8x32xf32> -> vector<8x64xf32>
    %cst_21 = arith.constant dense<0.000000e+00> : vector<8x64xf32>
    %13 = tpu.matmul %12, %0, %cst_21 {dimension_numbers = #tpu.dot_dimension_numbers<[1], [0], [0], [1], [0, 0, 1, 1], [], []>} : vector<8x64xf32>, vector<64x64xf32>, vector<8x64xf32> -> vector<8x64xf32>
    %14 = vector.broadcast %1 : vector<1x64xf32> to vector<8x64xf32>
    %15 = arith.addf %13, %14 : vector<8x64xf32>
    %cst_22 = arith.constant 0.000000e+00 : f32
    %16 = vector.broadcast %cst_22 : f32 to vector<8x64xf32>
    %17 = arith.maximumf %15, %16 : vector<8x64xf32>
    %18 = vector.extract_strided_slice %17 {offsets = [0, 0], sizes = [8, 32], strides = [1, 1]} : vector<8x64xf32> to vector<8x32xf32>
    %19 = vector.extract_strided_slice %17 {offsets = [0, 32], sizes = [8, 32], strides = [1, 1]} : vector<8x64xf32> to vector<8x32xf32>
    %cst_23 = arith.constant dense<0.000000e+00> : vector<8x128xf32>
    %20 = tpu.matmul %18, %2, %cst_23 {dimension_numbers = #tpu.dot_dimension_numbers<[1], [0], [0], [1], [0, 0, 1, 1], [], []>} : vector<8x32xf32>, vector<32x128xf32>, vector<8x128xf32> -> vector<8x128xf32>
    %21 = vector.broadcast %3 : vector<1x128xf32> to vector<8x128xf32>
    %22 = arith.addf %20, %21 : vector<8x128xf32>
    %cst_24 = arith.constant 0.000000e+00 : f32
    %23 = vector.broadcast %cst_24 : f32 to vector<8x32xf32>
    %24 = vector.extract_strided_slice %22 {offsets = [0, 0], sizes = [8, 32], strides = [1, 1]} : vector<8x128xf32> to vector<8x32xf32>
    %25 = arith.negf %24 : vector<8x32xf32>
    %26 = math.exp %25 : vector<8x32xf32>
    %cst_25 = arith.constant 1.000000e+00 : f32
    %27 = vector.broadcast %cst_25 : f32 to vector<8x32xf32>
    %28 = arith.addf %27, %26 : vector<8x32xf32>
    %29 = arith.divf %27, %28 : vector<8x32xf32>
    %30 = vector.extract_strided_slice %22 {offsets = [0, 32], sizes = [8, 32], strides = [1, 1]} : vector<8x128xf32> to vector<8x32xf32>
    %31 = arith.negf %30 : vector<8x32xf32>
    %32 = math.exp %31 : vector<8x32xf32>
    %cst_26 = arith.constant 1.000000e+00 : f32
    %33 = vector.broadcast %cst_26 : f32 to vector<8x32xf32>
    %34 = arith.addf %33, %32 : vector<8x32xf32>
    %35 = arith.divf %33, %34 : vector<8x32xf32>
    %36 = vector.extract_strided_slice %22 {offsets = [0, 64], sizes = [8, 32], strides = [1, 1]} : vector<8x128xf32> to vector<8x32xf32>
    %37 = math.tanh %36 : vector<8x32xf32>
    %38 = vector.extract_strided_slice %22 {offsets = [0, 96], sizes = [8, 32], strides = [1, 1]} : vector<8x128xf32> to vector<8x32xf32>
    %39 = arith.negf %38 : vector<8x32xf32>
    %40 = math.exp %39 : vector<8x32xf32>
    %cst_27 = arith.constant 1.000000e+00 : f32
    %41 = vector.broadcast %cst_27 : f32 to vector<8x32xf32>
    %42 = arith.addf %41, %40 : vector<8x32xf32>
    %43 = arith.divf %41, %42 : vector<8x32xf32>
    %44 = arith.mulf %35, %19 : vector<8x32xf32>
    %45 = arith.mulf %29, %37 : vector<8x32xf32>
    %46 = arith.addf %44, %45 : vector<8x32xf32>
    %47 = math.tanh %46 : vector<8x32xf32>
    %48 = arith.mulf %43, %47 : vector<8x32xf32>
    %cst_28 = arith.constant dense<0.000000e+00> : vector<8x48xf32>
    %49 = tpu.matmul %48, %6, %cst_28 {dimension_numbers = #tpu.dot_dimension_numbers<[1], [0], [0], [1], [0, 0, 1, 1], [], []>} : vector<8x32xf32>, vector<32x48xf32>, vector<8x48xf32> -> vector<8x48xf32>
    %50 = vector.broadcast %7 : vector<1x48xf32> to vector<8x48xf32>
    %51 = arith.addf %49, %50 : vector<8x48xf32>
    %52 = vector.extract_strided_slice %51 {offsets = [0, 0], sizes = [8, 16], strides = [1, 1]} : vector<8x48xf32> to vector<8x16xf32>
    %53 = vector.extract_strided_slice %51 {offsets = [0, 16], sizes = [8, 32], strides = [1, 1]} : vector<8x48xf32> to vector<8x32xf32>
    %54 = arith.addf %23, %53 : vector<8x32xf32>
    %cst_29 = arith.constant dense<0.000000e+00> : vector<8x128xf32>
    %55 = tpu.matmul %48, %4, %cst_29 {dimension_numbers = #tpu.dot_dimension_numbers<[1], [0], [0], [1], [0, 0, 1, 1], [], []>} : vector<8x32xf32>, vector<32x128xf32>, vector<8x128xf32> -> vector<8x128xf32>
    %56 = vector.broadcast %5 : vector<1x128xf32> to vector<8x128xf32>
    %57 = arith.addf %55, %56 : vector<8x128xf32>
    %58 = vector.extract_strided_slice %57 {offsets = [0, 0], sizes = [8, 32], strides = [1, 1]} : vector<8x128xf32> to vector<8x32xf32>
    %59 = arith.negf %58 : vector<8x32xf32>
    %60 = math.exp %59 : vector<8x32xf32>
    %cst_30 = arith.constant 1.000000e+00 : f32
    %61 = vector.broadcast %cst_30 : f32 to vector<8x32xf32>
    %62 = arith.addf %61, %60 : vector<8x32xf32>
    %63 = arith.divf %61, %62 : vector<8x32xf32>
    %64 = vector.extract_strided_slice %57 {offsets = [0, 32], sizes = [8, 32], strides = [1, 1]} : vector<8x128xf32> to vector<8x32xf32>
    %65 = arith.negf %64 : vector<8x32xf32>
    %66 = math.exp %65 : vector<8x32xf32>
    %cst_31 = arith.constant 1.000000e+00 : f32
    %67 = vector.broadcast %cst_31 : f32 to vector<8x32xf32>
    %68 = arith.addf %67, %66 : vector<8x32xf32>
    %69 = arith.divf %67, %68 : vector<8x32xf32>
    %70 = vector.extract_strided_slice %57 {offsets = [0, 64], sizes = [8, 32], strides = [1, 1]} : vector<8x128xf32> to vector<8x32xf32>
    %71 = math.tanh %70 : vector<8x32xf32>
    %72 = vector.extract_strided_slice %57 {offsets = [0, 96], sizes = [8, 32], strides = [1, 1]} : vector<8x128xf32> to vector<8x32xf32>
    %73 = arith.negf %72 : vector<8x32xf32>
    %74 = math.exp %73 : vector<8x32xf32>
    %cst_32 = arith.constant 1.000000e+00 : f32
    %75 = vector.broadcast %cst_32 : f32 to vector<8x32xf32>
    %76 = arith.addf %75, %74 : vector<8x32xf32>
    %77 = arith.divf %75, %76 : vector<8x32xf32>
    %78 = arith.mulf %69, %46 : vector<8x32xf32>
    %79 = arith.mulf %63, %71 : vector<8x32xf32>
    %80 = arith.addf %78, %79 : vector<8x32xf32>
    %81 = math.tanh %80 : vector<8x32xf32>
    %82 = arith.mulf %77, %81 : vector<8x32xf32>
    %cst_33 = arith.constant dense<0.000000e+00> : vector<8x48xf32>
    %83 = tpu.matmul %82, %6, %cst_33 {dimension_numbers = #tpu.dot_dimension_numbers<[1], [0], [0], [1], [0, 0, 1, 1], [], []>} : vector<8x32xf32>, vector<32x48xf32>, vector<8x48xf32> -> vector<8x48xf32>
    %84 = vector.broadcast %7 : vector<1x48xf32> to vector<8x48xf32>
    %85 = arith.addf %83, %84 : vector<8x48xf32>
    %86 = vector.extract_strided_slice %85 {offsets = [0, 0], sizes = [8, 16], strides = [1, 1]} : vector<8x48xf32> to vector<8x16xf32>
    %87 = vector.extract_strided_slice %85 {offsets = [0, 16], sizes = [8, 32], strides = [1, 1]} : vector<8x48xf32> to vector<8x32xf32>
    %88 = arith.addf %54, %87 : vector<8x32xf32>
    %cst_34 = arith.constant dense<0.000000e+00> : vector<8x128xf32>
    %89 = tpu.matmul %82, %4, %cst_34 {dimension_numbers = #tpu.dot_dimension_numbers<[1], [0], [0], [1], [0, 0, 1, 1], [], []>} : vector<8x32xf32>, vector<32x128xf32>, vector<8x128xf32> -> vector<8x128xf32>
    %90 = vector.broadcast %5 : vector<1x128xf32> to vector<8x128xf32>
    %91 = arith.addf %89, %90 : vector<8x128xf32>
    %92 = vector.extract_strided_slice %91 {offsets = [0, 0], sizes = [8, 32], strides = [1, 1]} : vector<8x128xf32> to vector<8x32xf32>
    %93 = arith.negf %92 : vector<8x32xf32>
    %94 = math.exp %93 : vector<8x32xf32>
    %cst_35 = arith.constant 1.000000e+00 : f32
    %95 = vector.broadcast %cst_35 : f32 to vector<8x32xf32>
    %96 = arith.addf %95, %94 : vector<8x32xf32>
    %97 = arith.divf %95, %96 : vector<8x32xf32>
    %98 = vector.extract_strided_slice %91 {offsets = [0, 32], sizes = [8, 32], strides = [1, 1]} : vector<8x128xf32> to vector<8x32xf32>
    %99 = arith.negf %98 : vector<8x32xf32>
    %100 = math.exp %99 : vector<8x32xf32>
    %cst_36 = arith.constant 1.000000e+00 : f32
    %101 = vector.broadcast %cst_36 : f32 to vector<8x32xf32>
    %102 = arith.addf %101, %100 : vector<8x32xf32>
    %103 = arith.divf %101, %102 : vector<8x32xf32>
    %104 = vector.extract_strided_slice %91 {offsets = [0, 64], sizes = [8, 32], strides = [1, 1]} : vector<8x128xf32> to vector<8x32xf32>
    %105 = math.tanh %104 : vector<8x32xf32>
    %106 = vector.extract_strided_slice %91 {offsets = [0, 96], sizes = [8, 32], strides = [1, 1]} : vector<8x128xf32> to vector<8x32xf32>
    %107 = arith.negf %106 : vector<8x32xf32>
    %108 = math.exp %107 : vector<8x32xf32>
    %cst_37 = arith.constant 1.000000e+00 : f32
    %109 = vector.broadcast %cst_37 : f32 to vector<8x32xf32>
    %110 = arith.addf %109, %108 : vector<8x32xf32>
    %111 = arith.divf %109, %110 : vector<8x32xf32>
    %112 = arith.mulf %103, %80 : vector<8x32xf32>
    %113 = arith.mulf %97, %105 : vector<8x32xf32>
    %114 = arith.addf %112, %113 : vector<8x32xf32>
    %115 = math.tanh %114 : vector<8x32xf32>
    %116 = arith.mulf %111, %115 : vector<8x32xf32>
    %cst_38 = arith.constant dense<0.000000e+00> : vector<8x48xf32>
    %117 = tpu.matmul %116, %6, %cst_38 {dimension_numbers = #tpu.dot_dimension_numbers<[1], [0], [0], [1], [0, 0, 1, 1], [], []>} : vector<8x32xf32>, vector<32x48xf32>, vector<8x48xf32> -> vector<8x48xf32>
    %118 = vector.broadcast %7 : vector<1x48xf32> to vector<8x48xf32>
    %119 = arith.addf %117, %118 : vector<8x48xf32>
    %120 = vector.extract_strided_slice %119 {offsets = [0, 0], sizes = [8, 16], strides = [1, 1]} : vector<8x48xf32> to vector<8x16xf32>
    %121 = vector.extract_strided_slice %119 {offsets = [0, 16], sizes = [8, 32], strides = [1, 1]} : vector<8x48xf32> to vector<8x32xf32>
    %122 = arith.addf %88, %121 : vector<8x32xf32>
    %cst_39 = arith.constant dense<0.000000e+00> : vector<8x128xf32>
    %123 = tpu.matmul %116, %4, %cst_39 {dimension_numbers = #tpu.dot_dimension_numbers<[1], [0], [0], [1], [0, 0, 1, 1], [], []>} : vector<8x32xf32>, vector<32x128xf32>, vector<8x128xf32> -> vector<8x128xf32>
    %124 = vector.broadcast %5 : vector<1x128xf32> to vector<8x128xf32>
    %125 = arith.addf %123, %124 : vector<8x128xf32>
    %126 = vector.extract_strided_slice %125 {offsets = [0, 0], sizes = [8, 32], strides = [1, 1]} : vector<8x128xf32> to vector<8x32xf32>
    %127 = arith.negf %126 : vector<8x32xf32>
    %128 = math.exp %127 : vector<8x32xf32>
    %cst_40 = arith.constant 1.000000e+00 : f32
    %129 = vector.broadcast %cst_40 : f32 to vector<8x32xf32>
    %130 = arith.addf %129, %128 : vector<8x32xf32>
    %131 = arith.divf %129, %130 : vector<8x32xf32>
    %132 = vector.extract_strided_slice %125 {offsets = [0, 32], sizes = [8, 32], strides = [1, 1]} : vector<8x128xf32> to vector<8x32xf32>
    %133 = arith.negf %132 : vector<8x32xf32>
    %134 = math.exp %133 : vector<8x32xf32>
    %cst_41 = arith.constant 1.000000e+00 : f32
    %135 = vector.broadcast %cst_41 : f32 to vector<8x32xf32>
    %136 = arith.addf %135, %134 : vector<8x32xf32>
    %137 = arith.divf %135, %136 : vector<8x32xf32>
    %138 = vector.extract_strided_slice %125 {offsets = [0, 64], sizes = [8, 32], strides = [1, 1]} : vector<8x128xf32> to vector<8x32xf32>
    %139 = math.tanh %138 : vector<8x32xf32>
    %140 = vector.extract_strided_slice %125 {offsets = [0, 96], sizes = [8, 32], strides = [1, 1]} : vector<8x128xf32> to vector<8x32xf32>
    %141 = arith.negf %140 : vector<8x32xf32>
    %142 = math.exp %141 : vector<8x32xf32>
    %cst_42 = arith.constant 1.000000e+00 : f32
    %143 = vector.broadcast %cst_42 : f32 to vector<8x32xf32>
    %144 = arith.addf %143, %142 : vector<8x32xf32>
    %145 = arith.divf %143, %144 : vector<8x32xf32>
    %146 = arith.mulf %137, %114 : vector<8x32xf32>
    %147 = arith.mulf %131, %139 : vector<8x32xf32>
    %148 = arith.addf %146, %147 : vector<8x32xf32>
    %149 = math.tanh %148 : vector<8x32xf32>
    %150 = arith.mulf %145, %149 : vector<8x32xf32>
    %cst_43 = arith.constant dense<0.000000e+00> : vector<8x48xf32>
    %151 = tpu.matmul %150, %6, %cst_43 {dimension_numbers = #tpu.dot_dimension_numbers<[1], [0], [0], [1], [0, 0, 1, 1], [], []>} : vector<8x32xf32>, vector<32x48xf32>, vector<8x48xf32> -> vector<8x48xf32>
    %152 = vector.broadcast %7 : vector<1x48xf32> to vector<8x48xf32>
    %153 = arith.addf %151, %152 : vector<8x48xf32>
    %154 = vector.extract_strided_slice %153 {offsets = [0, 0], sizes = [8, 16], strides = [1, 1]} : vector<8x48xf32> to vector<8x16xf32>
    %155 = vector.extract_strided_slice %153 {offsets = [0, 16], sizes = [8, 32], strides = [1, 1]} : vector<8x48xf32> to vector<8x32xf32>
    %156 = arith.addf %122, %155 : vector<8x32xf32>
    %157 = tpu.concatenate %156, %10 in 1 : vector<8x32xf32>, vector<8x32xf32> -> vector<8x64xf32>
    %158 = arith.index_cast %c0_i32 : i32 to index
    %c0_44 = arith.constant 0 : index
    %c0_45 = arith.constant 0 : index
    %159 = vector.load %arg0[%158, %c0_44, %c0_45] : memref<8x8x128xf32, #tpu.memory_space<vmem>>, vector<1x8x128xf32>
    %160 = vector.shape_cast %159 : vector<1x8x128xf32> to vector<8x128xf32>
    %cst_46 = arith.constant dense<0.000000e+00> : vector<8x128xf32>
    %161 = tpu.matmul %157, %8, %cst_46 {dimension_numbers = #tpu.dot_dimension_numbers<[1], [0], [0], [1], [0, 0, 1, 1], [], []>} : vector<8x64xf32>, vector<64x128xf32>, vector<8x128xf32> -> vector<8x128xf32>
    %162 = arith.addf %160, %161 : vector<8x128xf32>
    %163 = vector.extract_strided_slice %162 {offsets = [0, 0], sizes = [8, 32], strides = [1, 1]} : vector<8x128xf32> to vector<8x32xf32>
    %164 = arith.negf %163 : vector<8x32xf32>
    %165 = math.exp %164 : vector<8x32xf32>
    %cst_47 = arith.constant 1.000000e+00 : f32
    %166 = vector.broadcast %cst_47 : f32 to vector<8x32xf32>
    %167 = arith.addf %166, %165 : vector<8x32xf32>
    %168 = arith.divf %166, %167 : vector<8x32xf32>
    %169 = vector.extract_strided_slice %162 {offsets = [0, 32], sizes = [8, 32], strides = [1, 1]} : vector<8x128xf32> to vector<8x32xf32>
    %170 = arith.negf %169 : vector<8x32xf32>
    %171 = math.exp %170 : vector<8x32xf32>
    %cst_48 = arith.constant 1.000000e+00 : f32
    %172 = vector.broadcast %cst_48 : f32 to vector<8x32xf32>
    %173 = arith.addf %172, %171 : vector<8x32xf32>
    %174 = arith.divf %172, %173 : vector<8x32xf32>
    %175 = vector.extract_strided_slice %162 {offsets = [0, 64], sizes = [8, 32], strides = [1, 1]} : vector<8x128xf32> to vector<8x32xf32>
    %176 = math.tanh %175 : vector<8x32xf32>
    %177 = vector.extract_strided_slice %162 {offsets = [0, 96], sizes = [8, 32], strides = [1, 1]} : vector<8x128xf32> to vector<8x32xf32>
    %178 = arith.negf %177 : vector<8x32xf32>
    %179 = math.exp %178 : vector<8x32xf32>
    %cst_49 = arith.constant 1.000000e+00 : f32
    %180 = vector.broadcast %cst_49 : f32 to vector<8x32xf32>
    %181 = arith.addf %180, %179 : vector<8x32xf32>
    %182 = arith.divf %180, %181 : vector<8x32xf32>
    %183 = arith.mulf %174, %11 : vector<8x32xf32>
    %184 = arith.mulf %168, %176 : vector<8x32xf32>
    %185 = arith.addf %183, %184 : vector<8x32xf32>
    %186 = math.tanh %185 : vector<8x32xf32>
    %187 = arith.mulf %182, %186 : vector<8x32xf32>
    %cst_50 = arith.constant dense<0.000000e+00> : vector<8x48xf32>
    %188 = tpu.matmul %187, %6, %cst_50 {dimension_numbers = #tpu.dot_dimension_numbers<[1], [0], [0], [1], [0, 0, 1, 1], [], []>} : vector<8x32xf32>, vector<32x48xf32>, vector<8x48xf32> -> vector<8x48xf32>
    %189 = vector.broadcast %7 : vector<1x48xf32> to vector<8x48xf32>
    %190 = arith.addf %188, %189 : vector<8x48xf32>
    %191 = vector.extract_strided_slice %190 {offsets = [0, 0], sizes = [8, 16], strides = [1, 1]} : vector<8x48xf32> to vector<8x16xf32>
    %192 = tpu.concatenate %191, %52, %86, %120, %154, %9 in 1 : vector<8x16xf32>, vector<8x16xf32>, vector<8x16xf32>, vector<8x16xf32>, vector<8x16xf32>, vector<8x48xf32> -> vector<8x128xf32>
    %193 = arith.index_cast %c0_i32 : i32 to index
    %c0_51 = arith.constant 0 : index
    %c0_52 = arith.constant 0 : index
    %194 = vector.load %arg12[%193, %c0_51, %c0_52] : memref<8x8x128xf32, #tpu.memory_space<vmem>>, vector<1x8x128xf32>
    %195 = vector.shape_cast %194 : vector<1x8x128xf32> to vector<8x128xf32>
    %196 = vector.shape_cast %192 : vector<8x128xf32> to vector<1x8x128xf32>
    tpu.vector_store %arg12[%193, %c0_51, %c0_52], %196 {strides = array<i32>} : memref<8x8x128xf32, #tpu.memory_space<vmem>>, vector<1x8x128xf32>,
    %c1_i32 = arith.constant 1 : i32
    %197 = tpu.concatenate %187, %185 in 1 : vector<8x32xf32>, vector<8x32xf32> -> vector<8x64xf32>
    %cst_53 = arith.constant dense<0.000000e+00> : vector<8x64xf32>
    %198 = tpu.matmul %197, %0, %cst_53 {dimension_numbers = #tpu.dot_dimension_numbers<[1], [0], [0], [1], [0, 0, 1, 1], [], []>} : vector<8x64xf32>, vector<64x64xf32>, vector<8x64xf32> -> vector<8x64xf32>
    %199 = vector.broadcast %1 : vector<1x64xf32> to vector<8x64xf32>
    %200 = arith.addf %198, %199 : vector<8x64xf32>
    %cst_54 = arith.constant 0.000000e+00 : f32
    %201 = vector.broadcast %cst_54 : f32 to vector<8x64xf32>
    %202 = arith.maximumf %200, %201 : vector<8x64xf32>
    %203 = vector.extract_strided_slice %202 {offsets = [0, 0], sizes = [8, 32], strides = [1, 1]} : vector<8x64xf32> to vector<8x32xf32>
    %204 = vector.extract_strided_slice %202 {offsets = [0, 32], sizes = [8, 32], strides = [1, 1]} : vector<8x64xf32> to vector<8x32xf32>
    %cst_55 = arith.constant dense<0.000000e+00> : vector<8x128xf32>
    %205 = tpu.matmul %203, %2, %cst_55 {dimension_numbers = #tpu.dot_dimension_numbers<[1], [0], [0], [1], [0, 0, 1, 1], [], []>} : vector<8x32xf32>, vector<32x128xf32>, vector<8x128xf32> -> vector<8x128xf32>
    %206 = vector.broadcast %3 : vector<1x128xf32> to vector<8x128xf32>
    %207 = arith.addf %205, %206 : vector<8x128xf32>
    %cst_56 = arith.constant 0.000000e+00 : f32
    %208 = vector.broadcast %cst_56 : f32 to vector<8x32xf32>
    %209 = vector.extract_strided_slice %207 {offsets = [0, 0], sizes = [8, 32], strides = [1, 1]} : vector<8x128xf32> to vector<8x32xf32>
    %210 = arith.negf %209 : vector<8x32xf32>
    %211 = math.exp %210 : vector<8x32xf32>
    %cst_57 = arith.constant 1.000000e+00 : f32
    %212 = vector.broadcast %cst_57 : f32 to vector<8x32xf32>
    %213 = arith.addf %212, %211 : vector<8x32xf32>
    %214 = arith.divf %212, %213 : vector<8x32xf32>
    %215 = vector.extract_strided_slice %207 {offsets = [0, 32], sizes = [8, 32], strides = [1, 1]} : vector<8x128xf32> to vector<8x32xf32>
    %216 = arith.negf %215 : vector<8x32xf32>
    %217 = math.exp %216 : vector<8x32xf32>
    %cst_58 = arith.constant 1.000000e+00 : f32
    %218 = vector.broadcast %cst_58 : f32 to vector<8x32xf32>
    %219 = arith.addf %218, %217 : vector<8x32xf32>
    %220 = arith.divf %218, %219 : vector<8x32xf32>
    %221 = vector.extract_strided_slice %207 {offsets = [0, 64], sizes = [8, 32], strides = [1, 1]} : vector<8x128xf32> to vector<8x32xf32>
    %222 = math.tanh %221 : vector<8x32xf32>
    %223 = vector.extract_strided_slice %207 {offsets = [0, 96], sizes = [8, 32], strides = [1, 1]} : vector<8x128xf32> to vector<8x32xf32>
    %224 = arith.negf %223 : vector<8x32xf32>
    %225 = math.exp %224 : vector<8x32xf32>
    %cst_59 = arith.constant 1.000000e+00 : f32
    %226 = vector.broadcast %cst_59 : f32 to vector<8x32xf32>
    %227 = arith.addf %226, %225 : vector<8x32xf32>
    %228 = arith.divf %226, %227 : vector<8x32xf32>
    %229 = arith.mulf %220, %204 : vector<8x32xf32>
    %230 = arith.mulf %214, %222 : vector<8x32xf32>
    %231 = arith.addf %229, %230 : vector<8x32xf32>
    %232 = math.tanh %231 : vector<8x32xf32>
    %233 = arith.mulf %228, %232 : vector<8x32xf32>
    %cst_60 = arith.constant dense<0.000000e+00> : vector<8x48xf32>
    %234 = tpu.matmul %233, %6, %cst_60 {dimension_numbers = #tpu.dot_dimension_numbers<[1], [0], [0], [1], [0, 0, 1, 1], [], []>} : vector<8x32xf32>, vector<32x48xf32>, vector<8x48xf32> -> vector<8x48xf32>
    %235 = vector.broadcast %7 : vector<1x48xf32> to vector<8x48xf32>
    %236 = arith.addf %234, %235 : vector<8x48xf32>
    %237 = vector.extract_strided_slice %236 {offsets = [0, 0], sizes = [8, 16], strides = [1, 1]} : vector<8x48xf32> to vector<8x16xf32>
    %238 = vector.extract_strided_slice %236 {offsets = [0, 16], sizes = [8, 32], strides = [1, 1]} : vector<8x48xf32> to vector<8x32xf32>
    %239 = arith.addf %208, %238 : vector<8x32xf32>
    %cst_61 = arith.constant dense<0.000000e+00> : vector<8x128xf32>
    %240 = tpu.matmul %233, %4, %cst_61 {dimension_numbers = #tpu.dot_dimension_numbers<[1], [0], [0], [1], [0, 0, 1, 1], [], []>} : vector<8x32xf32>, vector<32x128xf32>, vector<8x128xf32> -> vector<8x128xf32>
    %241 = vector.broadcast %5 : vector<1x128xf32> to vector<8x128xf32>
    %242 = arith.addf %240, %241 : vector<8x128xf32>
    %243 = vector.extract_strided_slice %242 {offsets = [0, 0], sizes = [8, 32], strides = [1, 1]} : vector<8x128xf32> to vector<8x32xf32>
    %244 = arith.negf %243 : vector<8x32xf32>
    %245 = math.exp %244 : vector<8x32xf32>
    %cst_62 = arith.constant 1.000000e+00 : f32
    %246 = vector.broadcast %cst_62 : f32 to vector<8x32xf32>
    %247 = arith.addf %246, %245 : vector<8x32xf32>
    %248 = arith.divf %246, %247 : vector<8x32xf32>
    %249 = vector.extract_strided_slice %242 {offsets = [0, 32], sizes = [8, 32], strides = [1, 1]} : vector<8x128xf32> to vector<8x32xf32>
    %250 = arith.negf %249 : vector<8x32xf32>
    %251 = math.exp %250 : vector<8x32xf32>
    %cst_63 = arith.constant 1.000000e+00 : f32
    %252 = vector.broadcast %cst_63 : f32 to vector<8x32xf32>
    %253 = arith.addf %252, %251 : vector<8x32xf32>
    %254 = arith.divf %252, %253 : vector<8x32xf32>
    %255 = vector.extract_strided_slice %242 {offsets = [0, 64], sizes = [8, 32], strides = [1, 1]} : vector<8x128xf32> to vector<8x32xf32>
    %256 = math.tanh %255 : vector<8x32xf32>
    %257 = vector.extract_strided_slice %242 {offsets = [0, 96], sizes = [8, 32], strides = [1, 1]} : vector<8x128xf32> to vector<8x32xf32>
    %258 = arith.negf %257 : vector<8x32xf32>
    %259 = math.exp %258 : vector<8x32xf32>
    %cst_64 = arith.constant 1.000000e+00 : f32
    %260 = vector.broadcast %cst_64 : f32 to vector<8x32xf32>
    %261 = arith.addf %260, %259 : vector<8x32xf32>
    %262 = arith.divf %260, %261 : vector<8x32xf32>
    %263 = arith.mulf %254, %231 : vector<8x32xf32>
    %264 = arith.mulf %248, %256 : vector<8x32xf32>
    %265 = arith.addf %263, %264 : vector<8x32xf32>
    %266 = math.tanh %265 : vector<8x32xf32>
    %267 = arith.mulf %262, %266 : vector<8x32xf32>
    %cst_65 = arith.constant dense<0.000000e+00> : vector<8x48xf32>
    %268 = tpu.matmul %267, %6, %cst_65 {dimension_numbers = #tpu.dot_dimension_numbers<[1], [0], [0], [1], [0, 0, 1, 1], [], []>} : vector<8x32xf32>, vector<32x48xf32>, vector<8x48xf32> -> vector<8x48xf32>
    %269 = vector.broadcast %7 : vector<1x48xf32> to vector<8x48xf32>
    %270 = arith.addf %268, %269 : vector<8x48xf32>
    %271 = vector.extract_strided_slice %270 {offsets = [0, 0], sizes = [8, 16], strides = [1, 1]} : vector<8x48xf32> to vector<8x16xf32>
    %272 = vector.extract_strided_slice %270 {offsets = [0, 16], sizes = [8, 32], strides = [1, 1]} : vector<8x48xf32> to vector<8x32xf32>
    %273 = arith.addf %239, %272 : vector<8x32xf32>
    %cst_66 = arith.constant dense<0.000000e+00> : vector<8x128xf32>
    %274 = tpu.matmul %267, %4, %cst_66 {dimension_numbers = #tpu.dot_dimension_numbers<[1], [0], [0], [1], [0, 0, 1, 1], [], []>} : vector<8x32xf32>, vector<32x128xf32>, vector<8x128xf32> -> vector<8x128xf32>
    %275 = vector.broadcast %5 : vector<1x128xf32> to vector<8x128xf32>
    %276 = arith.addf %274, %275 : vector<8x128xf32>
    %277 = vector.extract_strided_slice %276 {offsets = [0, 0], sizes = [8, 32], strides = [1, 1]} : vector<8x128xf32> to vector<8x32xf32>
    %278 = arith.negf %277 : vector<8x32xf32>
    %279 = math.exp %278 : vector<8x32xf32>
    %cst_67 = arith.constant 1.000000e+00 : f32
    %280 = vector.broadcast %cst_67 : f32 to vector<8x32xf32>
    %281 = arith.addf %280, %279 : vector<8x32xf32>
    %282 = arith.divf %280, %281 : vector<8x32xf32>
    %283 = vector.extract_strided_slice %276 {offsets = [0, 32], sizes = [8, 32], strides = [1, 1]} : vector<8x128xf32> to vector<8x32xf32>
    %284 = arith.negf %283 : vector<8x32xf32>
    %285 = math.exp %284 : vector<8x32xf32>
    %cst_68 = arith.constant 1.000000e+00 : f32
    %286 = vector.broadcast %cst_68 : f32 to vector<8x32xf32>
    %287 = arith.addf %286, %285 : vector<8x32xf32>
    %288 = arith.divf %286, %287 : vector<8x32xf32>
    %289 = vector.extract_strided_slice %276 {offsets = [0, 64], sizes = [8, 32], strides = [1, 1]} : vector<8x128xf32> to vector<8x32xf32>
    %290 = math.tanh %289 : vector<8x32xf32>
    %291 = vector.extract_strided_slice %276 {offsets = [0, 96], sizes = [8, 32], strides = [1, 1]} : vector<8x128xf32> to vector<8x32xf32>
    %292 = arith.negf %291 : vector<8x32xf32>
    %293 = math.exp %292 : vector<8x32xf32>
    %cst_69 = arith.constant 1.000000e+00 : f32
    %294 = vector.broadcast %cst_69 : f32 to vector<8x32xf32>
    %295 = arith.addf %294, %293 : vector<8x32xf32>
    %296 = arith.divf %294, %295 : vector<8x32xf32>
    %297 = arith.mulf %288, %265 : vector<8x32xf32>
    %298 = arith.mulf %282, %290 : vector<8x32xf32>
    %299 = arith.addf %297, %298 : vector<8x32xf32>
    %300 = math.tanh %299 : vector<8x32xf32>
    %301 = arith.mulf %296, %300 : vector<8x32xf32>
    %cst_70 = arith.constant dense<0.000000e+00> : vector<8x48xf32>
    %302 = tpu.matmul %301, %6, %cst_70 {dimension_numbers = #tpu.dot_dimension_numbers<[1], [0], [0], [1], [0, 0, 1, 1], [], []>} : vector<8x32xf32>, vector<32x48xf32>, vector<8x48xf32> -> vector<8x48xf32>
    %303 = vector.broadcast %7 : vector<1x48xf32> to vector<8x48xf32>
    %304 = arith.addf %302, %303 : vector<8x48xf32>
    %305 = vector.extract_strided_slice %304 {offsets = [0, 0], sizes = [8, 16], strides = [1, 1]} : vector<8x48xf32> to vector<8x16xf32>
    %306 = vector.extract_strided_slice %304 {offsets = [0, 16], sizes = [8, 32], strides = [1, 1]} : vector<8x48xf32> to vector<8x32xf32>
    %307 = arith.addf %273, %306 : vector<8x32xf32>
    %cst_71 = arith.constant dense<0.000000e+00> : vector<8x128xf32>
    %308 = tpu.matmul %301, %4, %cst_71 {dimension_numbers = #tpu.dot_dimension_numbers<[1], [0], [0], [1], [0, 0, 1, 1], [], []>} : vector<8x32xf32>, vector<32x128xf32>, vector<8x128xf32> -> vector<8x128xf32>
    %309 = vector.broadcast %5 : vector<1x128xf32> to vector<8x128xf32>
    %310 = arith.addf %308, %309 : vector<8x128xf32>
    %311 = vector.extract_strided_slice %310 {offsets = [0, 0], sizes = [8, 32], strides = [1, 1]} : vector<8x128xf32> to vector<8x32xf32>
    %312 = arith.negf %311 : vector<8x32xf32>
    %313 = math.exp %312 : vector<8x32xf32>
    %cst_72 = arith.constant 1.000000e+00 : f32
    %314 = vector.broadcast %cst_72 : f32 to vector<8x32xf32>
    %315 = arith.addf %314, %313 : vector<8x32xf32>
    %316 = arith.divf %314, %315 : vector<8x32xf32>
    %317 = vector.extract_strided_slice %310 {offsets = [0, 32], sizes = [8, 32], strides = [1, 1]} : vector<8x128xf32> to vector<8x32xf32>
    %318 = arith.negf %317 : vector<8x32xf32>
    %319 = math.exp %318 : vector<8x32xf32>
    %cst_73 = arith.constant 1.000000e+00 : f32
    %320 = vector.broadcast %cst_73 : f32 to vector<8x32xf32>
    %321 = arith.addf %320, %319 : vector<8x32xf32>
    %322 = arith.divf %320, %321 : vector<8x32xf32>
    %323 = vector.extract_strided_slice %310 {offsets = [0, 64], sizes = [8, 32], strides = [1, 1]} : vector<8x128xf32> to vector<8x32xf32>
    %324 = math.tanh %323 : vector<8x32xf32>
    %325 = vector.extract_strided_slice %310 {offsets = [0, 96], sizes = [8, 32], strides = [1, 1]} : vector<8x128xf32> to vector<8x32xf32>
    %326 = arith.negf %325 : vector<8x32xf32>
    %327 = math.exp %326 : vector<8x32xf32>
    %cst_74 = arith.constant 1.000000e+00 : f32
    %328 = vector.broadcast %cst_74 : f32 to vector<8x32xf32>
    %329 = arith.addf %328, %327 : vector<8x32xf32>
    %330 = arith.divf %328, %329 : vector<8x32xf32>
    %331 = arith.mulf %322, %299 : vector<8x32xf32>
    %332 = arith.mulf %316, %324 : vector<8x32xf32>
    %333 = arith.addf %331, %332 : vector<8x32xf32>
    %334 = math.tanh %333 : vector<8x32xf32>
    %335 = arith.mulf %330, %334 : vector<8x32xf32>
    %cst_75 = arith.constant dense<0.000000e+00> : vector<8x48xf32>
    %336 = tpu.matmul %335, %6, %cst_75 {dimension_numbers = #tpu.dot_dimension_numbers<[1], [0], [0], [1], [0, 0, 1, 1], [], []>} : vector<8x32xf32>, vector<32x48xf32>, vector<8x48xf32> -> vector<8x48xf32>
    %337 = vector.broadcast %7 : vector<1x48xf32> to vector<8x48xf32>
    %338 = arith.addf %336, %337 : vector<8x48xf32>
    %339 = vector.extract_strided_slice %338 {offsets = [0, 0], sizes = [8, 16], strides = [1, 1]} : vector<8x48xf32> to vector<8x16xf32>
    %340 = vector.extract_strided_slice %338 {offsets = [0, 16], sizes = [8, 32], strides = [1, 1]} : vector<8x48xf32> to vector<8x32xf32>
    %341 = arith.addf %307, %340 : vector<8x32xf32>
    %342 = tpu.concatenate %341, %187 in 1 : vector<8x32xf32>, vector<8x32xf32> -> vector<8x64xf32>
    %343 = arith.index_cast %c1_i32 : i32 to index
    %c0_76 = arith.constant 0 : index
    %c0_77 = arith.constant 0 : index
    %344 = vector.load %arg0[%343, %c0_76, %c0_77] : memref<8x8x128xf32, #tpu.memory_space<vmem>>, vector<1x8x128xf32>
    %345 = vector.shape_cast %344 : vector<1x8x128xf32> to vector<8x128xf32>
    %cst_78 = arith.constant dense<0.000000e+00> : vector<8x128xf32>
    %346 = tpu.matmul %342, %8, %cst_78 {dimension_numbers = #tpu.dot_dimension_numbers<[1], [0], [0], [1], [0, 0, 1, 1], [], []>} : vector<8x64xf32>, vector<64x128xf32>, vector<8x128xf32> -> vector<8x128xf32>
    %347 = arith.addf %345, %346 : vector<8x128xf32>
    %348 = vector.extract_strided_slice %347 {offsets = [0, 0], sizes = [8, 32], strides = [1, 1]} : vector<8x128xf32> to vector<8x32xf32>
    %349 = arith.negf %348 : vector<8x32xf32>
    %350 = math.exp %349 : vector<8x32xf32>
    %cst_79 = arith.constant 1.000000e+00 : f32
    %351 = vector.broadcast %cst_79 : f32 to vector<8x32xf32>
    %352 = arith.addf %351, %350 : vector<8x32xf32>
    %353 = arith.divf %351, %352 : vector<8x32xf32>
    %354 = vector.extract_strided_slice %347 {offsets = [0, 32], sizes = [8, 32], strides = [1, 1]} : vector<8x128xf32> to vector<8x32xf32>
    %355 = arith.negf %354 : vector<8x32xf32>
    %356 = math.exp %355 : vector<8x32xf32>
    %cst_80 = arith.constant 1.000000e+00 : f32
    %357 = vector.broadcast %cst_80 : f32 to vector<8x32xf32>
    %358 = arith.addf %357, %356 : vector<8x32xf32>
    %359 = arith.divf %357, %358 : vector<8x32xf32>
    %360 = vector.extract_strided_slice %347 {offsets = [0, 64], sizes = [8, 32], strides = [1, 1]} : vector<8x128xf32> to vector<8x32xf32>
    %361 = math.tanh %360 : vector<8x32xf32>
    %362 = vector.extract_strided_slice %347 {offsets = [0, 96], sizes = [8, 32], strides = [1, 1]} : vector<8x128xf32> to vector<8x32xf32>
    %363 = arith.negf %362 : vector<8x32xf32>
    %364 = math.exp %363 : vector<8x32xf32>
    %cst_81 = arith.constant 1.000000e+00 : f32
    %365 = vector.broadcast %cst_81 : f32 to vector<8x32xf32>
    %366 = arith.addf %365, %364 : vector<8x32xf32>
    %367 = arith.divf %365, %366 : vector<8x32xf32>
    %368 = arith.mulf %359, %185 : vector<8x32xf32>
    %369 = arith.mulf %353, %361 : vector<8x32xf32>
    %370 = arith.addf %368, %369 : vector<8x32xf32>
    %371 = math.tanh %370 : vector<8x32xf32>
    %372 = arith.mulf %367, %371 : vector<8x32xf32>
    %cst_82 = arith.constant dense<0.000000e+00> : vector<8x48xf32>
    %373 = tpu.matmul %372, %6, %cst_82 {dimension_numbers = #tpu.dot_dimension_numbers<[1], [0], [0], [1], [0, 0, 1, 1], [], []>} : vector<8x32xf32>, vector<32x48xf32>, vector<8x48xf32> -> vector<8x48xf32>
    %374 = vector.broadcast %7 : vector<1x48xf32> to vector<8x48xf32>
    %375 = arith.addf %373, %374 : vector<8x48xf32>
    %376 = vector.extract_strided_slice %375 {offsets = [0, 0], sizes = [8, 16], strides = [1, 1]} : vector<8x48xf32> to vector<8x16xf32>
    %377 = tpu.concatenate %376, %237, %271, %305, %339, %9 in 1 : vector<8x16xf32>, vector<8x16xf32>, vector<8x16xf32>, vector<8x16xf32>, vector<8x16xf32>, vector<8x48xf32> -> vector<8x128xf32>
    %378 = arith.index_cast %c1_i32 : i32 to index
    %c0_83 = arith.constant 0 : index
    %c0_84 = arith.constant 0 : index
    %379 = vector.load %arg12[%378, %c0_83, %c0_84] : memref<8x8x128xf32, #tpu.memory_space<vmem>>, vector<1x8x128xf32>
    %380 = vector.shape_cast %379 : vector<1x8x128xf32> to vector<8x128xf32>
    %381 = vector.shape_cast %377 : vector<8x128xf32> to vector<1x8x128xf32>
    tpu.vector_store %arg12[%378, %c0_83, %c0_84], %381 {strides = array<i32>} : memref<8x8x128xf32, #tpu.memory_space<vmem>>, vector<1x8x128xf32>,
    %c2_i32 = arith.constant 2 : i32
    %382 = tpu.concatenate %372, %370 in 1 : vector<8x32xf32>, vector<8x32xf32> -> vector<8x64xf32>
    %cst_85 = arith.constant dense<0.000000e+00> : vector<8x64xf32>
    %383 = tpu.matmul %382, %0, %cst_85 {dimension_numbers = #tpu.dot_dimension_numbers<[1], [0], [0], [1], [0, 0, 1, 1], [], []>} : vector<8x64xf32>, vector<64x64xf32>, vector<8x64xf32> -> vector<8x64xf32>
    %384 = vector.broadcast %1 : vector<1x64xf32> to vector<8x64xf32>
    %385 = arith.addf %383, %384 : vector<8x64xf32>
    %cst_86 = arith.constant 0.000000e+00 : f32
    %386 = vector.broadcast %cst_86 : f32 to vector<8x64xf32>
    %387 = arith.maximumf %385, %386 : vector<8x64xf32>
    %388 = vector.extract_strided_slice %387 {offsets = [0, 0], sizes = [8, 32], strides = [1, 1]} : vector<8x64xf32> to vector<8x32xf32>
    %389 = vector.extract_strided_slice %387 {offsets = [0, 32], sizes = [8, 32], strides = [1, 1]} : vector<8x64xf32> to vector<8x32xf32>
    %cst_87 = arith.constant dense<0.000000e+00> : vector<8x128xf32>
    %390 = tpu.matmul %388, %2, %cst_87 {dimension_numbers = #tpu.dot_dimension_numbers<[1], [0], [0], [1], [0, 0, 1, 1], [], []>} : vector<8x32xf32>, vector<32x128xf32>, vector<8x128xf32> -> vector<8x128xf32>
    %391 = vector.broadcast %3 : vector<1x128xf32> to vector<8x128xf32>
    %392 = arith.addf %390, %391 : vector<8x128xf32>
    %cst_88 = arith.constant 0.000000e+00 : f32
    %393 = vector.broadcast %cst_88 : f32 to vector<8x32xf32>
    %394 = vector.extract_strided_slice %392 {offsets = [0, 0], sizes = [8, 32], strides = [1, 1]} : vector<8x128xf32> to vector<8x32xf32>
    %395 = arith.negf %394 : vector<8x32xf32>
    %396 = math.exp %395 : vector<8x32xf32>
    %cst_89 = arith.constant 1.000000e+00 : f32
    %397 = vector.broadcast %cst_89 : f32 to vector<8x32xf32>
    %398 = arith.addf %397, %396 : vector<8x32xf32>
    %399 = arith.divf %397, %398 : vector<8x32xf32>
    %400 = vector.extract_strided_slice %392 {offsets = [0, 32], sizes = [8, 32], strides = [1, 1]} : vector<8x128xf32> to vector<8x32xf32>
    %401 = arith.negf %400 : vector<8x32xf32>
    %402 = math.exp %401 : vector<8x32xf32>
    %cst_90 = arith.constant 1.000000e+00 : f32
    %403 = vector.broadcast %cst_90 : f32 to vector<8x32xf32>
    %404 = arith.addf %403, %402 : vector<8x32xf32>
    %405 = arith.divf %403, %404 : vector<8x32xf32>
    %406 = vector.extract_strided_slice %392 {offsets = [0, 64], sizes = [8, 32], strides = [1, 1]} : vector<8x128xf32> to vector<8x32xf32>
    %407 = math.tanh %406 : vector<8x32xf32>
    %408 = vector.extract_strided_slice %392 {offsets = [0, 96], sizes = [8, 32], strides = [1, 1]} : vector<8x128xf32> to vector<8x32xf32>
    %409 = arith.negf %408 : vector<8x32xf32>
    %410 = math.exp %409 : vector<8x32xf32>
    %cst_91 = arith.constant 1.000000e+00 : f32
    %411 = vector.broadcast %cst_91 : f32 to vector<8x32xf32>
    %412 = arith.addf %411, %410 : vector<8x32xf32>
    %413 = arith.divf %411, %412 : vector<8x32xf32>
    %414 = arith.mulf %405, %389 : vector<8x32xf32>
    %415 = arith.mulf %399, %407 : vector<8x32xf32>
    %416 = arith.addf %414, %415 : vector<8x32xf32>
    %417 = math.tanh %416 : vector<8x32xf32>
    %418 = arith.mulf %413, %417 : vector<8x32xf32>
    %cst_92 = arith.constant dense<0.000000e+00> : vector<8x48xf32>
    %419 = tpu.matmul %418, %6, %cst_92 {dimension_numbers = #tpu.dot_dimension_numbers<[1], [0], [0], [1], [0, 0, 1, 1], [], []>} : vector<8x32xf32>, vector<32x48xf32>, vector<8x48xf32> -> vector<8x48xf32>
    %420 = vector.broadcast %7 : vector<1x48xf32> to vector<8x48xf32>
    %421 = arith.addf %419, %420 : vector<8x48xf32>
    %422 = vector.extract_strided_slice %421 {offsets = [0, 0], sizes = [8, 16], strides = [1, 1]} : vector<8x48xf32> to vector<8x16xf32>
    %423 = vector.extract_strided_slice %421 {offsets = [0, 16], sizes = [8, 32], strides = [1, 1]} : vector<8x48xf32> to vector<8x32xf32>
    %424 = arith.addf %393, %423 : vector<8x32xf32>
    %cst_93 = arith.constant dense<0.000000e+00> : vector<8x128xf32>
    %425 = tpu.matmul %418, %4, %cst_93 {dimension_numbers = #tpu.dot_dimension_numbers<[1], [0], [0], [1], [0, 0, 1, 1], [], []>} : vector<8x32xf32>, vector<32x128xf32>, vector<8x128xf32> -> vector<8x128xf32>
    %426 = vector.broadcast %5 : vector<1x128xf32> to vector<8x128xf32>
    %427 = arith.addf %425, %426 : vector<8x128xf32>
    %428 = vector.extract_strided_slice %427 {offsets = [0, 0], sizes = [8, 32], strides = [1, 1]} : vector<8x128xf32> to vector<8x32xf32>
    %429 = arith.negf %428 : vector<8x32xf32>
    %430 = math.exp %429 : vector<8x32xf32>
    %cst_94 = arith.constant 1.000000e+00 : f32
    %431 = vector.broadcast %cst_94 : f32 to vector<8x32xf32>
    %432 = arith.addf %431, %430 : vector<8x32xf32>
    %433 = arith.divf %431, %432 : vector<8x32xf32>
    %434 = vector.extract_strided_slice %427 {offsets = [0, 32], sizes = [8, 32], strides = [1, 1]} : vector<8x128xf32> to vector<8x32xf32>
    %435 = arith.negf %434 : vector<8x32xf32>
    %436 = math.exp %435 : vector<8x32xf32>
    %cst_95 = arith.constant 1.000000e+00 : f32
    %437 = vector.broadcast %cst_95 : f32 to vector<8x32xf32>
    %438 = arith.addf %437, %436 : vector<8x32xf32>
    %439 = arith.divf %437, %438 : vector<8x32xf32>
    %440 = vector.extract_strided_slice %427 {offsets = [0, 64], sizes = [8, 32], strides = [1, 1]} : vector<8x128xf32> to vector<8x32xf32>
    %441 = math.tanh %440 : vector<8x32xf32>
    %442 = vector.extract_strided_slice %427 {offsets = [0, 96], sizes = [8, 32], strides = [1, 1]} : vector<8x128xf32> to vector<8x32xf32>
    %443 = arith.negf %442 : vector<8x32xf32>
    %444 = math.exp %443 : vector<8x32xf32>
    %cst_96 = arith.constant 1.000000e+00 : f32
    %445 = vector.broadcast %cst_96 : f32 to vector<8x32xf32>
    %446 = arith.addf %445, %444 : vector<8x32xf32>
    %447 = arith.divf %445, %446 : vector<8x32xf32>
    %448 = arith.mulf %439, %416 : vector<8x32xf32>
    %449 = arith.mulf %433, %441 : vector<8x32xf32>
    %450 = arith.addf %448, %449 : vector<8x32xf32>
    %451 = math.tanh %450 : vector<8x32xf32>
    %452 = arith.mulf %447, %451 : vector<8x32xf32>
    %cst_97 = arith.constant dense<0.000000e+00> : vector<8x48xf32>
    %453 = tpu.matmul %452, %6, %cst_97 {dimension_numbers = #tpu.dot_dimension_numbers<[1], [0], [0], [1], [0, 0, 1, 1], [], []>} : vector<8x32xf32>, vector<32x48xf32>, vector<8x48xf32> -> vector<8x48xf32>
    %454 = vector.broadcast %7 : vector<1x48xf32> to vector<8x48xf32>
    %455 = arith.addf %453, %454 : vector<8x48xf32>
    %456 = vector.extract_strided_slice %455 {offsets = [0, 0], sizes = [8, 16], strides = [1, 1]} : vector<8x48xf32> to vector<8x16xf32>
    %457 = vector.extract_strided_slice %455 {offsets = [0, 16], sizes = [8, 32], strides = [1, 1]} : vector<8x48xf32> to vector<8x32xf32>
    %458 = arith.addf %424, %457 : vector<8x32xf32>
    %cst_98 = arith.constant dense<0.000000e+00> : vector<8x128xf32>
    %459 = tpu.matmul %452, %4, %cst_98 {dimension_numbers = #tpu.dot_dimension_numbers<[1], [0], [0], [1], [0, 0, 1, 1], [], []>} : vector<8x32xf32>, vector<32x128xf32>, vector<8x128xf32> -> vector<8x128xf32>
    %460 = vector.broadcast %5 : vector<1x128xf32> to vector<8x128xf32>
    %461 = arith.addf %459, %460 : vector<8x128xf32>
    %462 = vector.extract_strided_slice %461 {offsets = [0, 0], sizes = [8, 32], strides = [1, 1]} : vector<8x128xf32> to vector<8x32xf32>
    %463 = arith.negf %462 : vector<8x32xf32>
    %464 = math.exp %463 : vector<8x32xf32>
    %cst_99 = arith.constant 1.000000e+00 : f32
    %465 = vector.broadcast %cst_99 : f32 to vector<8x32xf32>
    %466 = arith.addf %465, %464 : vector<8x32xf32>
    %467 = arith.divf %465, %466 : vector<8x32xf32>
    %468 = vector.extract_strided_slice %461 {offsets = [0, 32], sizes = [8, 32], strides = [1, 1]} : vector<8x128xf32> to vector<8x32xf32>
    %469 = arith.negf %468 : vector<8x32xf32>
    %470 = math.exp %469 : vector<8x32xf32>
    %cst_100 = arith.constant 1.000000e+00 : f32
    %471 = vector.broadcast %cst_100 : f32 to vector<8x32xf32>
    %472 = arith.addf %471, %470 : vector<8x32xf32>
    %473 = arith.divf %471, %472 : vector<8x32xf32>
    %474 = vector.extract_strided_slice %461 {offsets = [0, 64], sizes = [8, 32], strides = [1, 1]} : vector<8x128xf32> to vector<8x32xf32>
    %475 = math.tanh %474 : vector<8x32xf32>
    %476 = vector.extract_strided_slice %461 {offsets = [0, 96], sizes = [8, 32], strides = [1, 1]} : vector<8x128xf32> to vector<8x32xf32>
    %477 = arith.negf %476 : vector<8x32xf32>
    %478 = math.exp %477 : vector<8x32xf32>
    %cst_101 = arith.constant 1.000000e+00 : f32
    %479 = vector.broadcast %cst_101 : f32 to vector<8x32xf32>
    %480 = arith.addf %479, %478 : vector<8x32xf32>
    %481 = arith.divf %479, %480 : vector<8x32xf32>
    %482 = arith.mulf %473, %450 : vector<8x32xf32>
    %483 = arith.mulf %467, %475 : vector<8x32xf32>
    %484 = arith.addf %482, %483 : vector<8x32xf32>
    %485 = math.tanh %484 : vector<8x32xf32>
    %486 = arith.mulf %481, %485 : vector<8x32xf32>
    %cst_102 = arith.constant dense<0.000000e+00> : vector<8x48xf32>
    %487 = tpu.matmul %486, %6, %cst_102 {dimension_numbers = #tpu.dot_dimension_numbers<[1], [0], [0], [1], [0, 0, 1, 1], [], []>} : vector<8x32xf32>, vector<32x48xf32>, vector<8x48xf32> -> vector<8x48xf32>
    %488 = vector.broadcast %7 : vector<1x48xf32> to vector<8x48xf32>
    %489 = arith.addf %487, %488 : vector<8x48xf32>
    %490 = vector.extract_strided_slice %489 {offsets = [0, 0], sizes = [8, 16], strides = [1, 1]} : vector<8x48xf32> to vector<8x16xf32>
    %491 = vector.extract_strided_slice %489 {offsets = [0, 16], sizes = [8, 32], strides = [1, 1]} : vector<8x48xf32> to vector<8x32xf32>
    %492 = arith.addf %458, %491 : vector<8x32xf32>
    %cst_103 = arith.constant dense<0.000000e+00> : vector<8x128xf32>
    %493 = tpu.matmul %486, %4, %cst_103 {dimension_numbers = #tpu.dot_dimension_numbers<[1], [0], [0], [1], [0, 0, 1, 1], [], []>} : vector<8x32xf32>, vector<32x128xf32>, vector<8x128xf32> -> vector<8x128xf32>
    %494 = vector.broadcast %5 : vector<1x128xf32> to vector<8x128xf32>
    %495 = arith.addf %493, %494 : vector<8x128xf32>
    %496 = vector.extract_strided_slice %495 {offsets = [0, 0], sizes = [8, 32], strides = [1, 1]} : vector<8x128xf32> to vector<8x32xf32>
    %497 = arith.negf %496 : vector<8x32xf32>
    %498 = math.exp %497 : vector<8x32xf32>
    %cst_104 = arith.constant 1.000000e+00 : f32
    %499 = vector.broadcast %cst_104 : f32 to vector<8x32xf32>
    %500 = arith.addf %499, %498 : vector<8x32xf32>
    %501 = arith.divf %499, %500 : vector<8x32xf32>
    %502 = vector.extract_strided_slice %495 {offsets = [0, 32], sizes = [8, 32], strides = [1, 1]} : vector<8x128xf32> to vector<8x32xf32>
    %503 = arith.negf %502 : vector<8x32xf32>
    %504 = math.exp %503 : vector<8x32xf32>
    %cst_105 = arith.constant 1.000000e+00 : f32
    %505 = vector.broadcast %cst_105 : f32 to vector<8x32xf32>
    %506 = arith.addf %505, %504 : vector<8x32xf32>
    %507 = arith.divf %505, %506 : vector<8x32xf32>
    %508 = vector.extract_strided_slice %495 {offsets = [0, 64], sizes = [8, 32], strides = [1, 1]} : vector<8x128xf32> to vector<8x32xf32>
    %509 = math.tanh %508 : vector<8x32xf32>
    %510 = vector.extract_strided_slice %495 {offsets = [0, 96], sizes = [8, 32], strides = [1, 1]} : vector<8x128xf32> to vector<8x32xf32>
    %511 = arith.negf %510 : vector<8x32xf32>
    %512 = math.exp %511 : vector<8x32xf32>
    %cst_106 = arith.constant 1.000000e+00 : f32
    %513 = vector.broadcast %cst_106 : f32 to vector<8x32xf32>
    %514 = arith.addf %513, %512 : vector<8x32xf32>
    %515 = arith.divf %513, %514 : vector<8x32xf32>
    %516 = arith.mulf %507, %484 : vector<8x32xf32>
    %517 = arith.mulf %501, %509 : vector<8x32xf32>
    %518 = arith.addf %516, %517 : vector<8x32xf32>
    %519 = math.tanh %518 : vector<8x32xf32>
    %520 = arith.mulf %515, %519 : vector<8x32xf32>
    %cst_107 = arith.constant dense<0.000000e+00> : vector<8x48xf32>
    %521 = tpu.matmul %520, %6, %cst_107 {dimension_numbers = #tpu.dot_dimension_numbers<[1], [0], [0], [1], [0, 0, 1, 1], [], []>} : vector<8x32xf32>, vector<32x48xf32>, vector<8x48xf32> -> vector<8x48xf32>
    %522 = vector.broadcast %7 : vector<1x48xf32> to vector<8x48xf32>
    %523 = arith.addf %521, %522 : vector<8x48xf32>
    %524 = vector.extract_strided_slice %523 {offsets = [0, 0], sizes = [8, 16], strides = [1, 1]} : vector<8x48xf32> to vector<8x16xf32>
    %525 = vector.extract_strided_slice %523 {offsets = [0, 16], sizes = [8, 32], strides = [1, 1]} : vector<8x48xf32> to vector<8x32xf32>
    %526 = arith.addf %492, %525 : vector<8x32xf32>
    %527 = tpu.concatenate %526, %372 in 1 : vector<8x32xf32>, vector<8x32xf32> -> vector<8x64xf32>
    %528 = arith.index_cast %c2_i32 : i32 to index
    %c0_108 = arith.constant 0 : index
    %c0_109 = arith.constant 0 : index
    %529 = vector.load %arg0[%528, %c0_108, %c0_109] : memref<8x8x128xf32, #tpu.memory_space<vmem>>, vector<1x8x128xf32>
    %530 = vector.shape_cast %529 : vector<1x8x128xf32> to vector<8x128xf32>
    %cst_110 = arith.constant dense<0.000000e+00> : vector<8x128xf32>
    %531 = tpu.matmul %527, %8, %cst_110 {dimension_numbers = #tpu.dot_dimension_numbers<[1], [0], [0], [1], [0, 0, 1, 1], [], []>} : vector<8x64xf32>, vector<64x128xf32>, vector<8x128xf32> -> vector<8x128xf32>
    %532 = arith.addf %530, %531 : vector<8x128xf32>
    %533 = vector.extract_strided_slice %532 {offsets = [0, 0], sizes = [8, 32], strides = [1, 1]} : vector<8x128xf32> to vector<8x32xf32>
    %534 = arith.negf %533 : vector<8x32xf32>
    %535 = math.exp %534 : vector<8x32xf32>
    %cst_111 = arith.constant 1.000000e+00 : f32
    %536 = vector.broadcast %cst_111 : f32 to vector<8x32xf32>
    %537 = arith.addf %536, %535 : vector<8x32xf32>
    %538 = arith.divf %536, %537 : vector<8x32xf32>
    %539 = vector.extract_strided_slice %532 {offsets = [0, 32], sizes = [8, 32], strides = [1, 1]} : vector<8x128xf32> to vector<8x32xf32>
    %540 = arith.negf %539 : vector<8x32xf32>
    %541 = math.exp %540 : vector<8x32xf32>
    %cst_112 = arith.constant 1.000000e+00 : f32
    %542 = vector.broadcast %cst_112 : f32 to vector<8x32xf32>
    %543 = arith.addf %542, %541 : vector<8x32xf32>
    %544 = arith.divf %542, %543 : vector<8x32xf32>
    %545 = vector.extract_strided_slice %532 {offsets = [0, 64], sizes = [8, 32], strides = [1, 1]} : vector<8x128xf32> to vector<8x32xf32>
    %546 = math.tanh %545 : vector<8x32xf32>
    %547 = vector.extract_strided_slice %532 {offsets = [0, 96], sizes = [8, 32], strides = [1, 1]} : vector<8x128xf32> to vector<8x32xf32>
    %548 = arith.negf %547 : vector<8x32xf32>
    %549 = math.exp %548 : vector<8x32xf32>
    %cst_113 = arith.constant 1.000000e+00 : f32
    %550 = vector.broadcast %cst_113 : f32 to vector<8x32xf32>
    %551 = arith.addf %550, %549 : vector<8x32xf32>
    %552 = arith.divf %550, %551 : vector<8x32xf32>
    %553 = arith.mulf %544, %370 : vector<8x32xf32>
    %554 = arith.mulf %538, %546 : vector<8x32xf32>
    %555 = arith.addf %553, %554 : vector<8x32xf32>
    %556 = math.tanh %555 : vector<8x32xf32>
    %557 = arith.mulf %552, %556 : vector<8x32xf32>
    %cst_114 = arith.constant dense<0.000000e+00> : vector<8x48xf32>
    %558 = tpu.matmul %557, %6, %cst_114 {dimension_numbers = #tpu.dot_dimension_numbers<[1], [0], [0], [1], [0, 0, 1, 1], [], []>} : vector<8x32xf32>, vector<32x48xf32>, vector<8x48xf32> -> vector<8x48xf32>
    %559 = vector.broadcast %7 : vector<1x48xf32> to vector<8x48xf32>
    %560 = arith.addf %558, %559 : vector<8x48xf32>
    %561 = vector.extract_strided_slice %560 {offsets = [0, 0], sizes = [8, 16], strides = [1, 1]} : vector<8x48xf32> to vector<8x16xf32>
    %562 = tpu.concatenate %561, %422, %456, %490, %524, %9 in 1 : vector<8x16xf32>, vector<8x16xf32>, vector<8x16xf32>, vector<8x16xf32>, vector<8x16xf32>, vector<8x48xf32> -> vector<8x128xf32>
    %563 = arith.index_cast %c2_i32 : i32 to index
    %c0_115 = arith.constant 0 : index
    %c0_116 = arith.constant 0 : index
    %564 = vector.load %arg12[%563, %c0_115, %c0_116] : memref<8x8x128xf32, #tpu.memory_space<vmem>>, vector<1x8x128xf32>
    %565 = vector.shape_cast %564 : vector<1x8x128xf32> to vector<8x128xf32>
    %566 = vector.shape_cast %562 : vector<8x128xf32> to vector<1x8x128xf32>
    tpu.vector_store %arg12[%563, %c0_115, %c0_116], %566 {strides = array<i32>} : memref<8x8x128xf32, #tpu.memory_space<vmem>>, vector<1x8x128xf32>,
    %c3_i32 = arith.constant 3 : i32
    %567 = tpu.concatenate %557, %555 in 1 : vector<8x32xf32>, vector<8x32xf32> -> vector<8x64xf32>
    %cst_117 = arith.constant dense<0.000000e+00> : vector<8x64xf32>
    %568 = tpu.matmul %567, %0, %cst_117 {dimension_numbers = #tpu.dot_dimension_numbers<[1], [0], [0], [1], [0, 0, 1, 1], [], []>} : vector<8x64xf32>, vector<64x64xf32>, vector<8x64xf32> -> vector<8x64xf32>
    %569 = vector.broadcast %1 : vector<1x64xf32> to vector<8x64xf32>
    %570 = arith.addf %568, %569 : vector<8x64xf32>
    %cst_118 = arith.constant 0.000000e+00 : f32
    %571 = vector.broadcast %cst_118 : f32 to vector<8x64xf32>
    %572 = arith.maximumf %570, %571 : vector<8x64xf32>
    %573 = vector.extract_strided_slice %572 {offsets = [0, 0], sizes = [8, 32], strides = [1, 1]} : vector<8x64xf32> to vector<8x32xf32>
    %574 = vector.extract_strided_slice %572 {offsets = [0, 32], sizes = [8, 32], strides = [1, 1]} : vector<8x64xf32> to vector<8x32xf32>
    %cst_119 = arith.constant dense<0.000000e+00> : vector<8x128xf32>
    %575 = tpu.matmul %573, %2, %cst_119 {dimension_numbers = #tpu.dot_dimension_numbers<[1], [0], [0], [1], [0, 0, 1, 1], [], []>} : vector<8x32xf32>, vector<32x128xf32>, vector<8x128xf32> -> vector<8x128xf32>
    %576 = vector.broadcast %3 : vector<1x128xf32> to vector<8x128xf32>
    %577 = arith.addf %575, %576 : vector<8x128xf32>
    %cst_120 = arith.constant 0.000000e+00 : f32
    %578 = vector.broadcast %cst_120 : f32 to vector<8x32xf32>
    %579 = vector.extract_strided_slice %577 {offsets = [0, 0], sizes = [8, 32], strides = [1, 1]} : vector<8x128xf32> to vector<8x32xf32>
    %580 = arith.negf %579 : vector<8x32xf32>
    %581 = math.exp %580 : vector<8x32xf32>
    %cst_121 = arith.constant 1.000000e+00 : f32
    %582 = vector.broadcast %cst_121 : f32 to vector<8x32xf32>
    %583 = arith.addf %582, %581 : vector<8x32xf32>
    %584 = arith.divf %582, %583 : vector<8x32xf32>
    %585 = vector.extract_strided_slice %577 {offsets = [0, 32], sizes = [8, 32], strides = [1, 1]} : vector<8x128xf32> to vector<8x32xf32>
    %586 = arith.negf %585 : vector<8x32xf32>
    %587 = math.exp %586 : vector<8x32xf32>
    %cst_122 = arith.constant 1.000000e+00 : f32
    %588 = vector.broadcast %cst_122 : f32 to vector<8x32xf32>
    %589 = arith.addf %588, %587 : vector<8x32xf32>
    %590 = arith.divf %588, %589 : vector<8x32xf32>
    %591 = vector.extract_strided_slice %577 {offsets = [0, 64], sizes = [8, 32], strides = [1, 1]} : vector<8x128xf32> to vector<8x32xf32>
    %592 = math.tanh %591 : vector<8x32xf32>
    %593 = vector.extract_strided_slice %577 {offsets = [0, 96], sizes = [8, 32], strides = [1, 1]} : vector<8x128xf32> to vector<8x32xf32>
    %594 = arith.negf %593 : vector<8x32xf32>
    %595 = math.exp %594 : vector<8x32xf32>
    %cst_123 = arith.constant 1.000000e+00 : f32
    %596 = vector.broadcast %cst_123 : f32 to vector<8x32xf32>
    %597 = arith.addf %596, %595 : vector<8x32xf32>
    %598 = arith.divf %596, %597 : vector<8x32xf32>
    %599 = arith.mulf %590, %574 : vector<8x32xf32>
    %600 = arith.mulf %584, %592 : vector<8x32xf32>
    %601 = arith.addf %599, %600 : vector<8x32xf32>
    %602 = math.tanh %601 : vector<8x32xf32>
    %603 = arith.mulf %598, %602 : vector<8x32xf32>
    %cst_124 = arith.constant dense<0.000000e+00> : vector<8x48xf32>
    %604 = tpu.matmul %603, %6, %cst_124 {dimension_numbers = #tpu.dot_dimension_numbers<[1], [0], [0], [1], [0, 0, 1, 1], [], []>} : vector<8x32xf32>, vector<32x48xf32>, vector<8x48xf32> -> vector<8x48xf32>
    %605 = vector.broadcast %7 : vector<1x48xf32> to vector<8x48xf32>
    %606 = arith.addf %604, %605 : vector<8x48xf32>
    %607 = vector.extract_strided_slice %606 {offsets = [0, 0], sizes = [8, 16], strides = [1, 1]} : vector<8x48xf32> to vector<8x16xf32>
    %608 = vector.extract_strided_slice %606 {offsets = [0, 16], sizes = [8, 32], strides = [1, 1]} : vector<8x48xf32> to vector<8x32xf32>
    %609 = arith.addf %578, %608 : vector<8x32xf32>
    %cst_125 = arith.constant dense<0.000000e+00> : vector<8x128xf32>
    %610 = tpu.matmul %603, %4, %cst_125 {dimension_numbers = #tpu.dot_dimension_numbers<[1], [0], [0], [1], [0, 0, 1, 1], [], []>} : vector<8x32xf32>, vector<32x128xf32>, vector<8x128xf32> -> vector<8x128xf32>
    %611 = vector.broadcast %5 : vector<1x128xf32> to vector<8x128xf32>
    %612 = arith.addf %610, %611 : vector<8x128xf32>
    %613 = vector.extract_strided_slice %612 {offsets = [0, 0], sizes = [8, 32], strides = [1, 1]} : vector<8x128xf32> to vector<8x32xf32>
    %614 = arith.negf %613 : vector<8x32xf32>
    %615 = math.exp %614 : vector<8x32xf32>
    %cst_126 = arith.constant 1.000000e+00 : f32
    %616 = vector.broadcast %cst_126 : f32 to vector<8x32xf32>
    %617 = arith.addf %616, %615 : vector<8x32xf32>
    %618 = arith.divf %616, %617 : vector<8x32xf32>
    %619 = vector.extract_strided_slice %612 {offsets = [0, 32], sizes = [8, 32], strides = [1, 1]} : vector<8x128xf32> to vector<8x32xf32>
    %620 = arith.negf %619 : vector<8x32xf32>
    %621 = math.exp %620 : vector<8x32xf32>
    %cst_127 = arith.constant 1.000000e+00 : f32
    %622 = vector.broadcast %cst_127 : f32 to vector<8x32xf32>
    %623 = arith.addf %622, %621 : vector<8x32xf32>
    %624 = arith.divf %622, %623 : vector<8x32xf32>
    %625 = vector.extract_strided_slice %612 {offsets = [0, 64], sizes = [8, 32], strides = [1, 1]} : vector<8x128xf32> to vector<8x32xf32>
    %626 = math.tanh %625 : vector<8x32xf32>
    %627 = vector.extract_strided_slice %612 {offsets = [0, 96], sizes = [8, 32], strides = [1, 1]} : vector<8x128xf32> to vector<8x32xf32>
    %628 = arith.negf %627 : vector<8x32xf32>
    %629 = math.exp %628 : vector<8x32xf32>
    %cst_128 = arith.constant 1.000000e+00 : f32
    %630 = vector.broadcast %cst_128 : f32 to vector<8x32xf32>
    %631 = arith.addf %630, %629 : vector<8x32xf32>
    %632 = arith.divf %630, %631 : vector<8x32xf32>
    %633 = arith.mulf %624, %601 : vector<8x32xf32>
    %634 = arith.mulf %618, %626 : vector<8x32xf32>
    %635 = arith.addf %633, %634 : vector<8x32xf32>
    %636 = math.tanh %635 : vector<8x32xf32>
    %637 = arith.mulf %632, %636 : vector<8x32xf32>
    %cst_129 = arith.constant dense<0.000000e+00> : vector<8x48xf32>
    %638 = tpu.matmul %637, %6, %cst_129 {dimension_numbers = #tpu.dot_dimension_numbers<[1], [0], [0], [1], [0, 0, 1, 1], [], []>} : vector<8x32xf32>, vector<32x48xf32>, vector<8x48xf32> -> vector<8x48xf32>
    %639 = vector.broadcast %7 : vector<1x48xf32> to vector<8x48xf32>
    %640 = arith.addf %638, %639 : vector<8x48xf32>
    %641 = vector.extract_strided_slice %640 {offsets = [0, 0], sizes = [8, 16], strides = [1, 1]} : vector<8x48xf32> to vector<8x16xf32>
    %642 = vector.extract_strided_slice %640 {offsets = [0, 16], sizes = [8, 32], strides = [1, 1]} : vector<8x48xf32> to vector<8x32xf32>
    %643 = arith.addf %609, %642 : vector<8x32xf32>
    %cst_130 = arith.constant dense<0.000000e+00> : vector<8x128xf32>
    %644 = tpu.matmul %637, %4, %cst_130 {dimension_numbers = #tpu.dot_dimension_numbers<[1], [0], [0], [1], [0, 0, 1, 1], [], []>} : vector<8x32xf32>, vector<32x128xf32>, vector<8x128xf32> -> vector<8x128xf32>
    %645 = vector.broadcast %5 : vector<1x128xf32> to vector<8x128xf32>
    %646 = arith.addf %644, %645 : vector<8x128xf32>
    %647 = vector.extract_strided_slice %646 {offsets = [0, 0], sizes = [8, 32], strides = [1, 1]} : vector<8x128xf32> to vector<8x32xf32>
    %648 = arith.negf %647 : vector<8x32xf32>
    %649 = math.exp %648 : vector<8x32xf32>
    %cst_131 = arith.constant 1.000000e+00 : f32
    %650 = vector.broadcast %cst_131 : f32 to vector<8x32xf32>
    %651 = arith.addf %650, %649 : vector<8x32xf32>
    %652 = arith.divf %650, %651 : vector<8x32xf32>
    %653 = vector.extract_strided_slice %646 {offsets = [0, 32], sizes = [8, 32], strides = [1, 1]} : vector<8x128xf32> to vector<8x32xf32>
    %654 = arith.negf %653 : vector<8x32xf32>
    %655 = math.exp %654 : vector<8x32xf32>
    %cst_132 = arith.constant 1.000000e+00 : f32
    %656 = vector.broadcast %cst_132 : f32 to vector<8x32xf32>
    %657 = arith.addf %656, %655 : vector<8x32xf32>
    %658 = arith.divf %656, %657 : vector<8x32xf32>
    %659 = vector.extract_strided_slice %646 {offsets = [0, 64], sizes = [8, 32], strides = [1, 1]} : vector<8x128xf32> to vector<8x32xf32>
    %660 = math.tanh %659 : vector<8x32xf32>
    %661 = vector.extract_strided_slice %646 {offsets = [0, 96], sizes = [8, 32], strides = [1, 1]} : vector<8x128xf32> to vector<8x32xf32>
    %662 = arith.negf %661 : vector<8x32xf32>
    %663 = math.exp %662 : vector<8x32xf32>
    %cst_133 = arith.constant 1.000000e+00 : f32
    %664 = vector.broadcast %cst_133 : f32 to vector<8x32xf32>
    %665 = arith.addf %664, %663 : vector<8x32xf32>
    %666 = arith.divf %664, %665 : vector<8x32xf32>
    %667 = arith.mulf %658, %635 : vector<8x32xf32>
    %668 = arith.mulf %652, %660 : vector<8x32xf32>
    %669 = arith.addf %667, %668 : vector<8x32xf32>
    %670 = math.tanh %669 : vector<8x32xf32>
    %671 = arith.mulf %666, %670 : vector<8x32xf32>
    %cst_134 = arith.constant dense<0.000000e+00> : vector<8x48xf32>
    %672 = tpu.matmul %671, %6, %cst_134 {dimension_numbers = #tpu.dot_dimension_numbers<[1], [0], [0], [1], [0, 0, 1, 1], [], []>} : vector<8x32xf32>, vector<32x48xf32>, vector<8x48xf32> -> vector<8x48xf32>
    %673 = vector.broadcast %7 : vector<1x48xf32> to vector<8x48xf32>
    %674 = arith.addf %672, %673 : vector<8x48xf32>
    %675 = vector.extract_strided_slice %674 {offsets = [0, 0], sizes = [8, 16], strides = [1, 1]} : vector<8x48xf32> to vector<8x16xf32>
    %676 = vector.extract_strided_slice %674 {offsets = [0, 16], sizes = [8, 32], strides = [1, 1]} : vector<8x48xf32> to vector<8x32xf32>
    %677 = arith.addf %643, %676 : vector<8x32xf32>
    %cst_135 = arith.constant dense<0.000000e+00> : vector<8x128xf32>
    %678 = tpu.matmul %671, %4, %cst_135 {dimension_numbers = #tpu.dot_dimension_numbers<[1], [0], [0], [1], [0, 0, 1, 1], [], []>} : vector<8x32xf32>, vector<32x128xf32>, vector<8x128xf32> -> vector<8x128xf32>
    %679 = vector.broadcast %5 : vector<1x128xf32> to vector<8x128xf32>
    %680 = arith.addf %678, %679 : vector<8x128xf32>
    %681 = vector.extract_strided_slice %680 {offsets = [0, 0], sizes = [8, 32], strides = [1, 1]} : vector<8x128xf32> to vector<8x32xf32>
    %682 = arith.negf %681 : vector<8x32xf32>
    %683 = math.exp %682 : vector<8x32xf32>
    %cst_136 = arith.constant 1.000000e+00 : f32
    %684 = vector.broadcast %cst_136 : f32 to vector<8x32xf32>
    %685 = arith.addf %684, %683 : vector<8x32xf32>
    %686 = arith.divf %684, %685 : vector<8x32xf32>
    %687 = vector.extract_strided_slice %680 {offsets = [0, 32], sizes = [8, 32], strides = [1, 1]} : vector<8x128xf32> to vector<8x32xf32>
    %688 = arith.negf %687 : vector<8x32xf32>
    %689 = math.exp %688 : vector<8x32xf32>
    %cst_137 = arith.constant 1.000000e+00 : f32
    %690 = vector.broadcast %cst_137 : f32 to vector<8x32xf32>
    %691 = arith.addf %690, %689 : vector<8x32xf32>
    %692 = arith.divf %690, %691 : vector<8x32xf32>
    %693 = vector.extract_strided_slice %680 {offsets = [0, 64], sizes = [8, 32], strides = [1, 1]} : vector<8x128xf32> to vector<8x32xf32>
    %694 = math.tanh %693 : vector<8x32xf32>
    %695 = vector.extract_strided_slice %680 {offsets = [0, 96], sizes = [8, 32], strides = [1, 1]} : vector<8x128xf32> to vector<8x32xf32>
    %696 = arith.negf %695 : vector<8x32xf32>
    %697 = math.exp %696 : vector<8x32xf32>
    %cst_138 = arith.constant 1.000000e+00 : f32
    %698 = vector.broadcast %cst_138 : f32 to vector<8x32xf32>
    %699 = arith.addf %698, %697 : vector<8x32xf32>
    %700 = arith.divf %698, %699 : vector<8x32xf32>
    %701 = arith.mulf %692, %669 : vector<8x32xf32>
    %702 = arith.mulf %686, %694 : vector<8x32xf32>
    %703 = arith.addf %701, %702 : vector<8x32xf32>
    %704 = math.tanh %703 : vector<8x32xf32>
    %705 = arith.mulf %700, %704 : vector<8x32xf32>
    %cst_139 = arith.constant dense<0.000000e+00> : vector<8x48xf32>
    %706 = tpu.matmul %705, %6, %cst_139 {dimension_numbers = #tpu.dot_dimension_numbers<[1], [0], [0], [1], [0, 0, 1, 1], [], []>} : vector<8x32xf32>, vector<32x48xf32>, vector<8x48xf32> -> vector<8x48xf32>
    %707 = vector.broadcast %7 : vector<1x48xf32> to vector<8x48xf32>
    %708 = arith.addf %706, %707 : vector<8x48xf32>
    %709 = vector.extract_strided_slice %708 {offsets = [0, 0], sizes = [8, 16], strides = [1, 1]} : vector<8x48xf32> to vector<8x16xf32>
    %710 = vector.extract_strided_slice %708 {offsets = [0, 16], sizes = [8, 32], strides = [1, 1]} : vector<8x48xf32> to vector<8x32xf32>
    %711 = arith.addf %677, %710 : vector<8x32xf32>
    %712 = tpu.concatenate %711, %557 in 1 : vector<8x32xf32>, vector<8x32xf32> -> vector<8x64xf32>
    %713 = arith.index_cast %c3_i32 : i32 to index
    %c0_140 = arith.constant 0 : index
    %c0_141 = arith.constant 0 : index
    %714 = vector.load %arg0[%713, %c0_140, %c0_141] : memref<8x8x128xf32, #tpu.memory_space<vmem>>, vector<1x8x128xf32>
    %715 = vector.shape_cast %714 : vector<1x8x128xf32> to vector<8x128xf32>
    %cst_142 = arith.constant dense<0.000000e+00> : vector<8x128xf32>
    %716 = tpu.matmul %712, %8, %cst_142 {dimension_numbers = #tpu.dot_dimension_numbers<[1], [0], [0], [1], [0, 0, 1, 1], [], []>} : vector<8x64xf32>, vector<64x128xf32>, vector<8x128xf32> -> vector<8x128xf32>
    %717 = arith.addf %715, %716 : vector<8x128xf32>
    %718 = vector.extract_strided_slice %717 {offsets = [0, 0], sizes = [8, 32], strides = [1, 1]} : vector<8x128xf32> to vector<8x32xf32>
    %719 = arith.negf %718 : vector<8x32xf32>
    %720 = math.exp %719 : vector<8x32xf32>
    %cst_143 = arith.constant 1.000000e+00 : f32
    %721 = vector.broadcast %cst_143 : f32 to vector<8x32xf32>
    %722 = arith.addf %721, %720 : vector<8x32xf32>
    %723 = arith.divf %721, %722 : vector<8x32xf32>
    %724 = vector.extract_strided_slice %717 {offsets = [0, 32], sizes = [8, 32], strides = [1, 1]} : vector<8x128xf32> to vector<8x32xf32>
    %725 = arith.negf %724 : vector<8x32xf32>
    %726 = math.exp %725 : vector<8x32xf32>
    %cst_144 = arith.constant 1.000000e+00 : f32
    %727 = vector.broadcast %cst_144 : f32 to vector<8x32xf32>
    %728 = arith.addf %727, %726 : vector<8x32xf32>
    %729 = arith.divf %727, %728 : vector<8x32xf32>
    %730 = vector.extract_strided_slice %717 {offsets = [0, 64], sizes = [8, 32], strides = [1, 1]} : vector<8x128xf32> to vector<8x32xf32>
    %731 = math.tanh %730 : vector<8x32xf32>
    %732 = vector.extract_strided_slice %717 {offsets = [0, 96], sizes = [8, 32], strides = [1, 1]} : vector<8x128xf32> to vector<8x32xf32>
    %733 = arith.negf %732 : vector<8x32xf32>
    %734 = math.exp %733 : vector<8x32xf32>
    %cst_145 = arith.constant 1.000000e+00 : f32
    %735 = vector.broadcast %cst_145 : f32 to vector<8x32xf32>
    %736 = arith.addf %735, %734 : vector<8x32xf32>
    %737 = arith.divf %735, %736 : vector<8x32xf32>
    %738 = arith.mulf %729, %555 : vector<8x32xf32>
    %739 = arith.mulf %723, %731 : vector<8x32xf32>
    %740 = arith.addf %738, %739 : vector<8x32xf32>
    %741 = math.tanh %740 : vector<8x32xf32>
    %742 = arith.mulf %737, %741 : vector<8x32xf32>
    %cst_146 = arith.constant dense<0.000000e+00> : vector<8x48xf32>
    %743 = tpu.matmul %742, %6, %cst_146 {dimension_numbers = #tpu.dot_dimension_numbers<[1], [0], [0], [1], [0, 0, 1, 1], [], []>} : vector<8x32xf32>, vector<32x48xf32>, vector<8x48xf32> -> vector<8x48xf32>
    %744 = vector.broadcast %7 : vector<1x48xf32> to vector<8x48xf32>
    %745 = arith.addf %743, %744 : vector<8x48xf32>
    %746 = vector.extract_strided_slice %745 {offsets = [0, 0], sizes = [8, 16], strides = [1, 1]} : vector<8x48xf32> to vector<8x16xf32>
    %747 = tpu.concatenate %746, %607, %641, %675, %709, %9 in 1 : vector<8x16xf32>, vector<8x16xf32>, vector<8x16xf32>, vector<8x16xf32>, vector<8x16xf32>, vector<8x48xf32> -> vector<8x128xf32>
    %748 = arith.index_cast %c3_i32 : i32 to index
    %c0_147 = arith.constant 0 : index
    %c0_148 = arith.constant 0 : index
    %749 = vector.load %arg12[%748, %c0_147, %c0_148] : memref<8x8x128xf32, #tpu.memory_space<vmem>>, vector<1x8x128xf32>
    %750 = vector.shape_cast %749 : vector<1x8x128xf32> to vector<8x128xf32>
    %751 = vector.shape_cast %747 : vector<8x128xf32> to vector<1x8x128xf32>
    tpu.vector_store %arg12[%748, %c0_147, %c0_148], %751 {strides = array<i32>} : memref<8x8x128xf32, #tpu.memory_space<vmem>>, vector<1x8x128xf32>,
    %c4_i32 = arith.constant 4 : i32
    %752 = tpu.concatenate %742, %740 in 1 : vector<8x32xf32>, vector<8x32xf32> -> vector<8x64xf32>
    %cst_149 = arith.constant dense<0.000000e+00> : vector<8x64xf32>
    %753 = tpu.matmul %752, %0, %cst_149 {dimension_numbers = #tpu.dot_dimension_numbers<[1], [0], [0], [1], [0, 0, 1, 1], [], []>} : vector<8x64xf32>, vector<64x64xf32>, vector<8x64xf32> -> vector<8x64xf32>
    %754 = vector.broadcast %1 : vector<1x64xf32> to vector<8x64xf32>
    %755 = arith.addf %753, %754 : vector<8x64xf32>
    %cst_150 = arith.constant 0.000000e+00 : f32
    %756 = vector.broadcast %cst_150 : f32 to vector<8x64xf32>
    %757 = arith.maximumf %755, %756 : vector<8x64xf32>
    %758 = vector.extract_strided_slice %757 {offsets = [0, 0], sizes = [8, 32], strides = [1, 1]} : vector<8x64xf32> to vector<8x32xf32>
    %759 = vector.extract_strided_slice %757 {offsets = [0, 32], sizes = [8, 32], strides = [1, 1]} : vector<8x64xf32> to vector<8x32xf32>
    %cst_151 = arith.constant dense<0.000000e+00> : vector<8x128xf32>
    %760 = tpu.matmul %758, %2, %cst_151 {dimension_numbers = #tpu.dot_dimension_numbers<[1], [0], [0], [1], [0, 0, 1, 1], [], []>} : vector<8x32xf32>, vector<32x128xf32>, vector<8x128xf32> -> vector<8x128xf32>
    %761 = vector.broadcast %3 : vector<1x128xf32> to vector<8x128xf32>
    %762 = arith.addf %760, %761 : vector<8x128xf32>
    %cst_152 = arith.constant 0.000000e+00 : f32
    %763 = vector.broadcast %cst_152 : f32 to vector<8x32xf32>
    %764 = vector.extract_strided_slice %762 {offsets = [0, 0], sizes = [8, 32], strides = [1, 1]} : vector<8x128xf32> to vector<8x32xf32>
    %765 = arith.negf %764 : vector<8x32xf32>
    %766 = math.exp %765 : vector<8x32xf32>
    %cst_153 = arith.constant 1.000000e+00 : f32
    %767 = vector.broadcast %cst_153 : f32 to vector<8x32xf32>
    %768 = arith.addf %767, %766 : vector<8x32xf32>
    %769 = arith.divf %767, %768 : vector<8x32xf32>
    %770 = vector.extract_strided_slice %762 {offsets = [0, 32], sizes = [8, 32], strides = [1, 1]} : vector<8x128xf32> to vector<8x32xf32>
    %771 = arith.negf %770 : vector<8x32xf32>
    %772 = math.exp %771 : vector<8x32xf32>
    %cst_154 = arith.constant 1.000000e+00 : f32
    %773 = vector.broadcast %cst_154 : f32 to vector<8x32xf32>
    %774 = arith.addf %773, %772 : vector<8x32xf32>
    %775 = arith.divf %773, %774 : vector<8x32xf32>
    %776 = vector.extract_strided_slice %762 {offsets = [0, 64], sizes = [8, 32], strides = [1, 1]} : vector<8x128xf32> to vector<8x32xf32>
    %777 = math.tanh %776 : vector<8x32xf32>
    %778 = vector.extract_strided_slice %762 {offsets = [0, 96], sizes = [8, 32], strides = [1, 1]} : vector<8x128xf32> to vector<8x32xf32>
    %779 = arith.negf %778 : vector<8x32xf32>
    %780 = math.exp %779 : vector<8x32xf32>
    %cst_155 = arith.constant 1.000000e+00 : f32
    %781 = vector.broadcast %cst_155 : f32 to vector<8x32xf32>
    %782 = arith.addf %781, %780 : vector<8x32xf32>
    %783 = arith.divf %781, %782 : vector<8x32xf32>
    %784 = arith.mulf %775, %759 : vector<8x32xf32>
    %785 = arith.mulf %769, %777 : vector<8x32xf32>
    %786 = arith.addf %784, %785 : vector<8x32xf32>
    %787 = math.tanh %786 : vector<8x32xf32>
    %788 = arith.mulf %783, %787 : vector<8x32xf32>
    %cst_156 = arith.constant dense<0.000000e+00> : vector<8x48xf32>
    %789 = tpu.matmul %788, %6, %cst_156 {dimension_numbers = #tpu.dot_dimension_numbers<[1], [0], [0], [1], [0, 0, 1, 1], [], []>} : vector<8x32xf32>, vector<32x48xf32>, vector<8x48xf32> -> vector<8x48xf32>
    %790 = vector.broadcast %7 : vector<1x48xf32> to vector<8x48xf32>
    %791 = arith.addf %789, %790 : vector<8x48xf32>
    %792 = vector.extract_strided_slice %791 {offsets = [0, 0], sizes = [8, 16], strides = [1, 1]} : vector<8x48xf32> to vector<8x16xf32>
    %793 = vector.extract_strided_slice %791 {offsets = [0, 16], sizes = [8, 32], strides = [1, 1]} : vector<8x48xf32> to vector<8x32xf32>
    %794 = arith.addf %763, %793 : vector<8x32xf32>
    %cst_157 = arith.constant dense<0.000000e+00> : vector<8x128xf32>
    %795 = tpu.matmul %788, %4, %cst_157 {dimension_numbers = #tpu.dot_dimension_numbers<[1], [0], [0], [1], [0, 0, 1, 1], [], []>} : vector<8x32xf32>, vector<32x128xf32>, vector<8x128xf32> -> vector<8x128xf32>
    %796 = vector.broadcast %5 : vector<1x128xf32> to vector<8x128xf32>
    %797 = arith.addf %795, %796 : vector<8x128xf32>
    %798 = vector.extract_strided_slice %797 {offsets = [0, 0], sizes = [8, 32], strides = [1, 1]} : vector<8x128xf32> to vector<8x32xf32>
    %799 = arith.negf %798 : vector<8x32xf32>
    %800 = math.exp %799 : vector<8x32xf32>
    %cst_158 = arith.constant 1.000000e+00 : f32
    %801 = vector.broadcast %cst_158 : f32 to vector<8x32xf32>
    %802 = arith.addf %801, %800 : vector<8x32xf32>
    %803 = arith.divf %801, %802 : vector<8x32xf32>
    %804 = vector.extract_strided_slice %797 {offsets = [0, 32], sizes = [8, 32], strides = [1, 1]} : vector<8x128xf32> to vector<8x32xf32>
    %805 = arith.negf %804 : vector<8x32xf32>
    %806 = math.exp %805 : vector<8x32xf32>
    %cst_159 = arith.constant 1.000000e+00 : f32
    %807 = vector.broadcast %cst_159 : f32 to vector<8x32xf32>
    %808 = arith.addf %807, %806 : vector<8x32xf32>
    %809 = arith.divf %807, %808 : vector<8x32xf32>
    %810 = vector.extract_strided_slice %797 {offsets = [0, 64], sizes = [8, 32], strides = [1, 1]} : vector<8x128xf32> to vector<8x32xf32>
    %811 = math.tanh %810 : vector<8x32xf32>
    %812 = vector.extract_strided_slice %797 {offsets = [0, 96], sizes = [8, 32], strides = [1, 1]} : vector<8x128xf32> to vector<8x32xf32>
    %813 = arith.negf %812 : vector<8x32xf32>
    %814 = math.exp %813 : vector<8x32xf32>
    %cst_160 = arith.constant 1.000000e+00 : f32
    %815 = vector.broadcast %cst_160 : f32 to vector<8x32xf32>
    %816 = arith.addf %815, %814 : vector<8x32xf32>
    %817 = arith.divf %815, %816 : vector<8x32xf32>
    %818 = arith.mulf %809, %786 : vector<8x32xf32>
    %819 = arith.mulf %803, %811 : vector<8x32xf32>
    %820 = arith.addf %818, %819 : vector<8x32xf32>
    %821 = math.tanh %820 : vector<8x32xf32>
    %822 = arith.mulf %817, %821 : vector<8x32xf32>
    %cst_161 = arith.constant dense<0.000000e+00> : vector<8x48xf32>
    %823 = tpu.matmul %822, %6, %cst_161 {dimension_numbers = #tpu.dot_dimension_numbers<[1], [0], [0], [1], [0, 0, 1, 1], [], []>} : vector<8x32xf32>, vector<32x48xf32>, vector<8x48xf32> -> vector<8x48xf32>
    %824 = vector.broadcast %7 : vector<1x48xf32> to vector<8x48xf32>
    %825 = arith.addf %823, %824 : vector<8x48xf32>
    %826 = vector.extract_strided_slice %825 {offsets = [0, 0], sizes = [8, 16], strides = [1, 1]} : vector<8x48xf32> to vector<8x16xf32>
    %827 = vector.extract_strided_slice %825 {offsets = [0, 16], sizes = [8, 32], strides = [1, 1]} : vector<8x48xf32> to vector<8x32xf32>
    %828 = arith.addf %794, %827 : vector<8x32xf32>
    %cst_162 = arith.constant dense<0.000000e+00> : vector<8x128xf32>
    %829 = tpu.matmul %822, %4, %cst_162 {dimension_numbers = #tpu.dot_dimension_numbers<[1], [0], [0], [1], [0, 0, 1, 1], [], []>} : vector<8x32xf32>, vector<32x128xf32>, vector<8x128xf32> -> vector<8x128xf32>
    %830 = vector.broadcast %5 : vector<1x128xf32> to vector<8x128xf32>
    %831 = arith.addf %829, %830 : vector<8x128xf32>
    %832 = vector.extract_strided_slice %831 {offsets = [0, 0], sizes = [8, 32], strides = [1, 1]} : vector<8x128xf32> to vector<8x32xf32>
    %833 = arith.negf %832 : vector<8x32xf32>
    %834 = math.exp %833 : vector<8x32xf32>
    %cst_163 = arith.constant 1.000000e+00 : f32
    %835 = vector.broadcast %cst_163 : f32 to vector<8x32xf32>
    %836 = arith.addf %835, %834 : vector<8x32xf32>
    %837 = arith.divf %835, %836 : vector<8x32xf32>
    %838 = vector.extract_strided_slice %831 {offsets = [0, 32], sizes = [8, 32], strides = [1, 1]} : vector<8x128xf32> to vector<8x32xf32>
    %839 = arith.negf %838 : vector<8x32xf32>
    %840 = math.exp %839 : vector<8x32xf32>
    %cst_164 = arith.constant 1.000000e+00 : f32
    %841 = vector.broadcast %cst_164 : f32 to vector<8x32xf32>
    %842 = arith.addf %841, %840 : vector<8x32xf32>
    %843 = arith.divf %841, %842 : vector<8x32xf32>
    %844 = vector.extract_strided_slice %831 {offsets = [0, 64], sizes = [8, 32], strides = [1, 1]} : vector<8x128xf32> to vector<8x32xf32>
    %845 = math.tanh %844 : vector<8x32xf32>
    %846 = vector.extract_strided_slice %831 {offsets = [0, 96], sizes = [8, 32], strides = [1, 1]} : vector<8x128xf32> to vector<8x32xf32>
    %847 = arith.negf %846 : vector<8x32xf32>
    %848 = math.exp %847 : vector<8x32xf32>
    %cst_165 = arith.constant 1.000000e+00 : f32
    %849 = vector.broadcast %cst_165 : f32 to vector<8x32xf32>
    %850 = arith.addf %849, %848 : vector<8x32xf32>
    %851 = arith.divf %849, %850 : vector<8x32xf32>
    %852 = arith.mulf %843, %820 : vector<8x32xf32>
    %853 = arith.mulf %837, %845 : vector<8x32xf32>
    %854 = arith.addf %852, %853 : vector<8x32xf32>
    %855 = math.tanh %854 : vector<8x32xf32>
    %856 = arith.mulf %851, %855 : vector<8x32xf32>
    %cst_166 = arith.constant dense<0.000000e+00> : vector<8x48xf32>
    %857 = tpu.matmul %856, %6, %cst_166 {dimension_numbers = #tpu.dot_dimension_numbers<[1], [0], [0], [1], [0, 0, 1, 1], [], []>} : vector<8x32xf32>, vector<32x48xf32>, vector<8x48xf32> -> vector<8x48xf32>
    %858 = vector.broadcast %7 : vector<1x48xf32> to vector<8x48xf32>
    %859 = arith.addf %857, %858 : vector<8x48xf32>
    %860 = vector.extract_strided_slice %859 {offsets = [0, 0], sizes = [8, 16], strides = [1, 1]} : vector<8x48xf32> to vector<8x16xf32>
    %861 = vector.extract_strided_slice %859 {offsets = [0, 16], sizes = [8, 32], strides = [1, 1]} : vector<8x48xf32> to vector<8x32xf32>
    %862 = arith.addf %828, %861 : vector<8x32xf32>
    %cst_167 = arith.constant dense<0.000000e+00> : vector<8x128xf32>
    %863 = tpu.matmul %856, %4, %cst_167 {dimension_numbers = #tpu.dot_dimension_numbers<[1], [0], [0], [1], [0, 0, 1, 1], [], []>} : vector<8x32xf32>, vector<32x128xf32>, vector<8x128xf32> -> vector<8x128xf32>
    %864 = vector.broadcast %5 : vector<1x128xf32> to vector<8x128xf32>
    %865 = arith.addf %863, %864 : vector<8x128xf32>
    %866 = vector.extract_strided_slice %865 {offsets = [0, 0], sizes = [8, 32], strides = [1, 1]} : vector<8x128xf32> to vector<8x32xf32>
    %867 = arith.negf %866 : vector<8x32xf32>
    %868 = math.exp %867 : vector<8x32xf32>
    %cst_168 = arith.constant 1.000000e+00 : f32
    %869 = vector.broadcast %cst_168 : f32 to vector<8x32xf32>
    %870 = arith.addf %869, %868 : vector<8x32xf32>
    %871 = arith.divf %869, %870 : vector<8x32xf32>
    %872 = vector.extract_strided_slice %865 {offsets = [0, 32], sizes = [8, 32], strides = [1, 1]} : vector<8x128xf32> to vector<8x32xf32>
    %873 = arith.negf %872 : vector<8x32xf32>
    %874 = math.exp %873 : vector<8x32xf32>
    %cst_169 = arith.constant 1.000000e+00 : f32
    %875 = vector.broadcast %cst_169 : f32 to vector<8x32xf32>
    %876 = arith.addf %875, %874 : vector<8x32xf32>
    %877 = arith.divf %875, %876 : vector<8x32xf32>
    %878 = vector.extract_strided_slice %865 {offsets = [0, 64], sizes = [8, 32], strides = [1, 1]} : vector<8x128xf32> to vector<8x32xf32>
    %879 = math.tanh %878 : vector<8x32xf32>
    %880 = vector.extract_strided_slice %865 {offsets = [0, 96], sizes = [8, 32], strides = [1, 1]} : vector<8x128xf32> to vector<8x32xf32>
    %881 = arith.negf %880 : vector<8x32xf32>
    %882 = math.exp %881 : vector<8x32xf32>
    %cst_170 = arith.constant 1.000000e+00 : f32
    %883 = vector.broadcast %cst_170 : f32 to vector<8x32xf32>
    %884 = arith.addf %883, %882 : vector<8x32xf32>
    %885 = arith.divf %883, %884 : vector<8x32xf32>
    %886 = arith.mulf %877, %854 : vector<8x32xf32>
    %887 = arith.mulf %871, %879 : vector<8x32xf32>
    %888 = arith.addf %886, %887 : vector<8x32xf32>
    %889 = math.tanh %888 : vector<8x32xf32>
    %890 = arith.mulf %885, %889 : vector<8x32xf32>
    %cst_171 = arith.constant dense<0.000000e+00> : vector<8x48xf32>
    %891 = tpu.matmul %890, %6, %cst_171 {dimension_numbers = #tpu.dot_dimension_numbers<[1], [0], [0], [1], [0, 0, 1, 1], [], []>} : vector<8x32xf32>, vector<32x48xf32>, vector<8x48xf32> -> vector<8x48xf32>
    %892 = vector.broadcast %7 : vector<1x48xf32> to vector<8x48xf32>
    %893 = arith.addf %891, %892 : vector<8x48xf32>
    %894 = vector.extract_strided_slice %893 {offsets = [0, 0], sizes = [8, 16], strides = [1, 1]} : vector<8x48xf32> to vector<8x16xf32>
    %895 = vector.extract_strided_slice %893 {offsets = [0, 16], sizes = [8, 32], strides = [1, 1]} : vector<8x48xf32> to vector<8x32xf32>
    %896 = arith.addf %862, %895 : vector<8x32xf32>
    %897 = tpu.concatenate %896, %742 in 1 : vector<8x32xf32>, vector<8x32xf32> -> vector<8x64xf32>
    %898 = arith.index_cast %c4_i32 : i32 to index
    %c0_172 = arith.constant 0 : index
    %c0_173 = arith.constant 0 : index
    %899 = vector.load %arg0[%898, %c0_172, %c0_173] : memref<8x8x128xf32, #tpu.memory_space<vmem>>, vector<1x8x128xf32>
    %900 = vector.shape_cast %899 : vector<1x8x128xf32> to vector<8x128xf32>
    %cst_174 = arith.constant dense<0.000000e+00> : vector<8x128xf32>
    %901 = tpu.matmul %897, %8, %cst_174 {dimension_numbers = #tpu.dot_dimension_numbers<[1], [0], [0], [1], [0, 0, 1, 1], [], []>} : vector<8x64xf32>, vector<64x128xf32>, vector<8x128xf32> -> vector<8x128xf32>
    %902 = arith.addf %900, %901 : vector<8x128xf32>
    %903 = vector.extract_strided_slice %902 {offsets = [0, 0], sizes = [8, 32], strides = [1, 1]} : vector<8x128xf32> to vector<8x32xf32>
    %904 = arith.negf %903 : vector<8x32xf32>
    %905 = math.exp %904 : vector<8x32xf32>
    %cst_175 = arith.constant 1.000000e+00 : f32
    %906 = vector.broadcast %cst_175 : f32 to vector<8x32xf32>
    %907 = arith.addf %906, %905 : vector<8x32xf32>
    %908 = arith.divf %906, %907 : vector<8x32xf32>
    %909 = vector.extract_strided_slice %902 {offsets = [0, 32], sizes = [8, 32], strides = [1, 1]} : vector<8x128xf32> to vector<8x32xf32>
    %910 = arith.negf %909 : vector<8x32xf32>
    %911 = math.exp %910 : vector<8x32xf32>
    %cst_176 = arith.constant 1.000000e+00 : f32
    %912 = vector.broadcast %cst_176 : f32 to vector<8x32xf32>
    %913 = arith.addf %912, %911 : vector<8x32xf32>
    %914 = arith.divf %912, %913 : vector<8x32xf32>
    %915 = vector.extract_strided_slice %902 {offsets = [0, 64], sizes = [8, 32], strides = [1, 1]} : vector<8x128xf32> to vector<8x32xf32>
    %916 = math.tanh %915 : vector<8x32xf32>
    %917 = vector.extract_strided_slice %902 {offsets = [0, 96], sizes = [8, 32], strides = [1, 1]} : vector<8x128xf32> to vector<8x32xf32>
    %918 = arith.negf %917 : vector<8x32xf32>
    %919 = math.exp %918 : vector<8x32xf32>
    %cst_177 = arith.constant 1.000000e+00 : f32
    %920 = vector.broadcast %cst_177 : f32 to vector<8x32xf32>
    %921 = arith.addf %920, %919 : vector<8x32xf32>
    %922 = arith.divf %920, %921 : vector<8x32xf32>
    %923 = arith.mulf %914, %740 : vector<8x32xf32>
    %924 = arith.mulf %908, %916 : vector<8x32xf32>
    %925 = arith.addf %923, %924 : vector<8x32xf32>
    %926 = math.tanh %925 : vector<8x32xf32>
    %927 = arith.mulf %922, %926 : vector<8x32xf32>
    %cst_178 = arith.constant dense<0.000000e+00> : vector<8x48xf32>
    %928 = tpu.matmul %927, %6, %cst_178 {dimension_numbers = #tpu.dot_dimension_numbers<[1], [0], [0], [1], [0, 0, 1, 1], [], []>} : vector<8x32xf32>, vector<32x48xf32>, vector<8x48xf32> -> vector<8x48xf32>
    %929 = vector.broadcast %7 : vector<1x48xf32> to vector<8x48xf32>
    %930 = arith.addf %928, %929 : vector<8x48xf32>
    %931 = vector.extract_strided_slice %930 {offsets = [0, 0], sizes = [8, 16], strides = [1, 1]} : vector<8x48xf32> to vector<8x16xf32>
    %932 = tpu.concatenate %931, %792, %826, %860, %894, %9 in 1 : vector<8x16xf32>, vector<8x16xf32>, vector<8x16xf32>, vector<8x16xf32>, vector<8x16xf32>, vector<8x48xf32> -> vector<8x128xf32>
    %933 = arith.index_cast %c4_i32 : i32 to index
    %c0_179 = arith.constant 0 : index
    %c0_180 = arith.constant 0 : index
    %934 = vector.load %arg12[%933, %c0_179, %c0_180] : memref<8x8x128xf32, #tpu.memory_space<vmem>>, vector<1x8x128xf32>
    %935 = vector.shape_cast %934 : vector<1x8x128xf32> to vector<8x128xf32>
    %936 = vector.shape_cast %932 : vector<8x128xf32> to vector<1x8x128xf32>
    tpu.vector_store %arg12[%933, %c0_179, %c0_180], %936 {strides = array<i32>} : memref<8x8x128xf32, #tpu.memory_space<vmem>>, vector<1x8x128xf32>,
    %c5_i32 = arith.constant 5 : i32
    %937 = tpu.concatenate %927, %925 in 1 : vector<8x32xf32>, vector<8x32xf32> -> vector<8x64xf32>
    %cst_181 = arith.constant dense<0.000000e+00> : vector<8x64xf32>
    %938 = tpu.matmul %937, %0, %cst_181 {dimension_numbers = #tpu.dot_dimension_numbers<[1], [0], [0], [1], [0, 0, 1, 1], [], []>} : vector<8x64xf32>, vector<64x64xf32>, vector<8x64xf32> -> vector<8x64xf32>
    %939 = vector.broadcast %1 : vector<1x64xf32> to vector<8x64xf32>
    %940 = arith.addf %938, %939 : vector<8x64xf32>
    %cst_182 = arith.constant 0.000000e+00 : f32
    %941 = vector.broadcast %cst_182 : f32 to vector<8x64xf32>
    %942 = arith.maximumf %940, %941 : vector<8x64xf32>
    %943 = vector.extract_strided_slice %942 {offsets = [0, 0], sizes = [8, 32], strides = [1, 1]} : vector<8x64xf32> to vector<8x32xf32>
    %944 = vector.extract_strided_slice %942 {offsets = [0, 32], sizes = [8, 32], strides = [1, 1]} : vector<8x64xf32> to vector<8x32xf32>
    %cst_183 = arith.constant dense<0.000000e+00> : vector<8x128xf32>
    %945 = tpu.matmul %943, %2, %cst_183 {dimension_numbers = #tpu.dot_dimension_numbers<[1], [0], [0], [1], [0, 0, 1, 1], [], []>} : vector<8x32xf32>, vector<32x128xf32>, vector<8x128xf32> -> vector<8x128xf32>
    %946 = vector.broadcast %3 : vector<1x128xf32> to vector<8x128xf32>
    %947 = arith.addf %945, %946 : vector<8x128xf32>
    %cst_184 = arith.constant 0.000000e+00 : f32
    %948 = vector.broadcast %cst_184 : f32 to vector<8x32xf32>
    %949 = vector.extract_strided_slice %947 {offsets = [0, 0], sizes = [8, 32], strides = [1, 1]} : vector<8x128xf32> to vector<8x32xf32>
    %950 = arith.negf %949 : vector<8x32xf32>
    %951 = math.exp %950 : vector<8x32xf32>
    %cst_185 = arith.constant 1.000000e+00 : f32
    %952 = vector.broadcast %cst_185 : f32 to vector<8x32xf32>
    %953 = arith.addf %952, %951 : vector<8x32xf32>
    %954 = arith.divf %952, %953 : vector<8x32xf32>
    %955 = vector.extract_strided_slice %947 {offsets = [0, 32], sizes = [8, 32], strides = [1, 1]} : vector<8x128xf32> to vector<8x32xf32>
    %956 = arith.negf %955 : vector<8x32xf32>
    %957 = math.exp %956 : vector<8x32xf32>
    %cst_186 = arith.constant 1.000000e+00 : f32
    %958 = vector.broadcast %cst_186 : f32 to vector<8x32xf32>
    %959 = arith.addf %958, %957 : vector<8x32xf32>
    %960 = arith.divf %958, %959 : vector<8x32xf32>
    %961 = vector.extract_strided_slice %947 {offsets = [0, 64], sizes = [8, 32], strides = [1, 1]} : vector<8x128xf32> to vector<8x32xf32>
    %962 = math.tanh %961 : vector<8x32xf32>
    %963 = vector.extract_strided_slice %947 {offsets = [0, 96], sizes = [8, 32], strides = [1, 1]} : vector<8x128xf32> to vector<8x32xf32>
    %964 = arith.negf %963 : vector<8x32xf32>
    %965 = math.exp %964 : vector<8x32xf32>
    %cst_187 = arith.constant 1.000000e+00 : f32
    %966 = vector.broadcast %cst_187 : f32 to vector<8x32xf32>
    %967 = arith.addf %966, %965 : vector<8x32xf32>
    %968 = arith.divf %966, %967 : vector<8x32xf32>
    %969 = arith.mulf %960, %944 : vector<8x32xf32>
    %970 = arith.mulf %954, %962 : vector<8x32xf32>
    %971 = arith.addf %969, %970 : vector<8x32xf32>
    %972 = math.tanh %971 : vector<8x32xf32>
    %973 = arith.mulf %968, %972 : vector<8x32xf32>
    %cst_188 = arith.constant dense<0.000000e+00> : vector<8x48xf32>
    %974 = tpu.matmul %973, %6, %cst_188 {dimension_numbers = #tpu.dot_dimension_numbers<[1], [0], [0], [1], [0, 0, 1, 1], [], []>} : vector<8x32xf32>, vector<32x48xf32>, vector<8x48xf32> -> vector<8x48xf32>
    %975 = vector.broadcast %7 : vector<1x48xf32> to vector<8x48xf32>
    %976 = arith.addf %974, %975 : vector<8x48xf32>
    %977 = vector.extract_strided_slice %976 {offsets = [0, 0], sizes = [8, 16], strides = [1, 1]} : vector<8x48xf32> to vector<8x16xf32>
    %978 = vector.extract_strided_slice %976 {offsets = [0, 16], sizes = [8, 32], strides = [1, 1]} : vector<8x48xf32> to vector<8x32xf32>
    %979 = arith.addf %948, %978 : vector<8x32xf32>
    %cst_189 = arith.constant dense<0.000000e+00> : vector<8x128xf32>
    %980 = tpu.matmul %973, %4, %cst_189 {dimension_numbers = #tpu.dot_dimension_numbers<[1], [0], [0], [1], [0, 0, 1, 1], [], []>} : vector<8x32xf32>, vector<32x128xf32>, vector<8x128xf32> -> vector<8x128xf32>
    %981 = vector.broadcast %5 : vector<1x128xf32> to vector<8x128xf32>
    %982 = arith.addf %980, %981 : vector<8x128xf32>
    %983 = vector.extract_strided_slice %982 {offsets = [0, 0], sizes = [8, 32], strides = [1, 1]} : vector<8x128xf32> to vector<8x32xf32>
    %984 = arith.negf %983 : vector<8x32xf32>
    %985 = math.exp %984 : vector<8x32xf32>
    %cst_190 = arith.constant 1.000000e+00 : f32
    %986 = vector.broadcast %cst_190 : f32 to vector<8x32xf32>
    %987 = arith.addf %986, %985 : vector<8x32xf32>
    %988 = arith.divf %986, %987 : vector<8x32xf32>
    %989 = vector.extract_strided_slice %982 {offsets = [0, 32], sizes = [8, 32], strides = [1, 1]} : vector<8x128xf32> to vector<8x32xf32>
    %990 = arith.negf %989 : vector<8x32xf32>
    %991 = math.exp %990 : vector<8x32xf32>
    %cst_191 = arith.constant 1.000000e+00 : f32
    %992 = vector.broadcast %cst_191 : f32 to vector<8x32xf32>
    %993 = arith.addf %992, %991 : vector<8x32xf32>
    %994 = arith.divf %992, %993 : vector<8x32xf32>
    %995 = vector.extract_strided_slice %982 {offsets = [0, 64], sizes = [8, 32], strides = [1, 1]} : vector<8x128xf32> to vector<8x32xf32>
    %996 = math.tanh %995 : vector<8x32xf32>
    %997 = vector.extract_strided_slice %982 {offsets = [0, 96], sizes = [8, 32], strides = [1, 1]} : vector<8x128xf32> to vector<8x32xf32>
    %998 = arith.negf %997 : vector<8x32xf32>
    %999 = math.exp %998 : vector<8x32xf32>
    %cst_192 = arith.constant 1.000000e+00 : f32
    %1000 = vector.broadcast %cst_192 : f32 to vector<8x32xf32>
    %1001 = arith.addf %1000, %999 : vector<8x32xf32>
    %1002 = arith.divf %1000, %1001 : vector<8x32xf32>
    %1003 = arith.mulf %994, %971 : vector<8x32xf32>
    %1004 = arith.mulf %988, %996 : vector<8x32xf32>
    %1005 = arith.addf %1003, %1004 : vector<8x32xf32>
    %1006 = math.tanh %1005 : vector<8x32xf32>
    %1007 = arith.mulf %1002, %1006 : vector<8x32xf32>
    %cst_193 = arith.constant dense<0.000000e+00> : vector<8x48xf32>
    %1008 = tpu.matmul %1007, %6, %cst_193 {dimension_numbers = #tpu.dot_dimension_numbers<[1], [0], [0], [1], [0, 0, 1, 1], [], []>} : vector<8x32xf32>, vector<32x48xf32>, vector<8x48xf32> -> vector<8x48xf32>
    %1009 = vector.broadcast %7 : vector<1x48xf32> to vector<8x48xf32>
    %1010 = arith.addf %1008, %1009 : vector<8x48xf32>
    %1011 = vector.extract_strided_slice %1010 {offsets = [0, 0], sizes = [8, 16], strides = [1, 1]} : vector<8x48xf32> to vector<8x16xf32>
    %1012 = vector.extract_strided_slice %1010 {offsets = [0, 16], sizes = [8, 32], strides = [1, 1]} : vector<8x48xf32> to vector<8x32xf32>
    %1013 = arith.addf %979, %1012 : vector<8x32xf32>
    %cst_194 = arith.constant dense<0.000000e+00> : vector<8x128xf32>
    %1014 = tpu.matmul %1007, %4, %cst_194 {dimension_numbers = #tpu.dot_dimension_numbers<[1], [0], [0], [1], [0, 0, 1, 1], [], []>} : vector<8x32xf32>, vector<32x128xf32>, vector<8x128xf32> -> vector<8x128xf32>
    %1015 = vector.broadcast %5 : vector<1x128xf32> to vector<8x128xf32>
    %1016 = arith.addf %1014, %1015 : vector<8x128xf32>
    %1017 = vector.extract_strided_slice %1016 {offsets = [0, 0], sizes = [8, 32], strides = [1, 1]} : vector<8x128xf32> to vector<8x32xf32>
    %1018 = arith.negf %1017 : vector<8x32xf32>
    %1019 = math.exp %1018 : vector<8x32xf32>
    %cst_195 = arith.constant 1.000000e+00 : f32
    %1020 = vector.broadcast %cst_195 : f32 to vector<8x32xf32>
    %1021 = arith.addf %1020, %1019 : vector<8x32xf32>
    %1022 = arith.divf %1020, %1021 : vector<8x32xf32>
    %1023 = vector.extract_strided_slice %1016 {offsets = [0, 32], sizes = [8, 32], strides = [1, 1]} : vector<8x128xf32> to vector<8x32xf32>
    %1024 = arith.negf %1023 : vector<8x32xf32>
    %1025 = math.exp %1024 : vector<8x32xf32>
    %cst_196 = arith.constant 1.000000e+00 : f32
    %1026 = vector.broadcast %cst_196 : f32 to vector<8x32xf32>
    %1027 = arith.addf %1026, %1025 : vector<8x32xf32>
    %1028 = arith.divf %1026, %1027 : vector<8x32xf32>
    %1029 = vector.extract_strided_slice %1016 {offsets = [0, 64], sizes = [8, 32], strides = [1, 1]} : vector<8x128xf32> to vector<8x32xf32>
    %1030 = math.tanh %1029 : vector<8x32xf32>
    %1031 = vector.extract_strided_slice %1016 {offsets = [0, 96], sizes = [8, 32], strides = [1, 1]} : vector<8x128xf32> to vector<8x32xf32>
    %1032 = arith.negf %1031 : vector<8x32xf32>
    %1033 = math.exp %1032 : vector<8x32xf32>
    %cst_197 = arith.constant 1.000000e+00 : f32
    %1034 = vector.broadcast %cst_197 : f32 to vector<8x32xf32>
    %1035 = arith.addf %1034, %1033 : vector<8x32xf32>
    %1036 = arith.divf %1034, %1035 : vector<8x32xf32>
    %1037 = arith.mulf %1028, %1005 : vector<8x32xf32>
    %1038 = arith.mulf %1022, %1030 : vector<8x32xf32>
    %1039 = arith.addf %1037, %1038 : vector<8x32xf32>
    %1040 = math.tanh %1039 : vector<8x32xf32>
    %1041 = arith.mulf %1036, %1040 : vector<8x32xf32>
    %cst_198 = arith.constant dense<0.000000e+00> : vector<8x48xf32>
    %1042 = tpu.matmul %1041, %6, %cst_198 {dimension_numbers = #tpu.dot_dimension_numbers<[1], [0], [0], [1], [0, 0, 1, 1], [], []>} : vector<8x32xf32>, vector<32x48xf32>, vector<8x48xf32> -> vector<8x48xf32>
    %1043 = vector.broadcast %7 : vector<1x48xf32> to vector<8x48xf32>
    %1044 = arith.addf %1042, %1043 : vector<8x48xf32>
    %1045 = vector.extract_strided_slice %1044 {offsets = [0, 0], sizes = [8, 16], strides = [1, 1]} : vector<8x48xf32> to vector<8x16xf32>
    %1046 = vector.extract_strided_slice %1044 {offsets = [0, 16], sizes = [8, 32], strides = [1, 1]} : vector<8x48xf32> to vector<8x32xf32>
    %1047 = arith.addf %1013, %1046 : vector<8x32xf32>
    %cst_199 = arith.constant dense<0.000000e+00> : vector<8x128xf32>
    %1048 = tpu.matmul %1041, %4, %cst_199 {dimension_numbers = #tpu.dot_dimension_numbers<[1], [0], [0], [1], [0, 0, 1, 1], [], []>} : vector<8x32xf32>, vector<32x128xf32>, vector<8x128xf32> -> vector<8x128xf32>
    %1049 = vector.broadcast %5 : vector<1x128xf32> to vector<8x128xf32>
    %1050 = arith.addf %1048, %1049 : vector<8x128xf32>
    %1051 = vector.extract_strided_slice %1050 {offsets = [0, 0], sizes = [8, 32], strides = [1, 1]} : vector<8x128xf32> to vector<8x32xf32>
    %1052 = arith.negf %1051 : vector<8x32xf32>
    %1053 = math.exp %1052 : vector<8x32xf32>
    %cst_200 = arith.constant 1.000000e+00 : f32
    %1054 = vector.broadcast %cst_200 : f32 to vector<8x32xf32>
    %1055 = arith.addf %1054, %1053 : vector<8x32xf32>
    %1056 = arith.divf %1054, %1055 : vector<8x32xf32>
    %1057 = vector.extract_strided_slice %1050 {offsets = [0, 32], sizes = [8, 32], strides = [1, 1]} : vector<8x128xf32> to vector<8x32xf32>
    %1058 = arith.negf %1057 : vector<8x32xf32>
    %1059 = math.exp %1058 : vector<8x32xf32>
    %cst_201 = arith.constant 1.000000e+00 : f32
    %1060 = vector.broadcast %cst_201 : f32 to vector<8x32xf32>
    %1061 = arith.addf %1060, %1059 : vector<8x32xf32>
    %1062 = arith.divf %1060, %1061 : vector<8x32xf32>
    %1063 = vector.extract_strided_slice %1050 {offsets = [0, 64], sizes = [8, 32], strides = [1, 1]} : vector<8x128xf32> to vector<8x32xf32>
    %1064 = math.tanh %1063 : vector<8x32xf32>
    %1065 = vector.extract_strided_slice %1050 {offsets = [0, 96], sizes = [8, 32], strides = [1, 1]} : vector<8x128xf32> to vector<8x32xf32>
    %1066 = arith.negf %1065 : vector<8x32xf32>
    %1067 = math.exp %1066 : vector<8x32xf32>
    %cst_202 = arith.constant 1.000000e+00 : f32
    %1068 = vector.broadcast %cst_202 : f32 to vector<8x32xf32>
    %1069 = arith.addf %1068, %1067 : vector<8x32xf32>
    %1070 = arith.divf %1068, %1069 : vector<8x32xf32>
    %1071 = arith.mulf %1062, %1039 : vector<8x32xf32>
    %1072 = arith.mulf %1056, %1064 : vector<8x32xf32>
    %1073 = arith.addf %1071, %1072 : vector<8x32xf32>
    %1074 = math.tanh %1073 : vector<8x32xf32>
    %1075 = arith.mulf %1070, %1074 : vector<8x32xf32>
    %cst_203 = arith.constant dense<0.000000e+00> : vector<8x48xf32>
    %1076 = tpu.matmul %1075, %6, %cst_203 {dimension_numbers = #tpu.dot_dimension_numbers<[1], [0], [0], [1], [0, 0, 1, 1], [], []>} : vector<8x32xf32>, vector<32x48xf32>, vector<8x48xf32> -> vector<8x48xf32>
    %1077 = vector.broadcast %7 : vector<1x48xf32> to vector<8x48xf32>
    %1078 = arith.addf %1076, %1077 : vector<8x48xf32>
    %1079 = vector.extract_strided_slice %1078 {offsets = [0, 0], sizes = [8, 16], strides = [1, 1]} : vector<8x48xf32> to vector<8x16xf32>
    %1080 = vector.extract_strided_slice %1078 {offsets = [0, 16], sizes = [8, 32], strides = [1, 1]} : vector<8x48xf32> to vector<8x32xf32>
    %1081 = arith.addf %1047, %1080 : vector<8x32xf32>
    %1082 = tpu.concatenate %1081, %927 in 1 : vector<8x32xf32>, vector<8x32xf32> -> vector<8x64xf32>
    %1083 = arith.index_cast %c5_i32 : i32 to index
    %c0_204 = arith.constant 0 : index
    %c0_205 = arith.constant 0 : index
    %1084 = vector.load %arg0[%1083, %c0_204, %c0_205] : memref<8x8x128xf32, #tpu.memory_space<vmem>>, vector<1x8x128xf32>
    %1085 = vector.shape_cast %1084 : vector<1x8x128xf32> to vector<8x128xf32>
    %cst_206 = arith.constant dense<0.000000e+00> : vector<8x128xf32>
    %1086 = tpu.matmul %1082, %8, %cst_206 {dimension_numbers = #tpu.dot_dimension_numbers<[1], [0], [0], [1], [0, 0, 1, 1], [], []>} : vector<8x64xf32>, vector<64x128xf32>, vector<8x128xf32> -> vector<8x128xf32>
    %1087 = arith.addf %1085, %1086 : vector<8x128xf32>
    %1088 = vector.extract_strided_slice %1087 {offsets = [0, 0], sizes = [8, 32], strides = [1, 1]} : vector<8x128xf32> to vector<8x32xf32>
    %1089 = arith.negf %1088 : vector<8x32xf32>
    %1090 = math.exp %1089 : vector<8x32xf32>
    %cst_207 = arith.constant 1.000000e+00 : f32
    %1091 = vector.broadcast %cst_207 : f32 to vector<8x32xf32>
    %1092 = arith.addf %1091, %1090 : vector<8x32xf32>
    %1093 = arith.divf %1091, %1092 : vector<8x32xf32>
    %1094 = vector.extract_strided_slice %1087 {offsets = [0, 32], sizes = [8, 32], strides = [1, 1]} : vector<8x128xf32> to vector<8x32xf32>
    %1095 = arith.negf %1094 : vector<8x32xf32>
    %1096 = math.exp %1095 : vector<8x32xf32>
    %cst_208 = arith.constant 1.000000e+00 : f32
    %1097 = vector.broadcast %cst_208 : f32 to vector<8x32xf32>
    %1098 = arith.addf %1097, %1096 : vector<8x32xf32>
    %1099 = arith.divf %1097, %1098 : vector<8x32xf32>
    %1100 = vector.extract_strided_slice %1087 {offsets = [0, 64], sizes = [8, 32], strides = [1, 1]} : vector<8x128xf32> to vector<8x32xf32>
    %1101 = math.tanh %1100 : vector<8x32xf32>
    %1102 = vector.extract_strided_slice %1087 {offsets = [0, 96], sizes = [8, 32], strides = [1, 1]} : vector<8x128xf32> to vector<8x32xf32>
    %1103 = arith.negf %1102 : vector<8x32xf32>
    %1104 = math.exp %1103 : vector<8x32xf32>
    %cst_209 = arith.constant 1.000000e+00 : f32
    %1105 = vector.broadcast %cst_209 : f32 to vector<8x32xf32>
    %1106 = arith.addf %1105, %1104 : vector<8x32xf32>
    %1107 = arith.divf %1105, %1106 : vector<8x32xf32>
    %1108 = arith.mulf %1099, %925 : vector<8x32xf32>
    %1109 = arith.mulf %1093, %1101 : vector<8x32xf32>
    %1110 = arith.addf %1108, %1109 : vector<8x32xf32>
    %1111 = math.tanh %1110 : vector<8x32xf32>
    %1112 = arith.mulf %1107, %1111 : vector<8x32xf32>
    %cst_210 = arith.constant dense<0.000000e+00> : vector<8x48xf32>
    %1113 = tpu.matmul %1112, %6, %cst_210 {dimension_numbers = #tpu.dot_dimension_numbers<[1], [0], [0], [1], [0, 0, 1, 1], [], []>} : vector<8x32xf32>, vector<32x48xf32>, vector<8x48xf32> -> vector<8x48xf32>
    %1114 = vector.broadcast %7 : vector<1x48xf32> to vector<8x48xf32>
    %1115 = arith.addf %1113, %1114 : vector<8x48xf32>
    %1116 = vector.extract_strided_slice %1115 {offsets = [0, 0], sizes = [8, 16], strides = [1, 1]} : vector<8x48xf32> to vector<8x16xf32>
    %1117 = tpu.concatenate %1116, %977, %1011, %1045, %1079, %9 in 1 : vector<8x16xf32>, vector<8x16xf32>, vector<8x16xf32>, vector<8x16xf32>, vector<8x16xf32>, vector<8x48xf32> -> vector<8x128xf32>
    %1118 = arith.index_cast %c5_i32 : i32 to index
    %c0_211 = arith.constant 0 : index
    %c0_212 = arith.constant 0 : index
    %1119 = vector.load %arg12[%1118, %c0_211, %c0_212] : memref<8x8x128xf32, #tpu.memory_space<vmem>>, vector<1x8x128xf32>
    %1120 = vector.shape_cast %1119 : vector<1x8x128xf32> to vector<8x128xf32>
    %1121 = vector.shape_cast %1117 : vector<8x128xf32> to vector<1x8x128xf32>
    tpu.vector_store %arg12[%1118, %c0_211, %c0_212], %1121 {strides = array<i32>} : memref<8x8x128xf32, #tpu.memory_space<vmem>>, vector<1x8x128xf32>,
    %c6_i32 = arith.constant 6 : i32
    %1122 = tpu.concatenate %1112, %1110 in 1 : vector<8x32xf32>, vector<8x32xf32> -> vector<8x64xf32>
    %cst_213 = arith.constant dense<0.000000e+00> : vector<8x64xf32>
    %1123 = tpu.matmul %1122, %0, %cst_213 {dimension_numbers = #tpu.dot_dimension_numbers<[1], [0], [0], [1], [0, 0, 1, 1], [], []>} : vector<8x64xf32>, vector<64x64xf32>, vector<8x64xf32> -> vector<8x64xf32>
    %1124 = vector.broadcast %1 : vector<1x64xf32> to vector<8x64xf32>
    %1125 = arith.addf %1123, %1124 : vector<8x64xf32>
    %cst_214 = arith.constant 0.000000e+00 : f32
    %1126 = vector.broadcast %cst_214 : f32 to vector<8x64xf32>
    %1127 = arith.maximumf %1125, %1126 : vector<8x64xf32>
    %1128 = vector.extract_strided_slice %1127 {offsets = [0, 0], sizes = [8, 32], strides = [1, 1]} : vector<8x64xf32> to vector<8x32xf32>
    %1129 = vector.extract_strided_slice %1127 {offsets = [0, 32], sizes = [8, 32], strides = [1, 1]} : vector<8x64xf32> to vector<8x32xf32>
    %cst_215 = arith.constant dense<0.000000e+00> : vector<8x128xf32>
    %1130 = tpu.matmul %1128, %2, %cst_215 {dimension_numbers = #tpu.dot_dimension_numbers<[1], [0], [0], [1], [0, 0, 1, 1], [], []>} : vector<8x32xf32>, vector<32x128xf32>, vector<8x128xf32> -> vector<8x128xf32>
    %1131 = vector.broadcast %3 : vector<1x128xf32> to vector<8x128xf32>
    %1132 = arith.addf %1130, %1131 : vector<8x128xf32>
    %cst_216 = arith.constant 0.000000e+00 : f32
    %1133 = vector.broadcast %cst_216 : f32 to vector<8x32xf32>
    %1134 = vector.extract_strided_slice %1132 {offsets = [0, 0], sizes = [8, 32], strides = [1, 1]} : vector<8x128xf32> to vector<8x32xf32>
    %1135 = arith.negf %1134 : vector<8x32xf32>
    %1136 = math.exp %1135 : vector<8x32xf32>
    %cst_217 = arith.constant 1.000000e+00 : f32
    %1137 = vector.broadcast %cst_217 : f32 to vector<8x32xf32>
    %1138 = arith.addf %1137, %1136 : vector<8x32xf32>
    %1139 = arith.divf %1137, %1138 : vector<8x32xf32>
    %1140 = vector.extract_strided_slice %1132 {offsets = [0, 32], sizes = [8, 32], strides = [1, 1]} : vector<8x128xf32> to vector<8x32xf32>
    %1141 = arith.negf %1140 : vector<8x32xf32>
    %1142 = math.exp %1141 : vector<8x32xf32>
    %cst_218 = arith.constant 1.000000e+00 : f32
    %1143 = vector.broadcast %cst_218 : f32 to vector<8x32xf32>
    %1144 = arith.addf %1143, %1142 : vector<8x32xf32>
    %1145 = arith.divf %1143, %1144 : vector<8x32xf32>
    %1146 = vector.extract_strided_slice %1132 {offsets = [0, 64], sizes = [8, 32], strides = [1, 1]} : vector<8x128xf32> to vector<8x32xf32>
    %1147 = math.tanh %1146 : vector<8x32xf32>
    %1148 = vector.extract_strided_slice %1132 {offsets = [0, 96], sizes = [8, 32], strides = [1, 1]} : vector<8x128xf32> to vector<8x32xf32>
    %1149 = arith.negf %1148 : vector<8x32xf32>
    %1150 = math.exp %1149 : vector<8x32xf32>
    %cst_219 = arith.constant 1.000000e+00 : f32
    %1151 = vector.broadcast %cst_219 : f32 to vector<8x32xf32>
    %1152 = arith.addf %1151, %1150 : vector<8x32xf32>
    %1153 = arith.divf %1151, %1152 : vector<8x32xf32>
    %1154 = arith.mulf %1145, %1129 : vector<8x32xf32>
    %1155 = arith.mulf %1139, %1147 : vector<8x32xf32>
    %1156 = arith.addf %1154, %1155 : vector<8x32xf32>
    %1157 = math.tanh %1156 : vector<8x32xf32>
    %1158 = arith.mulf %1153, %1157 : vector<8x32xf32>
    %cst_220 = arith.constant dense<0.000000e+00> : vector<8x48xf32>
    %1159 = tpu.matmul %1158, %6, %cst_220 {dimension_numbers = #tpu.dot_dimension_numbers<[1], [0], [0], [1], [0, 0, 1, 1], [], []>} : vector<8x32xf32>, vector<32x48xf32>, vector<8x48xf32> -> vector<8x48xf32>
    %1160 = vector.broadcast %7 : vector<1x48xf32> to vector<8x48xf32>
    %1161 = arith.addf %1159, %1160 : vector<8x48xf32>
    %1162 = vector.extract_strided_slice %1161 {offsets = [0, 0], sizes = [8, 16], strides = [1, 1]} : vector<8x48xf32> to vector<8x16xf32>
    %1163 = vector.extract_strided_slice %1161 {offsets = [0, 16], sizes = [8, 32], strides = [1, 1]} : vector<8x48xf32> to vector<8x32xf32>
    %1164 = arith.addf %1133, %1163 : vector<8x32xf32>
    %cst_221 = arith.constant dense<0.000000e+00> : vector<8x128xf32>
    %1165 = tpu.matmul %1158, %4, %cst_221 {dimension_numbers = #tpu.dot_dimension_numbers<[1], [0], [0], [1], [0, 0, 1, 1], [], []>} : vector<8x32xf32>, vector<32x128xf32>, vector<8x128xf32> -> vector<8x128xf32>
    %1166 = vector.broadcast %5 : vector<1x128xf32> to vector<8x128xf32>
    %1167 = arith.addf %1165, %1166 : vector<8x128xf32>
    %1168 = vector.extract_strided_slice %1167 {offsets = [0, 0], sizes = [8, 32], strides = [1, 1]} : vector<8x128xf32> to vector<8x32xf32>
    %1169 = arith.negf %1168 : vector<8x32xf32>
    %1170 = math.exp %1169 : vector<8x32xf32>
    %cst_222 = arith.constant 1.000000e+00 : f32
    %1171 = vector.broadcast %cst_222 : f32 to vector<8x32xf32>
    %1172 = arith.addf %1171, %1170 : vector<8x32xf32>
    %1173 = arith.divf %1171, %1172 : vector<8x32xf32>
    %1174 = vector.extract_strided_slice %1167 {offsets = [0, 32], sizes = [8, 32], strides = [1, 1]} : vector<8x128xf32> to vector<8x32xf32>
    %1175 = arith.negf %1174 : vector<8x32xf32>
    %1176 = math.exp %1175 : vector<8x32xf32>
    %cst_223 = arith.constant 1.000000e+00 : f32
    %1177 = vector.broadcast %cst_223 : f32 to vector<8x32xf32>
    %1178 = arith.addf %1177, %1176 : vector<8x32xf32>
    %1179 = arith.divf %1177, %1178 : vector<8x32xf32>
    %1180 = vector.extract_strided_slice %1167 {offsets = [0, 64], sizes = [8, 32], strides = [1, 1]} : vector<8x128xf32> to vector<8x32xf32>
    %1181 = math.tanh %1180 : vector<8x32xf32>
    %1182 = vector.extract_strided_slice %1167 {offsets = [0, 96], sizes = [8, 32], strides = [1, 1]} : vector<8x128xf32> to vector<8x32xf32>
    %1183 = arith.negf %1182 : vector<8x32xf32>
    %1184 = math.exp %1183 : vector<8x32xf32>
    %cst_224 = arith.constant 1.000000e+00 : f32
    %1185 = vector.broadcast %cst_224 : f32 to vector<8x32xf32>
    %1186 = arith.addf %1185, %1184 : vector<8x32xf32>
    %1187 = arith.divf %1185, %1186 : vector<8x32xf32>
    %1188 = arith.mulf %1179, %1156 : vector<8x32xf32>
    %1189 = arith.mulf %1173, %1181 : vector<8x32xf32>
    %1190 = arith.addf %1188, %1189 : vector<8x32xf32>
    %1191 = math.tanh %1190 : vector<8x32xf32>
    %1192 = arith.mulf %1187, %1191 : vector<8x32xf32>
    %cst_225 = arith.constant dense<0.000000e+00> : vector<8x48xf32>
    %1193 = tpu.matmul %1192, %6, %cst_225 {dimension_numbers = #tpu.dot_dimension_numbers<[1], [0], [0], [1], [0, 0, 1, 1], [], []>} : vector<8x32xf32>, vector<32x48xf32>, vector<8x48xf32> -> vector<8x48xf32>
    %1194 = vector.broadcast %7 : vector<1x48xf32> to vector<8x48xf32>
    %1195 = arith.addf %1193, %1194 : vector<8x48xf32>
    %1196 = vector.extract_strided_slice %1195 {offsets = [0, 0], sizes = [8, 16], strides = [1, 1]} : vector<8x48xf32> to vector<8x16xf32>
    %1197 = vector.extract_strided_slice %1195 {offsets = [0, 16], sizes = [8, 32], strides = [1, 1]} : vector<8x48xf32> to vector<8x32xf32>
    %1198 = arith.addf %1164, %1197 : vector<8x32xf32>
    %cst_226 = arith.constant dense<0.000000e+00> : vector<8x128xf32>
    %1199 = tpu.matmul %1192, %4, %cst_226 {dimension_numbers = #tpu.dot_dimension_numbers<[1], [0], [0], [1], [0, 0, 1, 1], [], []>} : vector<8x32xf32>, vector<32x128xf32>, vector<8x128xf32> -> vector<8x128xf32>
    %1200 = vector.broadcast %5 : vector<1x128xf32> to vector<8x128xf32>
    %1201 = arith.addf %1199, %1200 : vector<8x128xf32>
    %1202 = vector.extract_strided_slice %1201 {offsets = [0, 0], sizes = [8, 32], strides = [1, 1]} : vector<8x128xf32> to vector<8x32xf32>
    %1203 = arith.negf %1202 : vector<8x32xf32>
    %1204 = math.exp %1203 : vector<8x32xf32>
    %cst_227 = arith.constant 1.000000e+00 : f32
    %1205 = vector.broadcast %cst_227 : f32 to vector<8x32xf32>
    %1206 = arith.addf %1205, %1204 : vector<8x32xf32>
    %1207 = arith.divf %1205, %1206 : vector<8x32xf32>
    %1208 = vector.extract_strided_slice %1201 {offsets = [0, 32], sizes = [8, 32], strides = [1, 1]} : vector<8x128xf32> to vector<8x32xf32>
    %1209 = arith.negf %1208 : vector<8x32xf32>
    %1210 = math.exp %1209 : vector<8x32xf32>
    %cst_228 = arith.constant 1.000000e+00 : f32
    %1211 = vector.broadcast %cst_228 : f32 to vector<8x32xf32>
    %1212 = arith.addf %1211, %1210 : vector<8x32xf32>
    %1213 = arith.divf %1211, %1212 : vector<8x32xf32>
    %1214 = vector.extract_strided_slice %1201 {offsets = [0, 64], sizes = [8, 32], strides = [1, 1]} : vector<8x128xf32> to vector<8x32xf32>
    %1215 = math.tanh %1214 : vector<8x32xf32>
    %1216 = vector.extract_strided_slice %1201 {offsets = [0, 96], sizes = [8, 32], strides = [1, 1]} : vector<8x128xf32> to vector<8x32xf32>
    %1217 = arith.negf %1216 : vector<8x32xf32>
    %1218 = math.exp %1217 : vector<8x32xf32>
    %cst_229 = arith.constant 1.000000e+00 : f32
    %1219 = vector.broadcast %cst_229 : f32 to vector<8x32xf32>
    %1220 = arith.addf %1219, %1218 : vector<8x32xf32>
    %1221 = arith.divf %1219, %1220 : vector<8x32xf32>
    %1222 = arith.mulf %1213, %1190 : vector<8x32xf32>
    %1223 = arith.mulf %1207, %1215 : vector<8x32xf32>
    %1224 = arith.addf %1222, %1223 : vector<8x32xf32>
    %1225 = math.tanh %1224 : vector<8x32xf32>
    %1226 = arith.mulf %1221, %1225 : vector<8x32xf32>
    %cst_230 = arith.constant dense<0.000000e+00> : vector<8x48xf32>
    %1227 = tpu.matmul %1226, %6, %cst_230 {dimension_numbers = #tpu.dot_dimension_numbers<[1], [0], [0], [1], [0, 0, 1, 1], [], []>} : vector<8x32xf32>, vector<32x48xf32>, vector<8x48xf32> -> vector<8x48xf32>
    %1228 = vector.broadcast %7 : vector<1x48xf32> to vector<8x48xf32>
    %1229 = arith.addf %1227, %1228 : vector<8x48xf32>
    %1230 = vector.extract_strided_slice %1229 {offsets = [0, 0], sizes = [8, 16], strides = [1, 1]} : vector<8x48xf32> to vector<8x16xf32>
    %1231 = vector.extract_strided_slice %1229 {offsets = [0, 16], sizes = [8, 32], strides = [1, 1]} : vector<8x48xf32> to vector<8x32xf32>
    %1232 = arith.addf %1198, %1231 : vector<8x32xf32>
    %cst_231 = arith.constant dense<0.000000e+00> : vector<8x128xf32>
    %1233 = tpu.matmul %1226, %4, %cst_231 {dimension_numbers = #tpu.dot_dimension_numbers<[1], [0], [0], [1], [0, 0, 1, 1], [], []>} : vector<8x32xf32>, vector<32x128xf32>, vector<8x128xf32> -> vector<8x128xf32>
    %1234 = vector.broadcast %5 : vector<1x128xf32> to vector<8x128xf32>
    %1235 = arith.addf %1233, %1234 : vector<8x128xf32>
    %1236 = vector.extract_strided_slice %1235 {offsets = [0, 0], sizes = [8, 32], strides = [1, 1]} : vector<8x128xf32> to vector<8x32xf32>
    %1237 = arith.negf %1236 : vector<8x32xf32>
    %1238 = math.exp %1237 : vector<8x32xf32>
    %cst_232 = arith.constant 1.000000e+00 : f32
    %1239 = vector.broadcast %cst_232 : f32 to vector<8x32xf32>
    %1240 = arith.addf %1239, %1238 : vector<8x32xf32>
    %1241 = arith.divf %1239, %1240 : vector<8x32xf32>
    %1242 = vector.extract_strided_slice %1235 {offsets = [0, 32], sizes = [8, 32], strides = [1, 1]} : vector<8x128xf32> to vector<8x32xf32>
    %1243 = arith.negf %1242 : vector<8x32xf32>
    %1244 = math.exp %1243 : vector<8x32xf32>
    %cst_233 = arith.constant 1.000000e+00 : f32
    %1245 = vector.broadcast %cst_233 : f32 to vector<8x32xf32>
    %1246 = arith.addf %1245, %1244 : vector<8x32xf32>
    %1247 = arith.divf %1245, %1246 : vector<8x32xf32>
    %1248 = vector.extract_strided_slice %1235 {offsets = [0, 64], sizes = [8, 32], strides = [1, 1]} : vector<8x128xf32> to vector<8x32xf32>
    %1249 = math.tanh %1248 : vector<8x32xf32>
    %1250 = vector.extract_strided_slice %1235 {offsets = [0, 96], sizes = [8, 32], strides = [1, 1]} : vector<8x128xf32> to vector<8x32xf32>
    %1251 = arith.negf %1250 : vector<8x32xf32>
    %1252 = math.exp %1251 : vector<8x32xf32>
    %cst_234 = arith.constant 1.000000e+00 : f32
    %1253 = vector.broadcast %cst_234 : f32 to vector<8x32xf32>
    %1254 = arith.addf %1253, %1252 : vector<8x32xf32>
    %1255 = arith.divf %1253, %1254 : vector<8x32xf32>
    %1256 = arith.mulf %1247, %1224 : vector<8x32xf32>
    %1257 = arith.mulf %1241, %1249 : vector<8x32xf32>
    %1258 = arith.addf %1256, %1257 : vector<8x32xf32>
    %1259 = math.tanh %1258 : vector<8x32xf32>
    %1260 = arith.mulf %1255, %1259 : vector<8x32xf32>
    %cst_235 = arith.constant dense<0.000000e+00> : vector<8x48xf32>
    %1261 = tpu.matmul %1260, %6, %cst_235 {dimension_numbers = #tpu.dot_dimension_numbers<[1], [0], [0], [1], [0, 0, 1, 1], [], []>} : vector<8x32xf32>, vector<32x48xf32>, vector<8x48xf32> -> vector<8x48xf32>
    %1262 = vector.broadcast %7 : vector<1x48xf32> to vector<8x48xf32>
    %1263 = arith.addf %1261, %1262 : vector<8x48xf32>
    %1264 = vector.extract_strided_slice %1263 {offsets = [0, 0], sizes = [8, 16], strides = [1, 1]} : vector<8x48xf32> to vector<8x16xf32>
    %1265 = vector.extract_strided_slice %1263 {offsets = [0, 16], sizes = [8, 32], strides = [1, 1]} : vector<8x48xf32> to vector<8x32xf32>
    %1266 = arith.addf %1232, %1265 : vector<8x32xf32>
    %1267 = tpu.concatenate %1266, %1112 in 1 : vector<8x32xf32>, vector<8x32xf32> -> vector<8x64xf32>
    %1268 = arith.index_cast %c6_i32 : i32 to index
    %c0_236 = arith.constant 0 : index
    %c0_237 = arith.constant 0 : index
    %1269 = vector.load %arg0[%1268, %c0_236, %c0_237] : memref<8x8x128xf32, #tpu.memory_space<vmem>>, vector<1x8x128xf32>
    %1270 = vector.shape_cast %1269 : vector<1x8x128xf32> to vector<8x128xf32>
    %cst_238 = arith.constant dense<0.000000e+00> : vector<8x128xf32>
    %1271 = tpu.matmul %1267, %8, %cst_238 {dimension_numbers = #tpu.dot_dimension_numbers<[1], [0], [0], [1], [0, 0, 1, 1], [], []>} : vector<8x64xf32>, vector<64x128xf32>, vector<8x128xf32> -> vector<8x128xf32>
    %1272 = arith.addf %1270, %1271 : vector<8x128xf32>
    %1273 = vector.extract_strided_slice %1272 {offsets = [0, 0], sizes = [8, 32], strides = [1, 1]} : vector<8x128xf32> to vector<8x32xf32>
    %1274 = arith.negf %1273 : vector<8x32xf32>
    %1275 = math.exp %1274 : vector<8x32xf32>
    %cst_239 = arith.constant 1.000000e+00 : f32
    %1276 = vector.broadcast %cst_239 : f32 to vector<8x32xf32>
    %1277 = arith.addf %1276, %1275 : vector<8x32xf32>
    %1278 = arith.divf %1276, %1277 : vector<8x32xf32>
    %1279 = vector.extract_strided_slice %1272 {offsets = [0, 32], sizes = [8, 32], strides = [1, 1]} : vector<8x128xf32> to vector<8x32xf32>
    %1280 = arith.negf %1279 : vector<8x32xf32>
    %1281 = math.exp %1280 : vector<8x32xf32>
    %cst_240 = arith.constant 1.000000e+00 : f32
    %1282 = vector.broadcast %cst_240 : f32 to vector<8x32xf32>
    %1283 = arith.addf %1282, %1281 : vector<8x32xf32>
    %1284 = arith.divf %1282, %1283 : vector<8x32xf32>
    %1285 = vector.extract_strided_slice %1272 {offsets = [0, 64], sizes = [8, 32], strides = [1, 1]} : vector<8x128xf32> to vector<8x32xf32>
    %1286 = math.tanh %1285 : vector<8x32xf32>
    %1287 = vector.extract_strided_slice %1272 {offsets = [0, 96], sizes = [8, 32], strides = [1, 1]} : vector<8x128xf32> to vector<8x32xf32>
    %1288 = arith.negf %1287 : vector<8x32xf32>
    %1289 = math.exp %1288 : vector<8x32xf32>
    %cst_241 = arith.constant 1.000000e+00 : f32
    %1290 = vector.broadcast %cst_241 : f32 to vector<8x32xf32>
    %1291 = arith.addf %1290, %1289 : vector<8x32xf32>
    %1292 = arith.divf %1290, %1291 : vector<8x32xf32>
    %1293 = arith.mulf %1284, %1110 : vector<8x32xf32>
    %1294 = arith.mulf %1278, %1286 : vector<8x32xf32>
    %1295 = arith.addf %1293, %1294 : vector<8x32xf32>
    %1296 = math.tanh %1295 : vector<8x32xf32>
    %1297 = arith.mulf %1292, %1296 : vector<8x32xf32>
    %cst_242 = arith.constant dense<0.000000e+00> : vector<8x48xf32>
    %1298 = tpu.matmul %1297, %6, %cst_242 {dimension_numbers = #tpu.dot_dimension_numbers<[1], [0], [0], [1], [0, 0, 1, 1], [], []>} : vector<8x32xf32>, vector<32x48xf32>, vector<8x48xf32> -> vector<8x48xf32>
    %1299 = vector.broadcast %7 : vector<1x48xf32> to vector<8x48xf32>
    %1300 = arith.addf %1298, %1299 : vector<8x48xf32>
    %1301 = vector.extract_strided_slice %1300 {offsets = [0, 0], sizes = [8, 16], strides = [1, 1]} : vector<8x48xf32> to vector<8x16xf32>
    %1302 = tpu.concatenate %1301, %1162, %1196, %1230, %1264, %9 in 1 : vector<8x16xf32>, vector<8x16xf32>, vector<8x16xf32>, vector<8x16xf32>, vector<8x16xf32>, vector<8x48xf32> -> vector<8x128xf32>
    %1303 = arith.index_cast %c6_i32 : i32 to index
    %c0_243 = arith.constant 0 : index
    %c0_244 = arith.constant 0 : index
    %1304 = vector.load %arg12[%1303, %c0_243, %c0_244] : memref<8x8x128xf32, #tpu.memory_space<vmem>>, vector<1x8x128xf32>
    %1305 = vector.shape_cast %1304 : vector<1x8x128xf32> to vector<8x128xf32>
    %1306 = vector.shape_cast %1302 : vector<8x128xf32> to vector<1x8x128xf32>
    tpu.vector_store %arg12[%1303, %c0_243, %c0_244], %1306 {strides = array<i32>} : memref<8x8x128xf32, #tpu.memory_space<vmem>>, vector<1x8x128xf32>,
    %c7_i32 = arith.constant 7 : i32
    %1307 = tpu.concatenate %1297, %1295 in 1 : vector<8x32xf32>, vector<8x32xf32> -> vector<8x64xf32>
    %cst_245 = arith.constant dense<0.000000e+00> : vector<8x64xf32>
    %1308 = tpu.matmul %1307, %0, %cst_245 {dimension_numbers = #tpu.dot_dimension_numbers<[1], [0], [0], [1], [0, 0, 1, 1], [], []>} : vector<8x64xf32>, vector<64x64xf32>, vector<8x64xf32> -> vector<8x64xf32>
    %1309 = vector.broadcast %1 : vector<1x64xf32> to vector<8x64xf32>
    %1310 = arith.addf %1308, %1309 : vector<8x64xf32>
    %cst_246 = arith.constant 0.000000e+00 : f32
    %1311 = vector.broadcast %cst_246 : f32 to vector<8x64xf32>
    %1312 = arith.maximumf %1310, %1311 : vector<8x64xf32>
    %1313 = vector.extract_strided_slice %1312 {offsets = [0, 0], sizes = [8, 32], strides = [1, 1]} : vector<8x64xf32> to vector<8x32xf32>
    %1314 = vector.extract_strided_slice %1312 {offsets = [0, 32], sizes = [8, 32], strides = [1, 1]} : vector<8x64xf32> to vector<8x32xf32>
    %cst_247 = arith.constant dense<0.000000e+00> : vector<8x128xf32>
    %1315 = tpu.matmul %1313, %2, %cst_247 {dimension_numbers = #tpu.dot_dimension_numbers<[1], [0], [0], [1], [0, 0, 1, 1], [], []>} : vector<8x32xf32>, vector<32x128xf32>, vector<8x128xf32> -> vector<8x128xf32>
    %1316 = vector.broadcast %3 : vector<1x128xf32> to vector<8x128xf32>
    %1317 = arith.addf %1315, %1316 : vector<8x128xf32>
    %cst_248 = arith.constant 0.000000e+00 : f32
    %1318 = vector.broadcast %cst_248 : f32 to vector<8x32xf32>
    %1319 = vector.extract_strided_slice %1317 {offsets = [0, 0], sizes = [8, 32], strides = [1, 1]} : vector<8x128xf32> to vector<8x32xf32>
    %1320 = arith.negf %1319 : vector<8x32xf32>
    %1321 = math.exp %1320 : vector<8x32xf32>
    %cst_249 = arith.constant 1.000000e+00 : f32
    %1322 = vector.broadcast %cst_249 : f32 to vector<8x32xf32>
    %1323 = arith.addf %1322, %1321 : vector<8x32xf32>
    %1324 = arith.divf %1322, %1323 : vector<8x32xf32>
    %1325 = vector.extract_strided_slice %1317 {offsets = [0, 32], sizes = [8, 32], strides = [1, 1]} : vector<8x128xf32> to vector<8x32xf32>
    %1326 = arith.negf %1325 : vector<8x32xf32>
    %1327 = math.exp %1326 : vector<8x32xf32>
    %cst_250 = arith.constant 1.000000e+00 : f32
    %1328 = vector.broadcast %cst_250 : f32 to vector<8x32xf32>
    %1329 = arith.addf %1328, %1327 : vector<8x32xf32>
    %1330 = arith.divf %1328, %1329 : vector<8x32xf32>
    %1331 = vector.extract_strided_slice %1317 {offsets = [0, 64], sizes = [8, 32], strides = [1, 1]} : vector<8x128xf32> to vector<8x32xf32>
    %1332 = math.tanh %1331 : vector<8x32xf32>
    %1333 = vector.extract_strided_slice %1317 {offsets = [0, 96], sizes = [8, 32], strides = [1, 1]} : vector<8x128xf32> to vector<8x32xf32>
    %1334 = arith.negf %1333 : vector<8x32xf32>
    %1335 = math.exp %1334 : vector<8x32xf32>
    %cst_251 = arith.constant 1.000000e+00 : f32
    %1336 = vector.broadcast %cst_251 : f32 to vector<8x32xf32>
    %1337 = arith.addf %1336, %1335 : vector<8x32xf32>
    %1338 = arith.divf %1336, %1337 : vector<8x32xf32>
    %1339 = arith.mulf %1330, %1314 : vector<8x32xf32>
    %1340 = arith.mulf %1324, %1332 : vector<8x32xf32>
    %1341 = arith.addf %1339, %1340 : vector<8x32xf32>
    %1342 = math.tanh %1341 : vector<8x32xf32>
    %1343 = arith.mulf %1338, %1342 : vector<8x32xf32>
    %cst_252 = arith.constant dense<0.000000e+00> : vector<8x48xf32>
    %1344 = tpu.matmul %1343, %6, %cst_252 {dimension_numbers = #tpu.dot_dimension_numbers<[1], [0], [0], [1], [0, 0, 1, 1], [], []>} : vector<8x32xf32>, vector<32x48xf32>, vector<8x48xf32> -> vector<8x48xf32>
    %1345 = vector.broadcast %7 : vector<1x48xf32> to vector<8x48xf32>
    %1346 = arith.addf %1344, %1345 : vector<8x48xf32>
    %1347 = vector.extract_strided_slice %1346 {offsets = [0, 0], sizes = [8, 16], strides = [1, 1]} : vector<8x48xf32> to vector<8x16xf32>
    %1348 = vector.extract_strided_slice %1346 {offsets = [0, 16], sizes = [8, 32], strides = [1, 1]} : vector<8x48xf32> to vector<8x32xf32>
    %1349 = arith.addf %1318, %1348 : vector<8x32xf32>
    %cst_253 = arith.constant dense<0.000000e+00> : vector<8x128xf32>
    %1350 = tpu.matmul %1343, %4, %cst_253 {dimension_numbers = #tpu.dot_dimension_numbers<[1], [0], [0], [1], [0, 0, 1, 1], [], []>} : vector<8x32xf32>, vector<32x128xf32>, vector<8x128xf32> -> vector<8x128xf32>
    %1351 = vector.broadcast %5 : vector<1x128xf32> to vector<8x128xf32>
    %1352 = arith.addf %1350, %1351 : vector<8x128xf32>
    %1353 = vector.extract_strided_slice %1352 {offsets = [0, 0], sizes = [8, 32], strides = [1, 1]} : vector<8x128xf32> to vector<8x32xf32>
    %1354 = arith.negf %1353 : vector<8x32xf32>
    %1355 = math.exp %1354 : vector<8x32xf32>
    %cst_254 = arith.constant 1.000000e+00 : f32
    %1356 = vector.broadcast %cst_254 : f32 to vector<8x32xf32>
    %1357 = arith.addf %1356, %1355 : vector<8x32xf32>
    %1358 = arith.divf %1356, %1357 : vector<8x32xf32>
    %1359 = vector.extract_strided_slice %1352 {offsets = [0, 32], sizes = [8, 32], strides = [1, 1]} : vector<8x128xf32> to vector<8x32xf32>
    %1360 = arith.negf %1359 : vector<8x32xf32>
    %1361 = math.exp %1360 : vector<8x32xf32>
    %cst_255 = arith.constant 1.000000e+00 : f32
    %1362 = vector.broadcast %cst_255 : f32 to vector<8x32xf32>
    %1363 = arith.addf %1362, %1361 : vector<8x32xf32>
    %1364 = arith.divf %1362, %1363 : vector<8x32xf32>
    %1365 = vector.extract_strided_slice %1352 {offsets = [0, 64], sizes = [8, 32], strides = [1, 1]} : vector<8x128xf32> to vector<8x32xf32>
    %1366 = math.tanh %1365 : vector<8x32xf32>
    %1367 = vector.extract_strided_slice %1352 {offsets = [0, 96], sizes = [8, 32], strides = [1, 1]} : vector<8x128xf32> to vector<8x32xf32>
    %1368 = arith.negf %1367 : vector<8x32xf32>
    %1369 = math.exp %1368 : vector<8x32xf32>
    %cst_256 = arith.constant 1.000000e+00 : f32
    %1370 = vector.broadcast %cst_256 : f32 to vector<8x32xf32>
    %1371 = arith.addf %1370, %1369 : vector<8x32xf32>
    %1372 = arith.divf %1370, %1371 : vector<8x32xf32>
    %1373 = arith.mulf %1364, %1341 : vector<8x32xf32>
    %1374 = arith.mulf %1358, %1366 : vector<8x32xf32>
    %1375 = arith.addf %1373, %1374 : vector<8x32xf32>
    %1376 = math.tanh %1375 : vector<8x32xf32>
    %1377 = arith.mulf %1372, %1376 : vector<8x32xf32>
    %cst_257 = arith.constant dense<0.000000e+00> : vector<8x48xf32>
    %1378 = tpu.matmul %1377, %6, %cst_257 {dimension_numbers = #tpu.dot_dimension_numbers<[1], [0], [0], [1], [0, 0, 1, 1], [], []>} : vector<8x32xf32>, vector<32x48xf32>, vector<8x48xf32> -> vector<8x48xf32>
    %1379 = vector.broadcast %7 : vector<1x48xf32> to vector<8x48xf32>
    %1380 = arith.addf %1378, %1379 : vector<8x48xf32>
    %1381 = vector.extract_strided_slice %1380 {offsets = [0, 0], sizes = [8, 16], strides = [1, 1]} : vector<8x48xf32> to vector<8x16xf32>
    %1382 = vector.extract_strided_slice %1380 {offsets = [0, 16], sizes = [8, 32], strides = [1, 1]} : vector<8x48xf32> to vector<8x32xf32>
    %1383 = arith.addf %1349, %1382 : vector<8x32xf32>
    %cst_258 = arith.constant dense<0.000000e+00> : vector<8x128xf32>
    %1384 = tpu.matmul %1377, %4, %cst_258 {dimension_numbers = #tpu.dot_dimension_numbers<[1], [0], [0], [1], [0, 0, 1, 1], [], []>} : vector<8x32xf32>, vector<32x128xf32>, vector<8x128xf32> -> vector<8x128xf32>
    %1385 = vector.broadcast %5 : vector<1x128xf32> to vector<8x128xf32>
    %1386 = arith.addf %1384, %1385 : vector<8x128xf32>
    %1387 = vector.extract_strided_slice %1386 {offsets = [0, 0], sizes = [8, 32], strides = [1, 1]} : vector<8x128xf32> to vector<8x32xf32>
    %1388 = arith.negf %1387 : vector<8x32xf32>
    %1389 = math.exp %1388 : vector<8x32xf32>
    %cst_259 = arith.constant 1.000000e+00 : f32
    %1390 = vector.broadcast %cst_259 : f32 to vector<8x32xf32>
    %1391 = arith.addf %1390, %1389 : vector<8x32xf32>
    %1392 = arith.divf %1390, %1391 : vector<8x32xf32>
    %1393 = vector.extract_strided_slice %1386 {offsets = [0, 32], sizes = [8, 32], strides = [1, 1]} : vector<8x128xf32> to vector<8x32xf32>
    %1394 = arith.negf %1393 : vector<8x32xf32>
    %1395 = math.exp %1394 : vector<8x32xf32>
    %cst_260 = arith.constant 1.000000e+00 : f32
    %1396 = vector.broadcast %cst_260 : f32 to vector<8x32xf32>
    %1397 = arith.addf %1396, %1395 : vector<8x32xf32>
    %1398 = arith.divf %1396, %1397 : vector<8x32xf32>
    %1399 = vector.extract_strided_slice %1386 {offsets = [0, 64], sizes = [8, 32], strides = [1, 1]} : vector<8x128xf32> to vector<8x32xf32>
    %1400 = math.tanh %1399 : vector<8x32xf32>
    %1401 = vector.extract_strided_slice %1386 {offsets = [0, 96], sizes = [8, 32], strides = [1, 1]} : vector<8x128xf32> to vector<8x32xf32>
    %1402 = arith.negf %1401 : vector<8x32xf32>
    %1403 = math.exp %1402 : vector<8x32xf32>
    %cst_261 = arith.constant 1.000000e+00 : f32
    %1404 = vector.broadcast %cst_261 : f32 to vector<8x32xf32>
    %1405 = arith.addf %1404, %1403 : vector<8x32xf32>
    %1406 = arith.divf %1404, %1405 : vector<8x32xf32>
    %1407 = arith.mulf %1398, %1375 : vector<8x32xf32>
    %1408 = arith.mulf %1392, %1400 : vector<8x32xf32>
    %1409 = arith.addf %1407, %1408 : vector<8x32xf32>
    %1410 = math.tanh %1409 : vector<8x32xf32>
    %1411 = arith.mulf %1406, %1410 : vector<8x32xf32>
    %cst_262 = arith.constant dense<0.000000e+00> : vector<8x48xf32>
    %1412 = tpu.matmul %1411, %6, %cst_262 {dimension_numbers = #tpu.dot_dimension_numbers<[1], [0], [0], [1], [0, 0, 1, 1], [], []>} : vector<8x32xf32>, vector<32x48xf32>, vector<8x48xf32> -> vector<8x48xf32>
    %1413 = vector.broadcast %7 : vector<1x48xf32> to vector<8x48xf32>
    %1414 = arith.addf %1412, %1413 : vector<8x48xf32>
    %1415 = vector.extract_strided_slice %1414 {offsets = [0, 0], sizes = [8, 16], strides = [1, 1]} : vector<8x48xf32> to vector<8x16xf32>
    %1416 = vector.extract_strided_slice %1414 {offsets = [0, 16], sizes = [8, 32], strides = [1, 1]} : vector<8x48xf32> to vector<8x32xf32>
    %1417 = arith.addf %1383, %1416 : vector<8x32xf32>
    %cst_263 = arith.constant dense<0.000000e+00> : vector<8x128xf32>
    %1418 = tpu.matmul %1411, %4, %cst_263 {dimension_numbers = #tpu.dot_dimension_numbers<[1], [0], [0], [1], [0, 0, 1, 1], [], []>} : vector<8x32xf32>, vector<32x128xf32>, vector<8x128xf32> -> vector<8x128xf32>
    %1419 = vector.broadcast %5 : vector<1x128xf32> to vector<8x128xf32>
    %1420 = arith.addf %1418, %1419 : vector<8x128xf32>
    %1421 = vector.extract_strided_slice %1420 {offsets = [0, 0], sizes = [8, 32], strides = [1, 1]} : vector<8x128xf32> to vector<8x32xf32>
    %1422 = arith.negf %1421 : vector<8x32xf32>
    %1423 = math.exp %1422 : vector<8x32xf32>
    %cst_264 = arith.constant 1.000000e+00 : f32
    %1424 = vector.broadcast %cst_264 : f32 to vector<8x32xf32>
    %1425 = arith.addf %1424, %1423 : vector<8x32xf32>
    %1426 = arith.divf %1424, %1425 : vector<8x32xf32>
    %1427 = vector.extract_strided_slice %1420 {offsets = [0, 32], sizes = [8, 32], strides = [1, 1]} : vector<8x128xf32> to vector<8x32xf32>
    %1428 = arith.negf %1427 : vector<8x32xf32>
    %1429 = math.exp %1428 : vector<8x32xf32>
    %cst_265 = arith.constant 1.000000e+00 : f32
    %1430 = vector.broadcast %cst_265 : f32 to vector<8x32xf32>
    %1431 = arith.addf %1430, %1429 : vector<8x32xf32>
    %1432 = arith.divf %1430, %1431 : vector<8x32xf32>
    %1433 = vector.extract_strided_slice %1420 {offsets = [0, 64], sizes = [8, 32], strides = [1, 1]} : vector<8x128xf32> to vector<8x32xf32>
    %1434 = math.tanh %1433 : vector<8x32xf32>
    %1435 = vector.extract_strided_slice %1420 {offsets = [0, 96], sizes = [8, 32], strides = [1, 1]} : vector<8x128xf32> to vector<8x32xf32>
    %1436 = arith.negf %1435 : vector<8x32xf32>
    %1437 = math.exp %1436 : vector<8x32xf32>
    %cst_266 = arith.constant 1.000000e+00 : f32
    %1438 = vector.broadcast %cst_266 : f32 to vector<8x32xf32>
    %1439 = arith.addf %1438, %1437 : vector<8x32xf32>
    %1440 = arith.divf %1438, %1439 : vector<8x32xf32>
    %1441 = arith.mulf %1432, %1409 : vector<8x32xf32>
    %1442 = arith.mulf %1426, %1434 : vector<8x32xf32>
    %1443 = arith.addf %1441, %1442 : vector<8x32xf32>
    %1444 = math.tanh %1443 : vector<8x32xf32>
    %1445 = arith.mulf %1440, %1444 : vector<8x32xf32>
    %cst_267 = arith.constant dense<0.000000e+00> : vector<8x48xf32>
    %1446 = tpu.matmul %1445, %6, %cst_267 {dimension_numbers = #tpu.dot_dimension_numbers<[1], [0], [0], [1], [0, 0, 1, 1], [], []>} : vector<8x32xf32>, vector<32x48xf32>, vector<8x48xf32> -> vector<8x48xf32>
    %1447 = vector.broadcast %7 : vector<1x48xf32> to vector<8x48xf32>
    %1448 = arith.addf %1446, %1447 : vector<8x48xf32>
    %1449 = vector.extract_strided_slice %1448 {offsets = [0, 0], sizes = [8, 16], strides = [1, 1]} : vector<8x48xf32> to vector<8x16xf32>
    %1450 = vector.extract_strided_slice %1448 {offsets = [0, 16], sizes = [8, 32], strides = [1, 1]} : vector<8x48xf32> to vector<8x32xf32>
    %1451 = arith.addf %1417, %1450 : vector<8x32xf32>
    %1452 = tpu.concatenate %1451, %1297 in 1 : vector<8x32xf32>, vector<8x32xf32> -> vector<8x64xf32>
    %1453 = arith.index_cast %c7_i32 : i32 to index
    %c0_268 = arith.constant 0 : index
    %c0_269 = arith.constant 0 : index
    %1454 = vector.load %arg0[%1453, %c0_268, %c0_269] : memref<8x8x128xf32, #tpu.memory_space<vmem>>, vector<1x8x128xf32>
    %1455 = vector.shape_cast %1454 : vector<1x8x128xf32> to vector<8x128xf32>
    %cst_270 = arith.constant dense<0.000000e+00> : vector<8x128xf32>
    %1456 = tpu.matmul %1452, %8, %cst_270 {dimension_numbers = #tpu.dot_dimension_numbers<[1], [0], [0], [1], [0, 0, 1, 1], [], []>} : vector<8x64xf32>, vector<64x128xf32>, vector<8x128xf32> -> vector<8x128xf32>
    %1457 = arith.addf %1455, %1456 : vector<8x128xf32>
    %1458 = vector.extract_strided_slice %1457 {offsets = [0, 0], sizes = [8, 32], strides = [1, 1]} : vector<8x128xf32> to vector<8x32xf32>
    %1459 = arith.negf %1458 : vector<8x32xf32>
    %1460 = math.exp %1459 : vector<8x32xf32>
    %cst_271 = arith.constant 1.000000e+00 : f32
    %1461 = vector.broadcast %cst_271 : f32 to vector<8x32xf32>
    %1462 = arith.addf %1461, %1460 : vector<8x32xf32>
    %1463 = arith.divf %1461, %1462 : vector<8x32xf32>
    %1464 = vector.extract_strided_slice %1457 {offsets = [0, 32], sizes = [8, 32], strides = [1, 1]} : vector<8x128xf32> to vector<8x32xf32>
    %1465 = arith.negf %1464 : vector<8x32xf32>
    %1466 = math.exp %1465 : vector<8x32xf32>
    %cst_272 = arith.constant 1.000000e+00 : f32
    %1467 = vector.broadcast %cst_272 : f32 to vector<8x32xf32>
    %1468 = arith.addf %1467, %1466 : vector<8x32xf32>
    %1469 = arith.divf %1467, %1468 : vector<8x32xf32>
    %1470 = vector.extract_strided_slice %1457 {offsets = [0, 64], sizes = [8, 32], strides = [1, 1]} : vector<8x128xf32> to vector<8x32xf32>
    %1471 = math.tanh %1470 : vector<8x32xf32>
    %1472 = vector.extract_strided_slice %1457 {offsets = [0, 96], sizes = [8, 32], strides = [1, 1]} : vector<8x128xf32> to vector<8x32xf32>
    %1473 = arith.negf %1472 : vector<8x32xf32>
    %1474 = math.exp %1473 : vector<8x32xf32>
    %cst_273 = arith.constant 1.000000e+00 : f32
    %1475 = vector.broadcast %cst_273 : f32 to vector<8x32xf32>
    %1476 = arith.addf %1475, %1474 : vector<8x32xf32>
    %1477 = arith.divf %1475, %1476 : vector<8x32xf32>
    %1478 = arith.mulf %1469, %1295 : vector<8x32xf32>
    %1479 = arith.mulf %1463, %1471 : vector<8x32xf32>
    %1480 = arith.addf %1478, %1479 : vector<8x32xf32>
    %1481 = math.tanh %1480 : vector<8x32xf32>
    %1482 = arith.mulf %1477, %1481 : vector<8x32xf32>
    %cst_274 = arith.constant dense<0.000000e+00> : vector<8x48xf32>
    %1483 = tpu.matmul %1482, %6, %cst_274 {dimension_numbers = #tpu.dot_dimension_numbers<[1], [0], [0], [1], [0, 0, 1, 1], [], []>} : vector<8x32xf32>, vector<32x48xf32>, vector<8x48xf32> -> vector<8x48xf32>
    %1484 = vector.broadcast %7 : vector<1x48xf32> to vector<8x48xf32>
    %1485 = arith.addf %1483, %1484 : vector<8x48xf32>
    %1486 = vector.extract_strided_slice %1485 {offsets = [0, 0], sizes = [8, 16], strides = [1, 1]} : vector<8x48xf32> to vector<8x16xf32>
    %1487 = tpu.concatenate %1486, %1347, %1381, %1415, %1449, %9 in 1 : vector<8x16xf32>, vector<8x16xf32>, vector<8x16xf32>, vector<8x16xf32>, vector<8x16xf32>, vector<8x48xf32> -> vector<8x128xf32>
    %1488 = arith.index_cast %c7_i32 : i32 to index
    %c0_275 = arith.constant 0 : index
    %c0_276 = arith.constant 0 : index
    %1489 = vector.load %arg12[%1488, %c0_275, %c0_276] : memref<8x8x128xf32, #tpu.memory_space<vmem>>, vector<1x8x128xf32>
    %1490 = vector.shape_cast %1489 : vector<1x8x128xf32> to vector<8x128xf32>
    %1491 = vector.shape_cast %1487 : vector<8x128xf32> to vector<1x8x128xf32>
    tpu.vector_store %arg12[%1488, %c0_275, %c0_276], %1491 {strides = array<i32>} : memref<8x8x128xf32, #tpu.memory_space<vmem>>, vector<1x8x128xf32>,
    %c8_i32 = arith.constant 8 : i32
    return
  }
}

</mosaic_0001>

<llo_original>
// kernel: trn_pallas.1
$region0: #{trn_pallas.1}
  #allocation0 [shape = 'u32[]', space=smem, size = 0x4, offset = 0x4, fixed_abs, tag = 'smem constant byte address 0x4 - core index']
  #allocation1 [shape = 'u32[72,128]{1,0:T(1,128)}', space=vmem, size = 0x9000, scoped, tag = 'internal scratch']
  %s0 = inlined_call_operand.vmem [shape: f32[8,8,128], index: 0, kind: input, shape index: {}]
  %s1 = inlined_call_operand.vmem [shape: f32[8,32], index: 1, kind: input, shape index: {}]
  %s2 = inlined_call_operand.vmem [shape: f32[8,32], index: 2, kind: input, shape index: {}]
  %s3 = inlined_call_operand.vmem [shape: f32[64,64], index: 3, kind: input, shape index: {}]
  %s4 = inlined_call_operand.vmem [shape: f32[1,64], index: 4, kind: input, shape index: {}]
  %s5 = inlined_call_operand.vmem [shape: f32[32,128], index: 5, kind: input, shape index: {}]
  %s6 = inlined_call_operand.vmem [shape: f32[1,128], index: 6, kind: input, shape index: {}]
  %s7 = inlined_call_operand.vmem [shape: f32[32,128], index: 7, kind: input, shape index: {}]
  %s8 = inlined_call_operand.vmem [shape: f32[1,128], index: 8, kind: input, shape index: {}]
  %s9 = inlined_call_operand.vmem [shape: f32[32,48], index: 9, kind: input, shape index: {}]
  %s10 = inlined_call_operand.vmem [shape: f32[1,48], index: 10, kind: input, shape index: {}]
  %s11 = inlined_call_operand.vmem [shape: f32[64,128], index: 11, kind: input, shape index: {}]
  %s12 = inlined_call_operand.vmem [shape: f32[8,8,128], index: 12, kind: output, shape index: {}]
  %s13 = sld [smem:[#allocation0]]
  $region58: #{trn_pallas.1} parent=0
    _
  %s15 = ssub.s32 1, %s13
  %s16 = scalar_select 0, %s15, %s13
  // Predicated region
  $region2: #{trn_pallas.1} parent=0 // pred_check
    _
  $region3: #{trn_pallas.1} parent=0 // pred_check_branch
    %18 = sbr.rel (0) target = $region5
  $region4: #{trn_pallas.1} parent=0 // pred_region
    _
  $region5: #{trn_pallas.1} parent=0 // pred_fallthru
    _
  // Predicated region
  $region6: #{trn_pallas.1} parent=0 // pred_check
    _
  $region7: #{trn_pallas.1} parent=0 // pred_check_branch
    %20 = sbr.rel (0) target = $region9
  $region8: #{trn_pallas.1} parent=0 // pred_region
    _
  $region9: #{trn_pallas.1} parent=0 // pred_fallthru
    _
  // Predicated region
  $region10: #{trn_pallas.1} parent=0 // pred_check
    _
  $region11: #{trn_pallas.1} parent=0 // pred_check_branch
    %22 = sbr.rel (0) target = $region13
  $region12: #{trn_pallas.1} parent=0 // pred_region
    _
  $region13: #{trn_pallas.1} parent=0 // pred_fallthru
    _
  // Predicated region
  $region14: #{trn_pallas.1} parent=0 // pred_check
    _
  $region15: #{trn_pallas.1} parent=0 // pred_check_branch
    %24 = sbr.rel (0) target = $region17
  $region16: #{trn_pallas.1} parent=0 // pred_region
    _
  $region17: #{trn_pallas.1} parent=0 // pred_fallthru
    _
  // Predicated region
  $region18: #{trn_pallas.1} parent=0 // pred_check
    _
  $region19: #{trn_pallas.1} parent=0 // pred_check_branch
    %26 = sbr.rel (0) target = $region21
  $region20: #{trn_pallas.1} parent=0 // pred_region
    _
  $region21: #{trn_pallas.1} parent=0 // pred_fallthru
    _
  // Predicated region
  $region22: #{trn_pallas.1} parent=0 // pred_check
    _
  $region23: #{trn_pallas.1} parent=0 // pred_check_branch
    %28 = sbr.rel (0) target = $region25
  $region24: #{trn_pallas.1} parent=0 // pred_region
    _
  $region25: #{trn_pallas.1} parent=0 // pred_fallthru
    _
  // Predicated region
  $region26: #{trn_pallas.1} parent=0 // pred_check
    _
  $region27: #{trn_pallas.1} parent=0 // pred_check_branch
    %30 = sbr.rel (0) target = $region29
  $region28: #{trn_pallas.1} parent=0 // pred_region
    _
  $region29: #{trn_pallas.1} parent=0 // pred_fallthru
    _
  // Predicated region
  $region30: #{trn_pallas.1} parent=0 // pred_check
    _
  $region31: #{trn_pallas.1} parent=0 // pred_check_branch
    %32 = sbr.rel (0) target = $region33
  $region32: #{trn_pallas.1} parent=0 // pred_region
    _
  $region33: #{trn_pallas.1} parent=0 // pred_fallthru
    _
  // Predicated region
  $region34: #{trn_pallas.1} parent=0 // pred_check
    _
  $region35: #{trn_pallas.1} parent=0 // pred_check_branch
    %34 = sbr.rel (0) target = $region37
  $region36: #{trn_pallas.1} parent=0 // pred_region
    _
  $region37: #{trn_pallas.1} parent=0 // pred_fallthru
    _
  // Predicated region
  $region38: #{trn_pallas.1} parent=0 // pred_check
    _
  $region39: #{trn_pallas.1} parent=0 // pred_check_branch
    %36 = sbr.rel (0) target = $region41
  $region40: #{trn_pallas.1} parent=0 // pred_region
    _
  $region41: #{trn_pallas.1} parent=0 // pred_fallthru
    _
  // Predicated region
  $region42: #{trn_pallas.1} parent=0 // pred_check
    _
  $region43: #{trn_pallas.1} parent=0 // pred_check_branch
    %38 = sbr.rel (0) target = $region45
  $region44: #{trn_pallas.1} parent=0 // pred_region
    _
  $region45: #{trn_pallas.1} parent=0 // pred_fallthru
    _
  // Predicated region
  $region46: #{trn_pallas.1} parent=0 // pred_check
    _
  $region47: #{trn_pallas.1} parent=0 // pred_check_branch
    %40 = sbr.rel (0) target = $region49
  $region48: #{trn_pallas.1} parent=0 // pred_region
    _
  $region49: #{trn_pallas.1} parent=0 // pred_fallthru
    _
  %v41 = vld [vmem:[%s3] sm:$0xff]
  %v42 = vld [vmem:[%s3 + $0x8] sm:$0xff]
  %v43 = vld [vmem:[%s3 + $0x10] sm:$0xff]
  %v44 = vld [vmem:[%s3 + $0x18] sm:$0xff]
  %v45 = vld [vmem:[%s3 + $0x20] sm:$0xff]
  %v46 = vld [vmem:[%s3 + $0x28] sm:$0xff]
  %v47 = vld [vmem:[%s3 + $0x30] sm:$0xff]
  %v48 = vld [vmem:[%s3 + $0x38] sm:$0xff]
  %v49 = vld [vmem:[%s4] sm:$0x1]
  %v50 = vld [vmem:[%s5] sm:$0xff]
  %v51 = vld [vmem:[%s5 + $0x8] sm:$0xff]
  %v52 = vld [vmem:[%s5 + $0x10] sm:$0xff]
  %v53 = vld [vmem:[%s5 + $0x18] sm:$0xff]
  %v54 = vld [vmem:[%s6] sm:$0x1]
  %v55 = vld [vmem:[%s7] sm:$0xff]
  %v56 = vld [vmem:[%s7 + $0x8] sm:$0xff]
  %v57 = vld [vmem:[%s7 + $0x10] sm:$0xff]
  %v58 = vld [vmem:[%s7 + $0x18] sm:$0xff]
  %v59 = vld [vmem:[%s8] sm:$0x1]
  %v60 = vld [vmem:[%s9] sm:$0xff]
  %v61 = vld [vmem:[%s9 + $0x8] sm:$0xff]
  %v62 = vld [vmem:[%s9 + $0x10] sm:$0xff]
  %v63 = vld [vmem:[%s9 + $0x18] sm:$0xff]
  %v64 = vld [vmem:[%s10] sm:$0x1]
  %v65 = vld [vmem:[%s11] sm:$0xff]
  %v66 = vld [vmem:[%s11 + $0x8] sm:$0xff]
  %v67 = vld [vmem:[%s11 + $0x10] sm:$0xff]
  %v68 = vld [vmem:[%s11 + $0x18] sm:$0xff]
  %v69 = vld [vmem:[%s11 + $0x20] sm:$0xff]
  %v70 = vld [vmem:[%s11 + $0x28] sm:$0xff]
  %v71 = vld [vmem:[%s11 + $0x30] sm:$0xff]
  %v72 = vld [vmem:[%s11 + $0x38] sm:$0xff]
  %v73 = vld [vmem:[%s1] sm:$0xff]
  %v74 = vld [vmem:[%s2] sm:$0xff]
  %76 = vrot.lane.b32.xlu0 %v74, 32
  %v77 = vpop.permute.xlu0 %76
  %vm79 = vcmask 261120
  %v80 = vsel %vm79, %v73, %v77
  %v82 = vperm.slane %v49, 0
  %vm84 = vcmask 523264
  %v86 = vsel %vm84, %v80, 0
  %88 = vmatpush.msra.mxu0 0.0
  %89 = vmatpush.msra.mxu0 0.0
  %90 = vmatpush.msra.mxu0 0.0
  %91 = vmatpush.msra.mxu0 0.0
  %92 = vmatpush.msra.mxu0 0.0
  %93 = vmatpush.msra.mxu0 0.0
  %94 = vmatpush.msra.mxu0 0.0
  %95 = vmatpush.msra.mxu0 0.0
  %96 = vmatpush.msra.mxu0 %v48
  %97 = vmatpush.msra.mxu0 %v47
  %98 = vmatpush.msra.mxu0 %v46
  %99 = vmatpush.msra.mxu0 %v45
  %100 = vmatpush.msra.mxu0 %v44
  %101 = vmatpush.msra.mxu0 %v43
  %102 = vmatpush.msra.mxu0 %v42
  %103 = vmatpush.msra.mxu0 %v41
  %104 = vmatmul.f32.gmra.mxu0 %v86
  %v105 = vpop.f32.mrf.mxu0
  %v106 = vadd.f32 %v82, %v105
  %107 = vdwg.mxu0
  %v108 = vmax.f32 %v106, 0.0
  %v110 = vperm.slane %v54, 0
  %v113 = vsel %vm79, %v108, 0
  %115 = vmatpush.msra.mxu0 0.0
  %116 = vmatpush.msra.mxu0 0.0
  %117 = vmatpush.msra.mxu0 0.0
  %118 = vmatpush.msra.mxu0 0.0
  %119 = vmatpush.msra.mxu0 0.0
  %120 = vmatpush.msra.mxu0 0.0
  %121 = vmatpush.msra.mxu0 0.0
  %122 = vmatpush.msra.mxu0 0.0
  %123 = vmatpush.msra.mxu0 0.0
  %124 = vmatpush.msra.mxu0 0.0
  %125 = vmatpush.msra.mxu0 0.0
  %126 = vmatpush.msra.mxu0 0.0
  %127 = vmatpush.msra.mxu0 %v53
  %128 = vmatpush.msra.mxu0 %v52
  %129 = vmatpush.msra.mxu0 %v51
  %130 = vmatpush.msra.mxu0 %v50
  %131 = vmatmul.f32.gmra.mxu0 %v113
  %v132 = vpop.f32.mrf.mxu0
  %v133 = vadd.f32 %v110, %v132
  %134 = vdwg.mxu0
  %v135 = vxor.u32 %v133, 2147483648
  %v136 = vmul.f32 %v135, 1.442695
  %v137 = vpow.pop %v136
  %v138 = vadd.f32 %v137, 1.0
  %v139 = vrcp.pop %v138
  %v140 = vmul.f32 %v138, %v139
  %v141 = vsub.f32 1.0, %v140
  %v142 = vmul.f32 %v139, %v141
  %v143 = vadd.f32 %v139, %v142
  %vm144 = vweird.f32 %v138
  %vm145 = vweird.f32 %v139
  %vm146 = vmor %vm144, %vm145
  %v147 = vsel %vm146, %v139, %v143
  %v148 = vand.u32 2147483647, %v138
  %vm149 = vcmp.eq.f32.partialorder %v148, 8.507059e+37
  %v150 = vand.u32 %v138, 2147483648
  %v151 = vor.u32 1.1754944e-38, %v150
  %v152 = vsel %vm149, %v151, %v147
  %v153 = vmul.f32 1.0, %v152
  %v154 = vtanh.pop %v133
  %v155 = vmul.f32 %v153, %v108
  %157 = vrot.lane.b32.xlu0 %v154, 64
  %v158 = vpop.permute.xlu0 %157
  %v160 = vmul.f32 %v153, %v158
  %162 = vrot.lane.b32.xlu0 %v160, 32
  %v163 = vpop.permute.xlu0 %162
  %v165 = vadd.f32 %v155, %v163
  %v166 = vtanh.pop %v165
  %168 = vrot.lane.b32.xlu0 %v166, 64
  %v169 = vpop.permute.xlu0 %168
  %v171 = vmul.f32 %v153, %v169
  %v173 = vperm.slane %v64, 0
  %176 = vrot.lane.b32.xlu0 %v171, 32
  %v177 = vpop.permute.xlu0 %176
  %v178 = vsel %vm79, %v177, 0
  %180 = vmatpush.msra.mxu0 0.0
  %181 = vmatpush.msra.mxu0 0.0
  %182 = vmatpush.msra.mxu0 0.0
  %183 = vmatpush.msra.mxu0 0.0
  %184 = vmatpush.msra.mxu0 0.0
  %185 = vmatpush.msra.mxu0 0.0
  %186 = vmatpush.msra.mxu0 0.0
  %187 = vmatpush.msra.mxu0 0.0
  %188 = vmatpush.msra.mxu0 0.0
  %189 = vmatpush.msra.mxu0 0.0
  %190 = vmatpush.msra.mxu0 0.0
  %191 = vmatpush.msra.mxu0 0.0
  %192 = vmatpush.msra.mxu0 %v63
  %193 = vmatpush.msra.mxu0 %v62
  %194 = vmatpush.msra.mxu0 %v61
  %195 = vmatpush.msra.mxu0 %v60
  %196 = vmatmul.f32.gmra.mxu0 %v178
  %v197 = vpop.f32.mrf.mxu0
  %v198 = vadd.f32 %v173, %v197
  %199 = vdwg.mxu0
  %v200 = vadd.f32 %v198, 0.0
  %v202 = vperm.slane %v59, 0
  %204 = vmatpush.msra.mxu0 0.0
  %205 = vmatpush.msra.mxu0 0.0
  %206 = vmatpush.msra.mxu0 0.0
  %207 = vmatpush.msra.mxu0 0.0
  %208 = vmatpush.msra.mxu0 0.0
  %209 = vmatpush.msra.mxu0 0.0
  %210 = vmatpush.msra.mxu0 0.0
  %211 = vmatpush.msra.mxu0 0.0
  %212 = vmatpush.msra.mxu0 0.0
  %213 = vmatpush.msra.mxu0 0.0
  %214 = vmatpush.msra.mxu0 0.0
  %215 = vmatpush.msra.mxu0 0.0
  %216 = vmatpush.msra.mxu0 %v58
  %217 = vmatpush.msra.mxu0 %v57
  %218 = vmatpush.msra.mxu0 %v56
  %219 = vmatpush.msra.mxu0 %v55
  %220 = vmatmul.f32.gmra.mxu0 %v178
  %v221 = vpop.f32.mrf.mxu0
  %v222 = vadd.f32 %v202, %v221
  %223 = vdwg.mxu0
  %v224 = vxor.u32 %v222, 2147483648
  %v225 = vmul.f32 %v224, 1.442695
  %v226 = vpow.pop %v225
  %v227 = vadd.f32 %v226, 1.0
  %v228 = vrcp.pop %v227
  %v229 = vmul.f32 %v227, %v228
  %v230 = vsub.f32 1.0, %v229
  %v231 = vmul.f32 %v228, %v230
  %v232 = vadd.f32 %v228, %v231
  %vm233 = vweird.f32 %v227
  %vm234 = vweird.f32 %v228
  %vm235 = vmor %vm233, %vm234
  %v236 = vsel %vm235, %v228, %v232
  %v237 = vand.u32 2147483647, %v227
  %vm238 = vcmp.eq.f32.partialorder %v237, 8.507059e+37
  %v239 = vand.u32 %v227, 2147483648
  %v240 = vor.u32 1.1754944e-38, %v239
  %v241 = vsel %vm238, %v240, %v236
  %v242 = vmul.f32 1.0, %v241
  %v243 = vtanh.pop %v222
  %v244 = vmul.f32 %v242, %v165
  %246 = vrot.lane.b32.xlu0 %v243, 64
  %v247 = vpop.permute.xlu0 %246
  %v249 = vmul.f32 %v242, %v247
  %251 = vrot.lane.b32.xlu0 %v249, 32
  %v252 = vpop.permute.xlu0 %251
  %v254 = vadd.f32 %v244, %v252
  %v255 = vtanh.pop %v254
  %257 = vrot.lane.b32.xlu0 %v255, 64
  %v258 = vpop.permute.xlu0 %257
  %v260 = vmul.f32 %v242, %v258
  %262 = vrot.lane.b32.xlu0 %v260, 32
  %v263 = vpop.permute.xlu0 %262
  %v264 = vsel %vm79, %v263, 0
  %266 = vmatpush.msra.mxu0 0.0
  %267 = vmatpush.msra.mxu0 0.0
  %268 = vmatpush.msra.mxu0 0.0
  %269 = vmatpush.msra.mxu0 0.0
  %270 = vmatpush.msra.mxu0 0.0
  %271 = vmatpush.msra.mxu0 0.0
  %272 = vmatpush.msra.mxu0 0.0
  %273 = vmatpush.msra.mxu0 0.0
  %274 = vmatpush.msra.mxu0 0.0
  %275 = vmatpush.msra.mxu0 0.0
  %276 = vmatpush.msra.mxu0 0.0
  %277 = vmatpush.msra.mxu0 0.0
  %278 = vmatpush.msra.mxu0 %v63
  %279 = vmatpush.msra.mxu0 %v62
  %280 = vmatpush.msra.mxu0 %v61
  %281 = vmatpush.msra.mxu0 %v60
  %282 = vmatmul.f32.gmra.mxu0 %v264
  %v283 = vpop.f32.mrf.mxu0
  %v284 = vadd.f32 %v173, %v283
  %285 = vdwg.mxu0
  %v286 = vadd.f32 %v200, %v284
  %287 = vmatpush.msra.mxu0 0.0
  %288 = vmatpush.msra.mxu0 0.0
  %289 = vmatpush.msra.mxu0 0.0
  %290 = vmatpush.msra.mxu0 0.0
  %291 = vmatpush.msra.mxu0 0.0
  %292 = vmatpush.msra.mxu0 0.0
  %293 = vmatpush.msra.mxu0 0.0
  %294 = vmatpush.msra.mxu0 0.0
  %295 = vmatpush.msra.mxu0 0.0
  %296 = vmatpush.msra.mxu0 0.0
  %297 = vmatpush.msra.mxu0 0.0
  %298 = vmatpush.msra.mxu0 0.0
  %299 = vmatpush.msra.mxu0 %v58
  %300 = vmatpush.msra.mxu0 %v57
  %301 = vmatpush.msra.mxu0 %v56
  %302 = vmatpush.msra.mxu0 %v55
  %303 = vmatmul.f32.gmra.mxu0 %v264
  %v304 = vpop.f32.mrf.mxu0
  %v305 = vadd.f32 %v202, %v304
  %306 = vdwg.mxu0
  %v307 = vxor.u32 %v305, 2147483648
  %v308 = vmul.f32 %v307, 1.442695
  %v309 = vpow.pop %v308
  %v310 = vadd.f32 %v309, 1.0
  %v311 = vrcp.pop %v310
  %v312 = vmul.f32 %v310, %v311
  %v313 = vsub.f32 1.0, %v312
  %v314 = vmul.f32 %v311, %v313
  %v315 = vadd.f32 %v311, %v314
  %vm316 = vweird.f32 %v310
  %vm317 = vweird.f32 %v311
  %vm318 = vmor %vm316, %vm317
  %v319 = vsel %vm318, %v311, %v315
  %v320 = vand.u32 2147483647, %v310
  %vm321 = vcmp.eq.f32.partialorder %v320, 8.507059e+37
  %v322 = vand.u32 %v310, 2147483648
  %v323 = vor.u32 1.1754944e-38, %v322
  %v324 = vsel %vm321, %v323, %v319
  %v325 = vmul.f32 1.0, %v324
  %v326 = vtanh.pop %v305
  %v327 = vmul.f32 %v325, %v254
  %329 = vrot.lane.b32.xlu0 %v326, 64
  %v330 = vpop.permute.xlu0 %329
  %v332 = vmul.f32 %v325, %v330
  %334 = vrot.lane.b32.xlu0 %v332, 32
  %v335 = vpop.permute.xlu0 %334
  %v337 = vadd.f32 %v327, %v335
  %v338 = vtanh.pop %v337
  %340 = vrot.lane.b32.xlu0 %v338, 64
  %v341 = vpop.permute.xlu0 %340
  %v343 = vmul.f32 %v325, %v341
  %345 = vrot.lane.b32.xlu0 %v343, 32
  %v346 = vpop.permute.xlu0 %345
  %v347 = vsel %vm79, %v346, 0
  %349 = vmatpush.msra.mxu0 0.0
  %350 = vmatpush.msra.mxu0 0.0
  %351 = vmatpush.msra.mxu0 0.0
  %352 = vmatpush.msra.mxu0 0.0
  %353 = vmatpush.msra.mxu0 0.0
  %354 = vmatpush.msra.mxu0 0.0
  %355 = vmatpush.msra.mxu0 0.0
  %356 = vmatpush.msra.mxu0 0.0
  %357 = vmatpush.msra.mxu0 0.0
  %358 = vmatpush.msra.mxu0 0.0
  %359 = vmatpush.msra.mxu0 0.0
  %360 = vmatpush.msra.mxu0 0.0
  %361 = vmatpush.msra.mxu0 %v63
  %362 = vmatpush.msra.mxu0 %v62
  %363 = vmatpush.msra.mxu0 %v61
  %364 = vmatpush.msra.mxu0 %v60
  %365 = vmatmul.f32.gmra.mxu0 %v347
  %v366 = vpop.f32.mrf.mxu0
  %v367 = vadd.f32 %v173, %v366
  %368 = vdwg.mxu0
  %v369 = vadd.f32 %v286, %v367
  %370 = vmatpush.msra.mxu0 0.0
  %371 = vmatpush.msra.mxu0 0.0
  %372 = vmatpush.msra.mxu0 0.0
  %373 = vmatpush.msra.mxu0 0.0
  %374 = vmatpush.msra.mxu0 0.0
  %375 = vmatpush.msra.mxu0 0.0
  %376 = vmatpush.msra.mxu0 0.0
  %377 = vmatpush.msra.mxu0 0.0
  %378 = vmatpush.msra.mxu0 0.0
  %379 = vmatpush.msra.mxu0 0.0
  %380 = vmatpush.msra.mxu0 0.0
  %381 = vmatpush.msra.mxu0 0.0
  %382 = vmatpush.msra.mxu0 %v58
  %383 = vmatpush.msra.mxu0 %v57
  %384 = vmatpush.msra.mxu0 %v56
  %385 = vmatpush.msra.mxu0 %v55
  %386 = vmatmul.f32.gmra.mxu0 %v347
  %v387 = vpop.f32.mrf.mxu0
  %v388 = vadd.f32 %v202, %v387
  %389 = vdwg.mxu0
  %v390 = vxor.u32 %v388, 2147483648
  %v391 = vmul.f32 %v390, 1.442695
  %v392 = vpow.pop %v391
  %v393 = vadd.f32 %v392, 1.0
  %v394 = vrcp.pop %v393
  %v395 = vmul.f32 %v393, %v394
  %v396 = vsub.f32 1.0, %v395
  %v397 = vmul.f32 %v394, %v396
  %v398 = vadd.f32 %v394, %v397
  %vm399 = vweird.f32 %v393
  %vm400 = vweird.f32 %v394
  %vm401 = vmor %vm399, %vm400
  %v402 = vsel %vm401, %v394, %v398
  %v403 = vand.u32 2147483647, %v393
  %vm404 = vcmp.eq.f32.partialorder %v403, 8.507059e+37
  %v405 = vand.u32 %v393, 2147483648
  %v406 = vor.u32 1.1754944e-38, %v405
  %v407 = vsel %vm404, %v406, %v402
  %v408 = vmul.f32 1.0, %v407
  %v409 = vtanh.pop %v388
  %v410 = vmul.f32 %v408, %v337
  %412 = vrot.lane.b32.xlu0 %v409, 64
  %v413 = vpop.permute.xlu0 %412
  %v415 = vmul.f32 %v408, %v413
  %417 = vrot.lane.b32.xlu0 %v415, 32
  %v418 = vpop.permute.xlu0 %417
  %v420 = vadd.f32 %v410, %v418
  %v421 = vtanh.pop %v420
  %423 = vrot.lane.b32.xlu0 %v421, 64
  %v424 = vpop.permute.xlu0 %423
  %v426 = vmul.f32 %v408, %v424
  %428 = vrot.lane.b32.xlu0 %v426, 32
  %v429 = vpop.permute.xlu0 %428
  %v430 = vsel %vm79, %v429, 0
  %432 = vmatpush.msra.mxu0 0.0
  %433 = vmatpush.msra.mxu0 0.0
  %434 = vmatpush.msra.mxu0 0.0
  %435 = vmatpush.msra.mxu0 0.0
  %436 = vmatpush.msra.mxu0 0.0
  %437 = vmatpush.msra.mxu0 0.0
  %438 = vmatpush.msra.mxu0 0.0
  %439 = vmatpush.msra.mxu0 0.0
  %440 = vmatpush.msra.mxu0 0.0
  %441 = vmatpush.msra.mxu0 0.0
  %442 = vmatpush.msra.mxu0 0.0
  %443 = vmatpush.msra.mxu0 0.0
  %444 = vmatpush.msra.mxu0 %v63
  %445 = vmatpush.msra.mxu0 %v62
  %446 = vmatpush.msra.mxu0 %v61
  %447 = vmatpush.msra.mxu0 %v60
  %448 = vmatmul.f32.gmra.mxu0 %v430
  %v449 = vpop.f32.mrf.mxu0
  %v450 = vadd.f32 %v173, %v449
  %451 = vdwg.mxu0
  %v452 = vadd.f32 %v369, %v450
  %454 = vrot.lane.b32.xlu0 %v452, 112
  %v455 = vpop.permute.xlu0 %454
  %458 = vrot.lane.b32.xlu0 %v73, 32
  %v459 = vpop.permute.xlu0 %458
  %v461 = vsel %vm79, %v455, %v459
  %v462 = vld [vmem:[%s0] sm:$0xff]
  %v464 = vsel %vm84, %v461, 0
  %466 = vmatpush.msra.mxu0 0.0
  %467 = vmatpush.msra.mxu0 0.0
  %468 = vmatpush.msra.mxu0 0.0
  %469 = vmatpush.msra.mxu0 0.0
  %470 = vmatpush.msra.mxu0 0.0
  %471 = vmatpush.msra.mxu0 0.0
  %472 = vmatpush.msra.mxu0 0.0
  %473 = vmatpush.msra.mxu0 0.0
  %474 = vmatpush.msra.mxu0 %v72
  %475 = vmatpush.msra.mxu0 %v71
  %476 = vmatpush.msra.mxu0 %v70
  %477 = vmatpush.msra.mxu0 %v69
  %478 = vmatpush.msra.mxu0 %v68
  %479 = vmatpush.msra.mxu0 %v67
  %480 = vmatpush.msra.mxu0 %v66
  %481 = vmatpush.msra.mxu0 %v65
  %482 = vmatmul.f32.gmra.mxu0 %v464
  %v483 = vpop.f32.mrf.mxu0
  %v484 = vadd.f32 0.0, %v483
  %485 = vdwg.mxu0
  %v486 = vadd.f32 %v462, %v484
  %v487 = vxor.u32 %v486, 2147483648
  %v488 = vmul.f32 %v487, 1.442695
  %v489 = vpow.pop %v488
  %v490 = vadd.f32 %v489, 1.0
  %v491 = vrcp.pop %v490
  %v492 = vmul.f32 %v490, %v491
  %v493 = vsub.f32 1.0, %v492
  %v494 = vmul.f32 %v491, %v493
  %v495 = vadd.f32 %v491, %v494
  %vm496 = vweird.f32 %v490
  %vm497 = vweird.f32 %v491
  %vm498 = vmor %vm496, %vm497
  %v499 = vsel %vm498, %v491, %v495
  %v500 = vand.u32 2147483647, %v490
  %vm501 = vcmp.eq.f32.partialorder %v500, 8.507059e+37
  %v502 = vand.u32 %v490, 2147483648
  %v503 = vor.u32 1.1754944e-38, %v502
  %v504 = vsel %vm501, %v503, %v499
  %v505 = vmul.f32 1.0, %v504
  %v506 = vtanh.pop %v486
  %v507 = vmul.f32 %v505, %v77
  %509 = vrot.lane.b32.xlu0 %v506, 64
  %v510 = vpop.permute.xlu0 %509
  %v512 = vmul.f32 %v505, %v510
  %514 = vrot.lane.b32.xlu0 %v512, 32
  %v515 = vpop.permute.xlu0 %514
  %v517 = vadd.f32 %v507, %v515
  %v518 = vtanh.pop %v517
  %520 = vrot.lane.b32.xlu0 %v518, 64
  %v521 = vpop.permute.xlu0 %520
  %v523 = vmul.f32 %v505, %v521
  %525 = vrot.lane.b32.xlu0 %v523, 32
  %v526 = vpop.permute.xlu0 %525
  %v527 = vsel %vm79, %v526, 0
  %529 = vmatpush.msra.mxu0 0.0
  %530 = vmatpush.msra.mxu0 0.0
  %531 = vmatpush.msra.mxu0 0.0
  %532 = vmatpush.msra.mxu0 0.0
  %533 = vmatpush.msra.mxu0 0.0
  %534 = vmatpush.msra.mxu0 0.0
  %535 = vmatpush.msra.mxu0 0.0
  %536 = vmatpush.msra.mxu0 0.0
  %537 = vmatpush.msra.mxu0 0.0
  %538 = vmatpush.msra.mxu0 0.0
  %539 = vmatpush.msra.mxu0 0.0
  %540 = vmatpush.msra.mxu0 0.0
  %541 = vmatpush.msra.mxu0 %v63
  %542 = vmatpush.msra.mxu0 %v62
  %543 = vmatpush.msra.mxu0 %v61
  %544 = vmatpush.msra.mxu0 %v60
  %545 = vmatmul.f32.gmra.mxu0 %v527
  %v546 = vpop.f32.mrf.mxu0
  %v547 = vadd.f32 %v173, %v546
  %548 = vdwg.mxu0
  %550 = vrot.lane.b32.xlu0 %v198, 16
  %v551 = vpop.permute.xlu0 %550
  %554 = vrot.lane.b32.xlu0 %v284, 32
  %v555 = vpop.permute.xlu0 %554
  %558 = vrot.lane.b32.xlu0 %v367, 48
  %v559 = vpop.permute.xlu0 %558
  %562 = vrot.lane.b32.xlu0 %v450, 64
  %v563 = vpop.permute.xlu0 %562
  %vm565 = vcmask 130048
  %v566 = vsel %vm565, %v547, %v551
  %v567 = vsel %vm79, %v566, %v555
  %vm568 = vcmask 392192
  %v569 = vsel %vm568, %v567, %v559
  %v570 = vsel %vm84, %v569, %v563
  %vm571 = vcmask 654336
  %v572 = vsel %vm571, %v570, 0.0
  %573 = vst [vmem:[%s12] sm:$0xff] %v572
  %v575 = vsel %vm79, %v526, %v517
  %v577 = vsel %vm84, %v575, 0
  %579 = vmatpush.msra.mxu0 0.0
  %580 = vmatpush.msra.mxu0 0.0
  %581 = vmatpush.msra.mxu0 0.0
  %582 = vmatpush.msra.mxu0 0.0
  %583 = vmatpush.msra.mxu0 0.0
  %584 = vmatpush.msra.mxu0 0.0
  %585 = vmatpush.msra.mxu0 0.0
  %586 = vmatpush.msra.mxu0 0.0
  %587 = vmatpush.msra.mxu0 %v48
  %588 = vmatpush.msra.mxu0 %v47
  %589 = vmatpush.msra.mxu0 %v46
  %590 = vmatpush.msra.mxu0 %v45
  %591 = vmatpush.msra.mxu0 %v44
  %592 = vmatpush.msra.mxu0 %v43
  %593 = vmatpush.msra.mxu0 %v42
  %594 = vmatpush.msra.mxu0 %v41
  %595 = vmatmul.f32.gmra.mxu0 %v577
  %v596 = vpop.f32.mrf.mxu0
  %v597 = vadd.f32 %v82, %v596
  %598 = vdwg.mxu0
  %v599 = vmax.f32 %v597, 0.0
  %v601 = vsel %vm79, %v599, 0
  %603 = vmatpush.msra.mxu0 0.0
  %604 = vmatpush.msra.mxu0 0.0
  %605 = vmatpush.msra.mxu0 0.0
  %606 = vmatpush.msra.mxu0 0.0
  %607 = vmatpush.msra.mxu0 0.0
  %608 = vmatpush.msra.mxu0 0.0
  %609 = vmatpush.msra.mxu0 0.0
  %610 = vmatpush.msra.mxu0 0.0
  %611 = vmatpush.msra.mxu0 0.0
  %612 = vmatpush.msra.mxu0 0.0
  %613 = vmatpush.msra.mxu0 0.0
  %614 = vmatpush.msra.mxu0 0.0
  %615 = vmatpush.msra.mxu0 %v53
  %616 = vmatpush.msra.mxu0 %v52
  %617 = vmatpush.msra.mxu0 %v51
  %618 = vmatpush.msra.mxu0 %v50
  %619 = vmatmul.f32.gmra.mxu0 %v601
  %v620 = vpop.f32.mrf.mxu0
  %v621 = vadd.f32 %v110, %v620
  %622 = vdwg.mxu0
  %v623 = vxor.u32 %v621, 2147483648
  %v624 = vmul.f32 %v623, 1.442695
  %v625 = vpow.pop %v624
  %v626 = vadd.f32 %v625, 1.0
  %v627 = vrcp.pop %v626
  %v628 = vmul.f32 %v626, %v627
  %v629 = vsub.f32 1.0, %v628
  %v630 = vmul.f32 %v627, %v629
  %v631 = vadd.f32 %v627, %v630
  %vm632 = vweird.f32 %v626
  %vm633 = vweird.f32 %v627
  %vm634 = vmor %vm632, %vm633
  %v635 = vsel %vm634, %v627, %v631
  %v636 = vand.u32 2147483647, %v626
  %vm637 = vcmp.eq.f32.partialorder %v636, 8.507059e+37
  %v638 = vand.u32 %v626, 2147483648
  %v639 = vor.u32 1.1754944e-38, %v638
  %v640 = vsel %vm637, %v639, %v635
  %v641 = vmul.f32 1.0, %v640
  %v642 = vtanh.pop %v621
  %v643 = vmul.f32 %v641, %v599
  %645 = vrot.lane.b32.xlu0 %v642, 64
  %v646 = vpop.permute.xlu0 %645
  %v648 = vmul.f32 %v641, %v646
  %650 = vrot.lane.b32.xlu0 %v648, 32
  %v651 = vpop.permute.xlu0 %650
  %v653 = vadd.f32 %v643, %v651
  %v654 = vtanh.pop %v653
  %656 = vrot.lane.b32.xlu0 %v654, 64
  %v657 = vpop.permute.xlu0 %656
  %v659 = vmul.f32 %v641, %v657
  %661 = vrot.lane.b32.xlu0 %v659, 32
  %v662 = vpop.permute.xlu0 %661
  %v663 = vsel %vm79, %v662, 0
  %665 = vmatpush.msra.mxu0 0.0
  %666 = vmatpush.msra.mxu0 0.0
  %667 = vmatpush.msra.mxu0 0.0
  %668 = vmatpush.msra.mxu0 0.0
  %669 = vmatpush.msra.mxu0 0.0
  %670 = vmatpush.msra.mxu0 0.0
  %671 = vmatpush.msra.mxu0 0.0
  %672 = vmatpush.msra.mxu0 0.0
  %673 = vmatpush.msra.mxu0 0.0
  %674 = vmatpush.msra.mxu0 0.0
  %675 = vmatpush.msra.mxu0 0.0
  %676 = vmatpush.msra.mxu0 0.0
  %677 = vmatpush.msra.mxu0 %v63
  %678 = vmatpush.msra.mxu0 %v62
  %679 = vmatpush.msra.mxu0 %v61
  %680 = vmatpush.msra.mxu0 %v60
  %681 = vmatmul.f32.gmra.mxu0 %v663
  %v682 = vpop.f32.mrf.mxu0
  %v683 = vadd.f32 %v173, %v682
  %684 = vdwg.mxu0
  %v685 = vadd.f32 %v683, 0.0
  %686 = vmatpush.msra.mxu0 0.0
  %687 = vmatpush.msra.mxu0 0.0
  %688 = vmatpush.msra.mxu0 0.0
  %689 = vmatpush.msra.mxu0 0.0
  %690 = vmatpush.msra.mxu0 0.0
  %691 = vmatpush.msra.mxu0 0.0
  %692 = vmatpush.msra.mxu0 0.0
  %693 = vmatpush.msra.mxu0 0.0
  %694 = vmatpush.msra.mxu0 0.0
  %695 = vmatpush.msra.mxu0 0.0
  %696 = vmatpush.msra.mxu0 0.0
  %697 = vmatpush.msra.mxu0 0.0
  %698 = vmatpush.msra.mxu0 %v58
  %699 = vmatpush.msra.mxu0 %v57
  %700 = vmatpush.msra.mxu0 %v56
  %701 = vmatpush.msra.mxu0 %v55
  %702 = vmatmul.f32.gmra.mxu0 %v663
  %v703 = vpop.f32.mrf.mxu0
  %v704 = vadd.f32 %v202, %v703
  %705 = vdwg.mxu0
  %v706 = vxor.u32 %v704, 2147483648
  %v707 = vmul.f32 %v706, 1.442695
  %v708 = vpow.pop %v707
  %v709 = vadd.f32 %v708, 1.0
  %v710 = vrcp.pop %v709
  %v711 = vmul.f32 %v709, %v710
  %v712 = vsub.f32 1.0, %v711
  %v713 = vmul.f32 %v710, %v712
  %v714 = vadd.f32 %v710, %v713
  %vm715 = vweird.f32 %v709
  %vm716 = vweird.f32 %v710
  %vm717 = vmor %vm715, %vm716
  %v718 = vsel %vm717, %v710, %v714
  %v719 = vand.u32 2147483647, %v709
  %vm720 = vcmp.eq.f32.partialorder %v719, 8.507059e+37
  %v721 = vand.u32 %v709, 2147483648
  %v722 = vor.u32 1.1754944e-38, %v721
  %v723 = vsel %vm720, %v722, %v718
  %v724 = vmul.f32 1.0, %v723
  %v725 = vtanh.pop %v704
  %v726 = vmul.f32 %v724, %v653
  %728 = vrot.lane.b32.xlu0 %v725, 64
  %v729 = vpop.permute.xlu0 %728
  %v731 = vmul.f32 %v724, %v729
  %733 = vrot.lane.b32.xlu0 %v731, 32
  %v734 = vpop.permute.xlu0 %733
  %v736 = vadd.f32 %v726, %v734
  %v737 = vtanh.pop %v736
  %739 = vrot.lane.b32.xlu0 %v737, 64
  %v740 = vpop.permute.xlu0 %739
  %v742 = vmul.f32 %v724, %v740
  %744 = vrot.lane.b32.xlu0 %v742, 32
  %v745 = vpop.permute.xlu0 %744
  %v746 = vsel %vm79, %v745, 0
  %748 = vmatpush.msra.mxu0 0.0
  %749 = vmatpush.msra.mxu0 0.0
  %750 = vmatpush.msra.mxu0 0.0
  %751 = vmatpush.msra.mxu0 0.0
  %752 = vmatpush.msra.mxu0 0.0
  %753 = vmatpush.msra.mxu0 0.0
  %754 = vmatpush.msra.mxu0 0.0
  %755 = vmatpush.msra.mxu0 0.0
  %756 = vmatpush.msra.mxu0 0.0
  %757 = vmatpush.msra.mxu0 0.0
  %758 = vmatpush.msra.mxu0 0.0
  %759 = vmatpush.msra.mxu0 0.0
  %760 = vmatpush.msra.mxu0 %v63
  %761 = vmatpush.msra.mxu0 %v62
  %762 = vmatpush.msra.mxu0 %v61
  %763 = vmatpush.msra.mxu0 %v60
  %764 = vmatmul.f32.gmra.mxu0 %v746
  %v765 = vpop.f32.mrf.mxu0
  %v766 = vadd.f32 %v173, %v765
  %767 = vdwg.mxu0
  %v768 = vadd.f32 %v685, %v766
  %769 = vmatpush.msra.mxu0 0.0
  %770 = vmatpush.msra.mxu0 0.0
  %771 = vmatpush.msra.mxu0 0.0
  %772 = vmatpush.msra.mxu0 0.0
  %773 = vmatpush.msra.mxu0 0.0
  %774 = vmatpush.msra.mxu0 0.0
  %775 = vmatpush.msra.mxu0 0.0
  %776 = vmatpush.msra.mxu0 0.0
  %777 = vmatpush.msra.mxu0 0.0
  %778 = vmatpush.msra.mxu0 0.0
  %779 = vmatpush.msra.mxu0 0.0
  %780 = vmatpush.msra.mxu0 0.0
  %781 = vmatpush.msra.mxu0 %v58
  %782 = vmatpush.msra.mxu0 %v57
  %783 = vmatpush.msra.mxu0 %v56
  %784 = vmatpush.msra.mxu0 %v55
  %785 = vmatmul.f32.gmra.mxu0 %v746
  %v786 = vpop.f32.mrf.mxu0
  %v787 = vadd.f32 %v202, %v786
  %788 = vdwg.mxu0
  %v789 = vxor.u32 %v787, 2147483648
  %v790 = vmul.f32 %v789, 1.442695
  %v791 = vpow.pop %v790
  %v792 = vadd.f32 %v791, 1.0
  %v793 = vrcp.pop %v792
  %v794 = vmul.f32 %v792, %v793
  %v795 = vsub.f32 1.0, %v794
  %v796 = vmul.f32 %v793, %v795
  %v797 = vadd.f32 %v793, %v796
  %vm798 = vweird.f32 %v792
  %vm799 = vweird.f32 %v793
  %vm800 = vmor %vm798, %vm799
  %v801 = vsel %vm800, %v793, %v797
  %v802 = vand.u32 2147483647, %v792
  %vm803 = vcmp.eq.f32.partialorder %v802, 8.507059e+37
  %v804 = vand.u32 %v792, 2147483648
  %v805 = vor.u32 1.1754944e-38, %v804
  %v806 = vsel %vm803, %v805, %v801
  %v807 = vmul.f32 1.0, %v806
  %v808 = vtanh.pop %v787
  %v809 = vmul.f32 %v807, %v736
  %811 = vrot.lane.b32.xlu0 %v808, 64
  %v812 = vpop.permute.xlu0 %811
  %v814 = vmul.f32 %v807, %v812
  %816 = vrot.lane.b32.xlu0 %v814, 32
  %v817 = vpop.permute.xlu0 %816
  %v819 = vadd.f32 %v809, %v817
  %v820 = vtanh.pop %v819
  %822 = vrot.lane.b32.xlu0 %v820, 64
  %v823 = vpop.permute.xlu0 %822
  %v825 = vmul.f32 %v807, %v823
  %827 = vrot.lane.b32.xlu0 %v825, 32
  %v828 = vpop.permute.xlu0 %827
  %v829 = vsel %vm79, %v828, 0
  %831 = vmatpush.msra.mxu0 0.0
  %832 = vmatpush.msra.mxu0 0.0
  %833 = vmatpush.msra.mxu0 0.0
  %834 = vmatpush.msra.mxu0 0.0
  %835 = vmatpush.msra.mxu0 0.0
  %836 = vmatpush.msra.mxu0 0.0
  %837 = vmatpush.msra.mxu0 0.0
  %838 = vmatpush.msra.mxu0 0.0
  %839 = vmatpush.msra.mxu0 0.0
  %840 = vmatpush.msra.mxu0 0.0
  %841 = vmatpush.msra.mxu0 0.0
  %842 = vmatpush.msra.mxu0 0.0
  %843 = vmatpush.msra.mxu0 %v63
  %844 = vmatpush.msra.mxu0 %v62
  %845 = vmatpush.msra.mxu0 %v61
  %846 = vmatpush.msra.mxu0 %v60
  %847 = vmatmul.f32.gmra.mxu0 %v829
  %v848 = vpop.f32.mrf.mxu0
  %v849 = vadd.f32 %v173, %v848
  %850 = vdwg.mxu0
  %v851 = vadd.f32 %v768, %v849
  %852 = vmatpush.msra.mxu0 0.0
  %853 = vmatpush.msra.mxu0 0.0
  %854 = vmatpush.msra.mxu0 0.0
  %855 = vmatpush.msra.mxu0 0.0
  %856 = vmatpush.msra.mxu0 0.0
  %857 = vmatpush.msra.mxu0 0.0
  %858 = vmatpush.msra.mxu0 0.0
  %859 = vmatpush.msra.mxu0 0.0
  %860 = vmatpush.msra.mxu0 0.0
  %861 = vmatpush.msra.mxu0 0.0
  %862 = vmatpush.msra.mxu0 0.0
  %863 = vmatpush.msra.mxu0 0.0
  %864 = vmatpush.msra.mxu0 %v58
  %865 = vmatpush.msra.mxu0 %v57
  %866 = vmatpush.msra.mxu0 %v56
  %867 = vmatpush.msra.mxu0 %v55
  %868 = vmatmul.f32.gmra.mxu0 %v829
  %v869 = vpop.f32.mrf.mxu0
  %v870 = vadd.f32 %v202, %v869
  %871 = vdwg.mxu0
  %v872 = vxor.u32 %v870, 2147483648
  %v873 = vmul.f32 %v872, 1.442695
  %v874 = vpow.pop %v873
  %v875 = vadd.f32 %v874, 1.0
  %v876 = vrcp.pop %v875
  %v877 = vmul.f32 %v875, %v876
  %v878 = vsub.f32 1.0, %v877
  %v879 = vmul.f32 %v876, %v878
  %v880 = vadd.f32 %v876, %v879
  %vm881 = vweird.f32 %v875
  %vm882 = vweird.f32 %v876
  %vm883 = vmor %vm881, %vm882
  %v884 = vsel %vm883, %v876, %v880
  %v885 = vand.u32 2147483647, %v875
  %vm886 = vcmp.eq.f32.partialorder %v885, 8.507059e+37
  %v887 = vand.u32 %v875, 2147483648
  %v888 = vor.u32 1.1754944e-38, %v887
  %v889 = vsel %vm886, %v888, %v884
  %v890 = vmul.f32 1.0, %v889
  %v891 = vtanh.pop %v870
  %v892 = vmul.f32 %v890, %v819
  %894 = vrot.lane.b32.xlu0 %v891, 64
  %v895 = vpop.permute.xlu0 %894
  %v897 = vmul.f32 %v890, %v895
  %899 = vrot.lane.b32.xlu0 %v897, 32
  %v900 = vpop.permute.xlu0 %899
  %v902 = vadd.f32 %v892, %v900
  %v903 = vtanh.pop %v902
  %905 = vrot.lane.b32.xlu0 %v903, 64
  %v906 = vpop.permute.xlu0 %905
  %v908 = vmul.f32 %v890, %v906
  %910 = vrot.lane.b32.xlu0 %v908, 32
  %v911 = vpop.permute.xlu0 %910
  %v912 = vsel %vm79, %v911, 0
  %914 = vmatpush.msra.mxu0 0.0
  %915 = vmatpush.msra.mxu0 0.0
  %916 = vmatpush.msra.mxu0 0.0
  %917 = vmatpush.msra.mxu0 0.0
  %918 = vmatpush.msra.mxu0 0.0
  %919 = vmatpush.msra.mxu0 0.0
  %920 = vmatpush.msra.mxu0 0.0
  %921 = vmatpush.msra.mxu0 0.0
  %922 = vmatpush.msra.mxu0 0.0
  %923 = vmatpush.msra.mxu0 0.0
  %924 = vmatpush.msra.mxu0 0.0
  %925 = vmatpush.msra.mxu0 0.0
  %926 = vmatpush.msra.mxu0 %v63
  %927 = vmatpush.msra.mxu0 %v62
  %928 = vmatpush.msra.mxu0 %v61
  %929 = vmatpush.msra.mxu0 %v60
  %930 = vmatmul.f32.gmra.mxu0 %v912
  %v931 = vpop.f32.mrf.mxu0
  %v932 = vadd.f32 %v173, %v931
  %933 = vdwg.mxu0
  %v934 = vadd.f32 %v851, %v932
  %936 = vrot.lane.b32.xlu0 %v934, 112
  %v937 = vpop.permute.xlu0 %936
  %939 = vrot.lane.b32.xlu0 %v523, 64
  %v940 = vpop.permute.xlu0 %939
  %v942 = vsel %vm79, %v937, %v940
  %s943 = scalar_lea.vmem %s0, 8
  %v944 = vld [vmem:[%s943] sm:$0xff]
  %v946 = vsel %vm84, %v942, 0
  %948 = vmatpush.msra.mxu0 0.0
  %949 = vmatpush.msra.mxu0 0.0
  %950 = vmatpush.msra.mxu0 0.0
  %951 = vmatpush.msra.mxu0 0.0
  %952 = vmatpush.msra.mxu0 0.0
  %953 = vmatpush.msra.mxu0 0.0
  %954 = vmatpush.msra.mxu0 0.0
  %955 = vmatpush.msra.mxu0 0.0
  %956 = vmatpush.msra.mxu0 %v72
  %957 = vmatpush.msra.mxu0 %v71
  %958 = vmatpush.msra.mxu0 %v70
  %959 = vmatpush.msra.mxu0 %v69
  %960 = vmatpush.msra.mxu0 %v68
  %961 = vmatpush.msra.mxu0 %v67
  %962 = vmatpush.msra.mxu0 %v66
  %963 = vmatpush.msra.mxu0 %v65
  %964 = vmatmul.f32.gmra.mxu0 %v946
  %v965 = vpop.f32.mrf.mxu0
  %v966 = vadd.f32 0.0, %v965
  %967 = vdwg.mxu0
  %v968 = vadd.f32 %v944, %v966
  %v969 = vxor.u32 %v968, 2147483648
  %v970 = vmul.f32 %v969, 1.442695
  %v971 = vpow.pop %v970
  %v972 = vadd.f32 %v971, 1.0
  %v973 = vrcp.pop %v972
  %v974 = vmul.f32 %v972, %v973
  %v975 = vsub.f32 1.0, %v974
  %v976 = vmul.f32 %v973, %v975
  %v977 = vadd.f32 %v973, %v976
  %vm978 = vweird.f32 %v972
  %vm979 = vweird.f32 %v973
  %vm980 = vmor %vm978, %vm979
  %v981 = vsel %vm980, %v973, %v977
  %v982 = vand.u32 2147483647, %v972
  %vm983 = vcmp.eq.f32.partialorder %v982, 8.507059e+37
  %v984 = vand.u32 %v972, 2147483648
  %v985 = vor.u32 1.1754944e-38, %v984
  %v986 = vsel %vm983, %v985, %v981
  %v987 = vmul.f32 1.0, %v986
  %v988 = vtanh.pop %v968
  %v989 = vmul.f32 %v987, %v517
  %991 = vrot.lane.b32.xlu0 %v988, 64
  %v992 = vpop.permute.xlu0 %991
  %v994 = vmul.f32 %v987, %v992
  %996 = vrot.lane.b32.xlu0 %v994, 32
  %v997 = vpop.permute.xlu0 %996
  %v999 = vadd.f32 %v989, %v997
  %v1000 = vtanh.pop %v999
  %1002 = vrot.lane.b32.xlu0 %v1000, 64
  %v1003 = vpop.permute.xlu0 %1002
  %v1005 = vmul.f32 %v987, %v1003
  %1007 = vrot.lane.b32.xlu0 %v1005, 32
  %v1008 = vpop.permute.xlu0 %1007
  %v1009 = vsel %vm79, %v1008, 0
  %1011 = vmatpush.msra.mxu0 0.0
  %1012 = vmatpush.msra.mxu0 0.0
  %1013 = vmatpush.msra.mxu0 0.0
  %1014 = vmatpush.msra.mxu0 0.0
  %1015 = vmatpush.msra.mxu0 0.0
  %1016 = vmatpush.msra.mxu0 0.0
  %1017 = vmatpush.msra.mxu0 0.0
  %1018 = vmatpush.msra.mxu0 0.0
  %1019 = vmatpush.msra.mxu0 0.0
  %1020 = vmatpush.msra.mxu0 0.0
  %1021 = vmatpush.msra.mxu0 0.0
  %1022 = vmatpush.msra.mxu0 0.0
  %1023 = vmatpush.msra.mxu0 %v63
  %1024 = vmatpush.msra.mxu0 %v62
  %1025 = vmatpush.msra.mxu0 %v61
  %1026 = vmatpush.msra.mxu0 %v60
  %1027 = vmatmul.f32.gmra.mxu0 %v1009
  %v1028 = vpop.f32.mrf.mxu0
  %v1029 = vadd.f32 %v173, %v1028
  %1030 = vdwg.mxu0
  %1032 = vrot.lane.b32.xlu0 %v683, 16
  %v1033 = vpop.permute.xlu0 %1032
  %1036 = vrot.lane.b32.xlu0 %v766, 32
  %v1037 = vpop.permute.xlu0 %1036
  %1040 = vrot.lane.b32.xlu0 %v849, 48
  %v1041 = vpop.permute.xlu0 %1040
  %1044 = vrot.lane.b32.xlu0 %v932, 64
  %v1045 = vpop.permute.xlu0 %1044
  %v1047 = vsel %vm565, %v1029, %v1033
  %v1048 = vsel %vm79, %v1047, %v1037
  %v1049 = vsel %vm568, %v1048, %v1041
  %v1050 = vsel %vm84, %v1049, %v1045
  %v1051 = vsel %vm571, %v1050, 0.0
  %s1052 = scalar_lea.vmem %s12, 8
  %1053 = vst [vmem:[%s1052] sm:$0xff] %v1051
  %v1055 = vsel %vm79, %v1008, %v999
  %v1057 = vsel %vm84, %v1055, 0
  %1059 = vmatpush.msra.mxu0 0.0
  %1060 = vmatpush.msra.mxu0 0.0
  %1061 = vmatpush.msra.mxu0 0.0
  %1062 = vmatpush.msra.mxu0 0.0
  %1063 = vmatpush.msra.mxu0 0.0
  %1064 = vmatpush.msra.mxu0 0.0
  %1065 = vmatpush.msra.mxu0 0.0
  %1066 = vmatpush.msra.mxu0 0.0
  %1067 = vmatpush.msra.mxu0 %v48
  %1068 = vmatpush.msra.mxu0 %v47
  %1069 = vmatpush.msra.mxu0 %v46
  %1070 = vmatpush.msra.mxu0 %v45
  %1071 = vmatpush.msra.mxu0 %v44
  %1072 = vmatpush.msra.mxu0 %v43
  %1073 = vmatpush.msra.mxu0 %v42
  %1074 = vmatpush.msra.mxu0 %v41
  %1075 = vmatmul.f32.gmra.mxu0 %v1057
  %v1076 = vpop.f32.mrf.mxu0
  %v1077 = vadd.f32 %v82, %v1076
  %1078 = vdwg.mxu0
  %v1079 = vmax.f32 %v1077, 0.0
  %v1081 = vsel %vm79, %v1079, 0
  %1083 = vmatpush.msra.mxu0 0.0
  %1084 = vmatpush.msra.mxu0 0.0
  %1085 = vmatpush.msra.mxu0 0.0
  %1086 = vmatpush.msra.mxu0 0.0
  %1087 = vmatpush.msra.mxu0 0.0
  %1088 = vmatpush.msra.mxu0 0.0
  %1089 = vmatpush.msra.mxu0 0.0
  %1090 = vmatpush.msra.mxu0 0.0
  %1091 = vmatpush.msra.mxu0 0.0
  %1092 = vmatpush.msra.mxu0 0.0
  %1093 = vmatpush.msra.mxu0 0.0
  %1094 = vmatpush.msra.mxu0 0.0
  %1095 = vmatpush.msra.mxu0 %v53
  %1096 = vmatpush.msra.mxu0 %v52
  %1097 = vmatpush.msra.mxu0 %v51
  %1098 = vmatpush.msra.mxu0 %v50
  %1099 = vmatmul.f32.gmra.mxu0 %v1081
  %v1100 = vpop.f32.mrf.mxu0
  %v1101 = vadd.f32 %v110, %v1100
  %1102 = vdwg.mxu0
  %v1103 = vxor.u32 %v1101, 2147483648
  %v1104 = vmul.f32 %v1103, 1.442695
  %v1105 = vpow.pop %v1104
  %v1106 = vadd.f32 %v1105, 1.0
  %v1107 = vrcp.pop %v1106
  %v1108 = vmul.f32 %v1106, %v1107
  %v1109 = vsub.f32 1.0, %v1108
  %v1110 = vmul.f32 %v1107, %v1109
  %v1111 = vadd.f32 %v1107, %v1110
  %vm1112 = vweird.f32 %v1106
  %vm1113 = vweird.f32 %v1107
  %vm1114 = vmor %vm1112, %vm1113
  %v1115 = vsel %vm1114, %v1107, %v1111
  %v1116 = vand.u32 2147483647, %v1106
  %vm1117 = vcmp.eq.f32.partialorder %v1116, 8.507059e+37
  %v1118 = vand.u32 %v1106, 2147483648
  %v1119 = vor.u32 1.1754944e-38, %v1118
  %v1120 = vsel %vm1117, %v1119, %v1115
  %v1121 = vmul.f32 1.0, %v1120
  %v1122 = vtanh.pop %v1101
  %v1123 = vmul.f32 %v1121, %v1079
  %1125 = vrot.lane.b32.xlu0 %v1122, 64
  %v1126 = vpop.permute.xlu0 %1125
  %v1128 = vmul.f32 %v1121, %v1126
  %1130 = vrot.lane.b32.xlu0 %v1128, 32
  %v1131 = vpop.permute.xlu0 %1130
  %v1133 = vadd.f32 %v1123, %v1131
  %v1134 = vtanh.pop %v1133
  %1136 = vrot.lane.b32.xlu0 %v1134, 64
  %v1137 = vpop.permute.xlu0 %1136
  %v1139 = vmul.f32 %v1121, %v1137
  %1141 = vrot.lane.b32.xlu0 %v1139, 32
  %v1142 = vpop.permute.xlu0 %1141
  %v1143 = vsel %vm79, %v1142, 0
  %1145 = vmatpush.msra.mxu0 0.0
  %1146 = vmatpush.msra.mxu0 0.0
  %1147 = vmatpush.msra.mxu0 0.0
  %1148 = vmatpush.msra.mxu0 0.0
  %1149 = vmatpush.msra.mxu0 0.0
  %1150 = vmatpush.msra.mxu0 0.0
  %1151 = vmatpush.msra.mxu0 0.0
  %1152 = vmatpush.msra.mxu0 0.0
  %1153 = vmatpush.msra.mxu0 0.0
  %1154 = vmatpush.msra.mxu0 0.0
  %1155 = vmatpush.msra.mxu0 0.0
  %1156 = vmatpush.msra.mxu0 0.0
  %1157 = vmatpush.msra.mxu0 %v63
  %1158 = vmatpush.msra.mxu0 %v62
  %1159 = vmatpush.msra.mxu0 %v61
  %1160 = vmatpush.msra.mxu0 %v60
  %1161 = vmatmul.f32.gmra.mxu0 %v1143
  %v1162 = vpop.f32.mrf.mxu0
  %v1163 = vadd.f32 %v173, %v1162
  %1164 = vdwg.mxu0
  %v1165 = vadd.f32 %v1163, 0.0
  %1166 = vmatpush.msra.mxu0 0.0
  %1167 = vmatpush.msra.mxu0 0.0
  %1168 = vmatpush.msra.mxu0 0.0
  %1169 = vmatpush.msra.mxu0 0.0
  %1170 = vmatpush.msra.mxu0 0.0
  %1171 = vmatpush.msra.mxu0 0.0
  %1172 = vmatpush.msra.mxu0 0.0
  %1173 = vmatpush.msra.mxu0 0.0
  %1174 = vmatpush.msra.mxu0 0.0
  %1175 = vmatpush.msra.mxu0 0.0
  %1176 = vmatpush.msra.mxu0 0.0
  %1177 = vmatpush.msra.mxu0 0.0
  %1178 = vmatpush.msra.mxu0 %v58
  %1179 = vmatpush.msra.mxu0 %v57
  %1180 = vmatpush.msra.mxu0 %v56
  %1181 = vmatpush.msra.mxu0 %v55
  %1182 = vmatmul.f32.gmra.mxu0 %v1143
  %v1183 = vpop.f32.mrf.mxu0
  %v1184 = vadd.f32 %v202, %v1183
  %1185 = vdwg.mxu0
  %v1186 = vxor.u32 %v1184, 2147483648
  %v1187 = vmul.f32 %v1186, 1.442695
  %v1188 = vpow.pop %v1187
  %v1189 = vadd.f32 %v1188, 1.0
  %v1190 = vrcp.pop %v1189
  %v1191 = vmul.f32 %v1189, %v1190
  %v1192 = vsub.f32 1.0, %v1191
  %v1193 = vmul.f32 %v1190, %v1192
  %v1194 = vadd.f32 %v1190, %v1193
  %vm1195 = vweird.f32 %v1189
  %vm1196 = vweird.f32 %v1190
  %vm1197 = vmor %vm1195, %vm1196
  %v1198 = vsel %vm1197, %v1190, %v1194
  %v1199 = vand.u32 2147483647, %v1189
  %vm1200 = vcmp.eq.f32.partialorder %v1199, 8.507059e+37
  %v1201 = vand.u32 %v1189, 2147483648
  %v1202 = vor.u32 1.1754944e-38, %v1201
  %v1203 = vsel %vm1200, %v1202, %v1198
  %v1204 = vmul.f32 1.0, %v1203
  %v1205 = vtanh.pop %v1184
  %v1206 = vmul.f32 %v1204, %v1133
  %1208 = vrot.lane.b32.xlu0 %v1205, 64
  %v1209 = vpop.permute.xlu0 %1208
  %v1211 = vmul.f32 %v1204, %v1209
  %1213 = vrot.lane.b32.xlu0 %v1211, 32
  %v1214 = vpop.permute.xlu0 %1213
  %v1216 = vadd.f32 %v1206, %v1214
  %v1217 = vtanh.pop %v1216
  %1219 = vrot.lane.b32.xlu0 %v1217, 64
  %v1220 = vpop.permute.xlu0 %1219
  %v1222 = vmul.f32 %v1204, %v1220
  %1224 = vrot.lane.b32.xlu0 %v1222, 32
  %v1225 = vpop.permute.xlu0 %1224
  %v1226 = vsel %vm79, %v1225, 0
  %1228 = vmatpush.msra.mxu0 0.0
  %1229 = vmatpush.msra.mxu0 0.0
  %1230 = vmatpush.msra.mxu0 0.0
  %1231 = vmatpush.msra.mxu0 0.0
  %1232 = vmatpush.msra.mxu0 0.0
  %1233 = vmatpush.msra.mxu0 0.0
  %1234 = vmatpush.msra.mxu0 0.0
  %1235 = vmatpush.msra.mxu0 0.0
  %1236 = vmatpush.msra.mxu0 0.0
  %1237 = vmatpush.msra.mxu0 0.0
  %1238 = vmatpush.msra.mxu0 0.0
  %1239 = vmatpush.msra.mxu0 0.0
  %1240 = vmatpush.msra.mxu0 %v63
  %1241 = vmatpush.msra.mxu0 %v62
  %1242 = vmatpush.msra.mxu0 %v61
  %1243 = vmatpush.msra.mxu0 %v60
  %1244 = vmatmul.f32.gmra.mxu0 %v1226
  %v1245 = vpop.f32.mrf.mxu0
  %v1246 = vadd.f32 %v173, %v1245
  %1247 = vdwg.mxu0
  %v1248 = vadd.f32 %v1165, %v1246
  %1249 = vmatpush.msra.mxu0 0.0
  %1250 = vmatpush.msra.mxu0 0.0
  %1251 = vmatpush.msra.mxu0 0.0
  %1252 = vmatpush.msra.mxu0 0.0
  %1253 = vmatpush.msra.mxu0 0.0
  %1254 = vmatpush.msra.mxu0 0.0
  %1255 = vmatpush.msra.mxu0 0.0
  %1256 = vmatpush.msra.mxu0 0.0
  %1257 = vmatpush.msra.mxu0 0.0
  %1258 = vmatpush.msra.mxu0 0.0
  %1259 = vmatpush.msra.mxu0 0.0
  %1260 = vmatpush.msra.mxu0 0.0
  %1261 = vmatpush.msra.mxu0 %v58
  %1262 = vmatpush.msra.mxu0 %v57
  %1263 = vmatpush.msra.mxu0 %v56
  %1264 = vmatpush.msra.mxu0 %v55
  %1265 = vmatmul.f32.gmra.mxu0 %v1226
  %v1266 = vpop.f32.mrf.mxu0
  %v1267 = vadd.f32 %v202, %v1266
  %1268 = vdwg.mxu0
  %v1269 = vxor.u32 %v1267, 2147483648
  %v1270 = vmul.f32 %v1269, 1.442695
  %v1271 = vpow.pop %v1270
  %v1272 = vadd.f32 %v1271, 1.0
  %v1273 = vrcp.pop %v1272
  %v1274 = vmul.f32 %v1272, %v1273
  %v1275 = vsub.f32 1.0, %v1274
  %v1276 = vmul.f32 %v1273, %v1275
  %v1277 = vadd.f32 %v1273, %v1276
  %vm1278 = vweird.f32 %v1272
  %vm1279 = vweird.f32 %v1273
  %vm1280 = vmor %vm1278, %vm1279
  %v1281 = vsel %vm1280, %v1273, %v1277
  %v1282 = vand.u32 2147483647, %v1272
  %vm1283 = vcmp.eq.f32.partialorder %v1282, 8.507059e+37
  %v1284 = vand.u32 %v1272, 2147483648
  %v1285 = vor.u32 1.1754944e-38, %v1284
  %v1286 = vsel %vm1283, %v1285, %v1281
  %v1287 = vmul.f32 1.0, %v1286
  %v1288 = vtanh.pop %v1267
  %v1289 = vmul.f32 %v1287, %v1216
  %1291 = vrot.lane.b32.xlu0 %v1288, 64
  %v1292 = vpop.permute.xlu0 %1291
  %v1294 = vmul.f32 %v1287, %v1292
  %1296 = vrot.lane.b32.xlu0 %v1294, 32
  %v1297 = vpop.permute.xlu0 %1296
  %v1299 = vadd.f32 %v1289, %v1297
  %v1300 = vtanh.pop %v1299
  %1302 = vrot.lane.b32.xlu0 %v1300, 64
  %v1303 = vpop.permute.xlu0 %1302
  %v1305 = vmul.f32 %v1287, %v1303
  %1307 = vrot.lane.b32.xlu0 %v1305, 32
  %v1308 = vpop.permute.xlu0 %1307
  %v1309 = vsel %vm79, %v1308, 0
  %1311 = vmatpush.msra.mxu0 0.0
  %1312 = vmatpush.msra.mxu0 0.0
  %1313 = vmatpush.msra.mxu0 0.0
  %1314 = vmatpush.msra.mxu0 0.0
  %1315 = vmatpush.msra.mxu0 0.0
  %1316 = vmatpush.msra.mxu0 0.0
  %1317 = vmatpush.msra.mxu0 0.0
  %1318 = vmatpush.msra.mxu0 0.0
  %1319 = vmatpush.msra.mxu0 0.0
  %1320 = vmatpush.msra.mxu0 0.0
  %1321 = vmatpush.msra.mxu0 0.0
  %1322 = vmatpush.msra.mxu0 0.0
  %1323 = vmatpush.msra.mxu0 %v63
  %1324 = vmatpush.msra.mxu0 %v62
  %1325 = vmatpush.msra.mxu0 %v61
  %1326 = vmatpush.msra.mxu0 %v60
  %1327 = vmatmul.f32.gmra.mxu0 %v1309
  %v1328 = vpop.f32.mrf.mxu0
  %v1329 = vadd.f32 %v173, %v1328
  %1330 = vdwg.mxu0
  %v1331 = vadd.f32 %v1248, %v1329
  %1332 = vmatpush.msra.mxu0 0.0
  %1333 = vmatpush.msra.mxu0 0.0
  %1334 = vmatpush.msra.mxu0 0.0
  %1335 = vmatpush.msra.mxu0 0.0
  %1336 = vmatpush.msra.mxu0 0.0
  %1337 = vmatpush.msra.mxu0 0.0
  %1338 = vmatpush.msra.mxu0 0.0
  %1339 = vmatpush.msra.mxu0 0.0
  %1340 = vmatpush.msra.mxu0 0.0
  %1341 = vmatpush.msra.mxu0 0.0
  %1342 = vmatpush.msra.mxu0 0.0
  %1343 = vmatpush.msra.mxu0 0.0
  %1344 = vmatpush.msra.mxu0 %v58
  %1345 = vmatpush.msra.mxu0 %v57
  %1346 = vmatpush.msra.mxu0 %v56
  %1347 = vmatpush.msra.mxu0 %v55
  %1348 = vmatmul.f32.gmra.mxu0 %v1309
  %v1349 = vpop.f32.mrf.mxu0
  %v1350 = vadd.f32 %v202, %v1349
  %1351 = vdwg.mxu0
  %v1352 = vxor.u32 %v1350, 2147483648
  %v1353 = vmul.f32 %v1352, 1.442695
  %v1354 = vpow.pop %v1353
  %v1355 = vadd.f32 %v1354, 1.0
  %v1356 = vrcp.pop %v1355
  %v1357 = vmul.f32 %v1355, %v1356
  %v1358 = vsub.f32 1.0, %v1357
  %v1359 = vmul.f32 %v1356, %v1358
  %v1360 = vadd.f32 %v1356, %v1359
  %vm1361 = vweird.f32 %v1355
  %vm1362 = vweird.f32 %v1356
  %vm1363 = vmor %vm1361, %vm1362
  %v1364 = vsel %vm1363, %v1356, %v1360
  %v1365 = vand.u32 2147483647, %v1355
  %vm1366 = vcmp.eq.f32.partialorder %v1365, 8.507059e+37
  %v1367 = vand.u32 %v1355, 2147483648
  %v1368 = vor.u32 1.1754944e-38, %v1367
  %v1369 = vsel %vm1366, %v1368, %v1364
  %v1370 = vmul.f32 1.0, %v1369
  %v1371 = vtanh.pop %v1350
  %v1372 = vmul.f32 %v1370, %v1299
  %1374 = vrot.lane.b32.xlu0 %v1371, 64
  %v1375 = vpop.permute.xlu0 %1374
  %v1377 = vmul.f32 %v1370, %v1375
  %1379 = vrot.lane.b32.xlu0 %v1377, 32
  %v1380 = vpop.permute.xlu0 %1379
  %v1382 = vadd.f32 %v1372, %v1380
  %v1383 = vtanh.pop %v1382
  %1385 = vrot.lane.b32.xlu0 %v1383, 64
  %v1386 = vpop.permute.xlu0 %1385
  %v1388 = vmul.f32 %v1370, %v1386
  %1390 = vrot.lane.b32.xlu0 %v1388, 32
  %v1391 = vpop.permute.xlu0 %1390
  %v1392 = vsel %vm79, %v1391, 0
  %1394 = vmatpush.msra.mxu0 0.0
  %1395 = vmatpush.msra.mxu0 0.0
  %1396 = vmatpush.msra.mxu0 0.0
  %1397 = vmatpush.msra.mxu0 0.0
  %1398 = vmatpush.msra.mxu0 0.0
  %1399 = vmatpush.msra.mxu0 0.0
  %1400 = vmatpush.msra.mxu0 0.0
  %1401 = vmatpush.msra.mxu0 0.0
  %1402 = vmatpush.msra.mxu0 0.0
  %1403 = vmatpush.msra.mxu0 0.0
  %1404 = vmatpush.msra.mxu0 0.0
  %1405 = vmatpush.msra.mxu0 0.0
  %1406 = vmatpush.msra.mxu0 %v63
  %1407 = vmatpush.msra.mxu0 %v62
  %1408 = vmatpush.msra.mxu0 %v61
  %1409 = vmatpush.msra.mxu0 %v60
  %1410 = vmatmul.f32.gmra.mxu0 %v1392
  %v1411 = vpop.f32.mrf.mxu0
  %v1412 = vadd.f32 %v173, %v1411
  %1413 = vdwg.mxu0
  %v1414 = vadd.f32 %v1331, %v1412
  %1416 = vrot.lane.b32.xlu0 %v1414, 112
  %v1417 = vpop.permute.xlu0 %1416
  %1419 = vrot.lane.b32.xlu0 %v1005, 64
  %v1420 = vpop.permute.xlu0 %1419
  %v1422 = vsel %vm79, %v1417, %v1420
  %s1423 = scalar_lea.vmem %s0, 16
  %v1424 = vld [vmem:[%s1423] sm:$0xff]
  %v1426 = vsel %vm84, %v1422, 0
  %1428 = vmatpush.msra.mxu0 0.0
  %1429 = vmatpush.msra.mxu0 0.0
  %1430 = vmatpush.msra.mxu0 0.0
  %1431 = vmatpush.msra.mxu0 0.0
  %1432 = vmatpush.msra.mxu0 0.0
  %1433 = vmatpush.msra.mxu0 0.0
  %1434 = vmatpush.msra.mxu0 0.0
  %1435 = vmatpush.msra.mxu0 0.0
  %1436 = vmatpush.msra.mxu0 %v72
  %1437 = vmatpush.msra.mxu0 %v71
  %1438 = vmatpush.msra.mxu0 %v70
  %1439 = vmatpush.msra.mxu0 %v69
  %1440 = vmatpush.msra.mxu0 %v68
  %1441 = vmatpush.msra.mxu0 %v67
  %1442 = vmatpush.msra.mxu0 %v66
  %1443 = vmatpush.msra.mxu0 %v65
  %1444 = vmatmul.f32.gmra.mxu0 %v1426
  %v1445 = vpop.f32.mrf.mxu0
  %v1446 = vadd.f32 0.0, %v1445
  %1447 = vdwg.mxu0
  %v1448 = vadd.f32 %v1424, %v1446
  %v1449 = vxor.u32 %v1448, 2147483648
  %v1450 = vmul.f32 %v1449, 1.442695
  %v1451 = vpow.pop %v1450
  %v1452 = vadd.f32 %v1451, 1.0
  %v1453 = vrcp.pop %v1452
  %v1454 = vmul.f32 %v1452, %v1453
  %v1455 = vsub.f32 1.0, %v1454
  %v1456 = vmul.f32 %v1453, %v1455
  %v1457 = vadd.f32 %v1453, %v1456
  %vm1458 = vweird.f32 %v1452
  %vm1459 = vweird.f32 %v1453
  %vm1460 = vmor %vm1458, %vm1459
  %v1461 = vsel %vm1460, %v1453, %v1457
  %v1462 = vand.u32 2147483647, %v1452
  %vm1463 = vcmp.eq.f32.partialorder %v1462, 8.507059e+37
  %v1464 = vand.u32 %v1452, 2147483648
  %v1465 = vor.u32 1.1754944e-38, %v1464
  %v1466 = vsel %vm1463, %v1465, %v1461
  %v1467 = vmul.f32 1.0, %v1466
  %v1468 = vtanh.pop %v1448
  %v1469 = vmul.f32 %v1467, %v999
  %1471 = vrot.lane.b32.xlu0 %v1468, 64
  %v1472 = vpop.permute.xlu0 %1471
  %v1474 = vmul.f32 %v1467, %v1472
  %1476 = vrot.lane.b32.xlu0 %v1474, 32
  %v1477 = vpop.permute.xlu0 %1476
  %v1479 = vadd.f32 %v1469, %v1477
  %v1480 = vtanh.pop %v1479
  %1482 = vrot.lane.b32.xlu0 %v1480, 64
  %v1483 = vpop.permute.xlu0 %1482
  %v1485 = vmul.f32 %v1467, %v1483
  %1487 = vrot.lane.b32.xlu0 %v1485, 32
  %v1488 = vpop.permute.xlu0 %1487
  %v1489 = vsel %vm79, %v1488, 0
  %1491 = vmatpush.msra.mxu0 0.0
  %1492 = vmatpush.msra.mxu0 0.0
  %1493 = vmatpush.msra.mxu0 0.0
  %1494 = vmatpush.msra.mxu0 0.0
  %1495 = vmatpush.msra.mxu0 0.0
  %1496 = vmatpush.msra.mxu0 0.0
  %1497 = vmatpush.msra.mxu0 0.0
  %1498 = vmatpush.msra.mxu0 0.0
  %1499 = vmatpush.msra.mxu0 0.0
  %1500 = vmatpush.msra.mxu0 0.0
  %1501 = vmatpush.msra.mxu0 0.0
  %1502 = vmatpush.msra.mxu0 0.0
  %1503 = vmatpush.msra.mxu0 %v63
  %1504 = vmatpush.msra.mxu0 %v62
  %1505 = vmatpush.msra.mxu0 %v61
  %1506 = vmatpush.msra.mxu0 %v60
  %1507 = vmatmul.f32.gmra.mxu0 %v1489
  %v1508 = vpop.f32.mrf.mxu0
  %v1509 = vadd.f32 %v173, %v1508
  %1510 = vdwg.mxu0
  %1512 = vrot.lane.b32.xlu0 %v1163, 16
  %v1513 = vpop.permute.xlu0 %1512
  %1516 = vrot.lane.b32.xlu0 %v1246, 32
  %v1517 = vpop.permute.xlu0 %1516
  %1520 = vrot.lane.b32.xlu0 %v1329, 48
  %v1521 = vpop.permute.xlu0 %1520
  %1524 = vrot.lane.b32.xlu0 %v1412, 64
  %v1525 = vpop.permute.xlu0 %1524
  %v1527 = vsel %vm565, %v1509, %v1513
  %v1528 = vsel %vm79, %v1527, %v1517
  %v1529 = vsel %vm568, %v1528, %v1521
  %v1530 = vsel %vm84, %v1529, %v1525
  %v1531 = vsel %vm571, %v1530, 0.0
  %s1532 = scalar_lea.vmem %s12, 16
  %1533 = vst [vmem:[%s1532] sm:$0xff] %v1531
  %v1535 = vsel %vm79, %v1488, %v1479
  %v1537 = vsel %vm84, %v1535, 0
  %1539 = vmatpush.msra.mxu0 0.0
  %1540 = vmatpush.msra.mxu0 0.0
  %1541 = vmatpush.msra.mxu0 0.0
  %1542 = vmatpush.msra.mxu0 0.0
  %1543 = vmatpush.msra.mxu0 0.0
  %1544 = vmatpush.msra.mxu0 0.0
  %1545 = vmatpush.msra.mxu0 0.0
  %1546 = vmatpush.msra.mxu0 0.0
  %1547 = vmatpush.msra.mxu0 %v48
  %1548 = vmatpush.msra.mxu0 %v47
  %1549 = vmatpush.msra.mxu0 %v46
  %1550 = vmatpush.msra.mxu0 %v45
  %1551 = vmatpush.msra.mxu0 %v44
  %1552 = vmatpush.msra.mxu0 %v43
  %1553 = vmatpush.msra.mxu0 %v42
  %1554 = vmatpush.msra.mxu0 %v41
  %1555 = vmatmul.f32.gmra.mxu0 %v1537
  %v1556 = vpop.f32.mrf.mxu0
  %v1557 = vadd.f32 %v82, %v1556
  %1558 = vdwg.mxu0
  %v1559 = vmax.f32 %v1557, 0.0
  %v1561 = vsel %vm79, %v1559, 0
  %1563 = vmatpush.msra.mxu0 0.0
  %1564 = vmatpush.msra.mxu0 0.0
  %1565 = vmatpush.msra.mxu0 0.0
  %1566 = vmatpush.msra.mxu0 0.0
  %1567 = vmatpush.msra.mxu0 0.0
  %1568 = vmatpush.msra.mxu0 0.0
  %1569 = vmatpush.msra.mxu0 0.0
  %1570 = vmatpush.msra.mxu0 0.0
  %1571 = vmatpush.msra.mxu0 0.0
  %1572 = vmatpush.msra.mxu0 0.0
  %1573 = vmatpush.msra.mxu0 0.0
  %1574 = vmatpush.msra.mxu0 0.0
  %1575 = vmatpush.msra.mxu0 %v53
  %1576 = vmatpush.msra.mxu0 %v52
  %1577 = vmatpush.msra.mxu0 %v51
  %1578 = vmatpush.msra.mxu0 %v50
  %1579 = vmatmul.f32.gmra.mxu0 %v1561
  %v1580 = vpop.f32.mrf.mxu0
  %v1581 = vadd.f32 %v110, %v1580
  %1582 = vdwg.mxu0
  %v1583 = vxor.u32 %v1581, 2147483648
  %v1584 = vmul.f32 %v1583, 1.442695
  %v1585 = vpow.pop %v1584
  %v1586 = vadd.f32 %v1585, 1.0
  %v1587 = vrcp.pop %v1586
  %v1588 = vmul.f32 %v1586, %v1587
  %v1589 = vsub.f32 1.0, %v1588
  %v1590 = vmul.f32 %v1587, %v1589
  %v1591 = vadd.f32 %v1587, %v1590
  %vm1592 = vweird.f32 %v1586
  %vm1593 = vweird.f32 %v1587
  %vm1594 = vmor %vm1592, %vm1593
  %v1595 = vsel %vm1594, %v1587, %v1591
  %v1596 = vand.u32 2147483647, %v1586
  %vm1597 = vcmp.eq.f32.partialorder %v1596, 8.507059e+37
  %v1598 = vand.u32 %v1586, 2147483648
  %v1599 = vor.u32 1.1754944e-38, %v1598
  %v1600 = vsel %vm1597, %v1599, %v1595
  %v1601 = vmul.f32 1.0, %v1600
  %v1602 = vtanh.pop %v1581
  %v1603 = vmul.f32 %v1601, %v1559
  %1605 = vrot.lane.b32.xlu0 %v1602, 64
  %v1606 = vpop.permute.xlu0 %1605
  %v1608 = vmul.f32 %v1601, %v1606
  %1610 = vrot.lane.b32.xlu0 %v1608, 32
  %v1611 = vpop.permute.xlu0 %1610
  %v1613 = vadd.f32 %v1603, %v1611
  %v1614 = vtanh.pop %v1613
  %1616 = vrot.lane.b32.xlu0 %v1614, 64
  %v1617 = vpop.permute.xlu0 %1616
  %v1619 = vmul.f32 %v1601, %v1617
  %1621 = vrot.lane.b32.xlu0 %v1619, 32
  %v1622 = vpop.permute.xlu0 %1621
  %v1623 = vsel %vm79, %v1622, 0
  %1625 = vmatpush.msra.mxu0 0.0
  %1626 = vmatpush.msra.mxu0 0.0
  %1627 = vmatpush.msra.mxu0 0.0
  %1628 = vmatpush.msra.mxu0 0.0
  %1629 = vmatpush.msra.mxu0 0.0
  %1630 = vmatpush.msra.mxu0 0.0
  %1631 = vmatpush.msra.mxu0 0.0
  %1632 = vmatpush.msra.mxu0 0.0
  %1633 = vmatpush.msra.mxu0 0.0
  %1634 = vmatpush.msra.mxu0 0.0
  %1635 = vmatpush.msra.mxu0 0.0
  %1636 = vmatpush.msra.mxu0 0.0
  %1637 = vmatpush.msra.mxu0 %v63
  %1638 = vmatpush.msra.mxu0 %v62
  %1639 = vmatpush.msra.mxu0 %v61
  %1640 = vmatpush.msra.mxu0 %v60
  %1641 = vmatmul.f32.gmra.mxu0 %v1623
  %v1642 = vpop.f32.mrf.mxu0
  %v1643 = vadd.f32 %v173, %v1642
  %1644 = vdwg.mxu0
  %v1645 = vadd.f32 %v1643, 0.0
  %1646 = vmatpush.msra.mxu0 0.0
  %1647 = vmatpush.msra.mxu0 0.0
  %1648 = vmatpush.msra.mxu0 0.0
  %1649 = vmatpush.msra.mxu0 0.0
  %1650 = vmatpush.msra.mxu0 0.0
  %1651 = vmatpush.msra.mxu0 0.0
  %1652 = vmatpush.msra.mxu0 0.0
  %1653 = vmatpush.msra.mxu0 0.0
  %1654 = vmatpush.msra.mxu0 0.0
  %1655 = vmatpush.msra.mxu0 0.0
  %1656 = vmatpush.msra.mxu0 0.0
  %1657 = vmatpush.msra.mxu0 0.0
  %1658 = vmatpush.msra.mxu0 %v58
  %1659 = vmatpush.msra.mxu0 %v57
  %1660 = vmatpush.msra.mxu0 %v56
  %1661 = vmatpush.msra.mxu0 %v55
  %1662 = vmatmul.f32.gmra.mxu0 %v1623
  %v1663 = vpop.f32.mrf.mxu0
  %v1664 = vadd.f32 %v202, %v1663
  %1665 = vdwg.mxu0
  %v1666 = vxor.u32 %v1664, 2147483648
  %v1667 = vmul.f32 %v1666, 1.442695
  %v1668 = vpow.pop %v1667
  %v1669 = vadd.f32 %v1668, 1.0
  %v1670 = vrcp.pop %v1669
  %v1671 = vmul.f32 %v1669, %v1670
  %v1672 = vsub.f32 1.0, %v1671
  %v1673 = vmul.f32 %v1670, %v1672
  %v1674 = vadd.f32 %v1670, %v1673
  %vm1675 = vweird.f32 %v1669
  %vm1676 = vweird.f32 %v1670
  %vm1677 = vmor %vm1675, %vm1676
  %v1678 = vsel %vm1677, %v1670, %v1674
  %v1679 = vand.u32 2147483647, %v1669
  %vm1680 = vcmp.eq.f32.partialorder %v1679, 8.507059e+37
  %v1681 = vand.u32 %v1669, 2147483648
  %v1682 = vor.u32 1.1754944e-38, %v1681
  %v1683 = vsel %vm1680, %v1682, %v1678
  %v1684 = vmul.f32 1.0, %v1683
  %v1685 = vtanh.pop %v1664
  %v1686 = vmul.f32 %v1684, %v1613
  %1688 = vrot.lane.b32.xlu0 %v1685, 64
  %v1689 = vpop.permute.xlu0 %1688
  %v1691 = vmul.f32 %v1684, %v1689
  %1693 = vrot.lane.b32.xlu0 %v1691, 32
  %v1694 = vpop.permute.xlu0 %1693
  %v1696 = vadd.f32 %v1686, %v1694
  %v1697 = vtanh.pop %v1696
  %1699 = vrot.lane.b32.xlu0 %v1697, 64
  %v1700 = vpop.permute.xlu0 %1699
  %v1702 = vmul.f32 %v1684, %v1700
  %1704 = vrot.lane.b32.xlu0 %v1702, 32
  %v1705 = vpop.permute.xlu0 %1704
  %v1706 = vsel %vm79, %v1705, 0
  %1708 = vmatpush.msra.mxu0 0.0
  %1709 = vmatpush.msra.mxu0 0.0
  %1710 = vmatpush.msra.mxu0 0.0
  %1711 = vmatpush.msra.mxu0 0.0
  %1712 = vmatpush.msra.mxu0 0.0
  %1713 = vmatpush.msra.mxu0 0.0
  %1714 = vmatpush.msra.mxu0 0.0
  %1715 = vmatpush.msra.mxu0 0.0
  %1716 = vmatpush.msra.mxu0 0.0
  %1717 = vmatpush.msra.mxu0 0.0
  %1718 = vmatpush.msra.mxu0 0.0
  %1719 = vmatpush.msra.mxu0 0.0
  %1720 = vmatpush.msra.mxu0 %v63
  %1721 = vmatpush.msra.mxu0 %v62
  %1722 = vmatpush.msra.mxu0 %v61
  %1723 = vmatpush.msra.mxu0 %v60
  %1724 = vmatmul.f32.gmra.mxu0 %v1706
  %v1725 = vpop.f32.mrf.mxu0
  %v1726 = vadd.f32 %v173, %v1725
  %1727 = vdwg.mxu0
  %v1728 = vadd.f32 %v1645, %v1726
  %1729 = vmatpush.msra.mxu0 0.0
  %1730 = vmatpush.msra.mxu0 0.0
  %1731 = vmatpush.msra.mxu0 0.0
  %1732 = vmatpush.msra.mxu0 0.0
  %1733 = vmatpush.msra.mxu0 0.0
  %1734 = vmatpush.msra.mxu0 0.0
  %1735 = vmatpush.msra.mxu0 0.0
  %1736 = vmatpush.msra.mxu0 0.0
  %1737 = vmatpush.msra.mxu0 0.0
  %1738 = vmatpush.msra.mxu0 0.0
  %1739 = vmatpush.msra.mxu0 0.0
  %1740 = vmatpush.msra.mxu0 0.0
  %1741 = vmatpush.msra.mxu0 %v58
  %1742 = vmatpush.msra.mxu0 %v57
  %1743 = vmatpush.msra.mxu0 %v56
  %1744 = vmatpush.msra.mxu0 %v55
  %1745 = vmatmul.f32.gmra.mxu0 %v1706
  %v1746 = vpop.f32.mrf.mxu0
  %v1747 = vadd.f32 %v202, %v1746
  %1748 = vdwg.mxu0
  %v1749 = vxor.u32 %v1747, 2147483648
  %v1750 = vmul.f32 %v1749, 1.442695
  %v1751 = vpow.pop %v1750
  %v1752 = vadd.f32 %v1751, 1.0
  %v1753 = vrcp.pop %v1752
  %v1754 = vmul.f32 %v1752, %v1753
  %v1755 = vsub.f32 1.0, %v1754
  %v1756 = vmul.f32 %v1753, %v1755
  %v1757 = vadd.f32 %v1753, %v1756
  %vm1758 = vweird.f32 %v1752
  %vm1759 = vweird.f32 %v1753
  %vm1760 = vmor %vm1758, %vm1759
  %v1761 = vsel %vm1760, %v1753, %v1757
  %v1762 = vand.u32 2147483647, %v1752
  %vm1763 = vcmp.eq.f32.partialorder %v1762, 8.507059e+37
  %v1764 = vand.u32 %v1752, 2147483648
  %v1765 = vor.u32 1.1754944e-38, %v1764
  %v1766 = vsel %vm1763, %v1765, %v1761
  %v1767 = vmul.f32 1.0, %v1766
  %v1768 = vtanh.pop %v1747
  %v1769 = vmul.f32 %v1767, %v1696
  %1771 = vrot.lane.b32.xlu0 %v1768, 64
  %v1772 = vpop.permute.xlu0 %1771
  %v1774 = vmul.f32 %v1767, %v1772
  %1776 = vrot.lane.b32.xlu0 %v1774, 32
  %v1777 = vpop.permute.xlu0 %1776
  %v1779 = vadd.f32 %v1769, %v1777
  %v1780 = vtanh.pop %v1779
  %1782 = vrot.lane.b32.xlu0 %v1780, 64
  %v1783 = vpop.permute.xlu0 %1782
  %v1785 = vmul.f32 %v1767, %v1783
  %1787 = vrot.lane.b32.xlu0 %v1785, 32
  %v1788 = vpop.permute.xlu0 %1787
  %v1789 = vsel %vm79, %v1788, 0
  %1791 = vmatpush.msra.mxu0 0.0
  %1792 = vmatpush.msra.mxu0 0.0
  %1793 = vmatpush.msra.mxu0 0.0
  %1794 = vmatpush.msra.mxu0 0.0
  %1795 = vmatpush.msra.mxu0 0.0
  %1796 = vmatpush.msra.mxu0 0.0
  %1797 = vmatpush.msra.mxu0 0.0
  %1798 = vmatpush.msra.mxu0 0.0
  %1799 = vmatpush.msra.mxu0 0.0
  %1800 = vmatpush.msra.mxu0 0.0
  %1801 = vmatpush.msra.mxu0 0.0
  %1802 = vmatpush.msra.mxu0 0.0
  %1803 = vmatpush.msra.mxu0 %v63
  %1804 = vmatpush.msra.mxu0 %v62
  %1805 = vmatpush.msra.mxu0 %v61
  %1806 = vmatpush.msra.mxu0 %v60
  %1807 = vmatmul.f32.gmra.mxu0 %v1789
  %v1808 = vpop.f32.mrf.mxu0
  %v1809 = vadd.f32 %v173, %v1808
  %1810 = vdwg.mxu0
  %v1811 = vadd.f32 %v1728, %v1809
  %1812 = vmatpush.msra.mxu0 0.0
  %1813 = vmatpush.msra.mxu0 0.0
  %1814 = vmatpush.msra.mxu0 0.0
  %1815 = vmatpush.msra.mxu0 0.0
  %1816 = vmatpush.msra.mxu0 0.0
  %1817 = vmatpush.msra.mxu0 0.0
  %1818 = vmatpush.msra.mxu0 0.0
  %1819 = vmatpush.msra.mxu0 0.0
  %1820 = vmatpush.msra.mxu0 0.0
  %1821 = vmatpush.msra.mxu0 0.0
  %1822 = vmatpush.msra.mxu0 0.0
  %1823 = vmatpush.msra.mxu0 0.0
  %1824 = vmatpush.msra.mxu0 %v58
  %1825 = vmatpush.msra.mxu0 %v57
  %1826 = vmatpush.msra.mxu0 %v56
  %1827 = vmatpush.msra.mxu0 %v55
  %1828 = vmatmul.f32.gmra.mxu0 %v1789
  %v1829 = vpop.f32.mrf.mxu0
  %v1830 = vadd.f32 %v202, %v1829
  %1831 = vdwg.mxu0
  %v1832 = vxor.u32 %v1830, 2147483648
  %v1833 = vmul.f32 %v1832, 1.442695
  %v1834 = vpow.pop %v1833
  %v1835 = vadd.f32 %v1834, 1.0
  %v1836 = vrcp.pop %v1835
  %v1837 = vmul.f32 %v1835, %v1836
  %v1838 = vsub.f32 1.0, %v1837
  %v1839 = vmul.f32 %v1836, %v1838
  %v1840 = vadd.f32 %v1836, %v1839
  %vm1841 = vweird.f32 %v1835
  %vm1842 = vweird.f32 %v1836
  %vm1843 = vmor %vm1841, %vm1842
  %v1844 = vsel %vm1843, %v1836, %v1840
  %v1845 = vand.u32 2147483647, %v1835
  %vm1846 = vcmp.eq.f32.partialorder %v1845, 8.507059e+37
  %v1847 = vand.u32 %v1835, 2147483648
  %v1848 = vor.u32 1.1754944e-38, %v1847
  %v1849 = vsel %vm1846, %v1848, %v1844
  %v1850 = vmul.f32 1.0, %v1849
  %v1851 = vtanh.pop %v1830
  %v1852 = vmul.f32 %v1850, %v1779
  %1854 = vrot.lane.b32.xlu0 %v1851, 64
  %v1855 = vpop.permute.xlu0 %1854
  %v1857 = vmul.f32 %v1850, %v1855
  %1859 = vrot.lane.b32.xlu0 %v1857, 32
  %v1860 = vpop.permute.xlu0 %1859
  %v1862 = vadd.f32 %v1852, %v1860
  %v1863 = vtanh.pop %v1862
  %1865 = vrot.lane.b32.xlu0 %v1863, 64
  %v1866 = vpop.permute.xlu0 %1865
  %v1868 = vmul.f32 %v1850, %v1866
  %1870 = vrot.lane.b32.xlu0 %v1868, 32
  %v1871 = vpop.permute.xlu0 %1870
  %v1872 = vsel %vm79, %v1871, 0
  %1874 = vmatpush.msra.mxu0 0.0
  %1875 = vmatpush.msra.mxu0 0.0
  %1876 = vmatpush.msra.mxu0 0.0
  %1877 = vmatpush.msra.mxu0 0.0
  %1878 = vmatpush.msra.mxu0 0.0
  %1879 = vmatpush.msra.mxu0 0.0
  %1880 = vmatpush.msra.mxu0 0.0
  %1881 = vmatpush.msra.mxu0 0.0
  %1882 = vmatpush.msra.mxu0 0.0
  %1883 = vmatpush.msra.mxu0 0.0
  %1884 = vmatpush.msra.mxu0 0.0
  %1885 = vmatpush.msra.mxu0 0.0
  %1886 = vmatpush.msra.mxu0 %v63
  %1887 = vmatpush.msra.mxu0 %v62
  %1888 = vmatpush.msra.mxu0 %v61
  %1889 = vmatpush.msra.mxu0 %v60
  %1890 = vmatmul.f32.gmra.mxu0 %v1872
  %v1891 = vpop.f32.mrf.mxu0
  %v1892 = vadd.f32 %v173, %v1891
  %1893 = vdwg.mxu0
  %v1894 = vadd.f32 %v1811, %v1892
  %1896 = vrot.lane.b32.xlu0 %v1894, 112
  %v1897 = vpop.permute.xlu0 %1896
  %1899 = vrot.lane.b32.xlu0 %v1485, 64
  %v1900 = vpop.permute.xlu0 %1899
  %v1902 = vsel %vm79, %v1897, %v1900
  %s1903 = scalar_lea.vmem %s0, 24
  %v1904 = vld [vmem:[%s1903] sm:$0xff]
  %v1906 = vsel %vm84, %v1902, 0
  %1908 = vmatpush.msra.mxu0 0.0
  %1909 = vmatpush.msra.mxu0 0.0
  %1910 = vmatpush.msra.mxu0 0.0
  %1911 = vmatpush.msra.mxu0 0.0
  %1912 = vmatpush.msra.mxu0 0.0
  %1913 = vmatpush.msra.mxu0 0.0
  %1914 = vmatpush.msra.mxu0 0.0
  %1915 = vmatpush.msra.mxu0 0.0
  %1916 = vmatpush.msra.mxu0 %v72
  %1917 = vmatpush.msra.mxu0 %v71
  %1918 = vmatpush.msra.mxu0 %v70
  %1919 = vmatpush.msra.mxu0 %v69
  %1920 = vmatpush.msra.mxu0 %v68
  %1921 = vmatpush.msra.mxu0 %v67
  %1922 = vmatpush.msra.mxu0 %v66
  %1923 = vmatpush.msra.mxu0 %v65
  %1924 = vmatmul.f32.gmra.mxu0 %v1906
  %v1925 = vpop.f32.mrf.mxu0
  %v1926 = vadd.f32 0.0, %v1925
  %1927 = vdwg.mxu0
  %v1928 = vadd.f32 %v1904, %v1926
  %v1929 = vxor.u32 %v1928, 2147483648
  %v1930 = vmul.f32 %v1929, 1.442695
  %v1931 = vpow.pop %v1930
  %v1932 = vadd.f32 %v1931, 1.0
  %v1933 = vrcp.pop %v1932
  %v1934 = vmul.f32 %v1932, %v1933
  %v1935 = vsub.f32 1.0, %v1934
  %v1936 = vmul.f32 %v1933, %v1935
  %v1937 = vadd.f32 %v1933, %v1936
  %vm1938 = vweird.f32 %v1932
  %vm1939 = vweird.f32 %v1933
  %vm1940 = vmor %vm1938, %vm1939
  %v1941 = vsel %vm1940, %v1933, %v1937
  %v1942 = vand.u32 2147483647, %v1932
  %vm1943 = vcmp.eq.f32.partialorder %v1942, 8.507059e+37
  %v1944 = vand.u32 %v1932, 2147483648
  %v1945 = vor.u32 1.1754944e-38, %v1944
  %v1946 = vsel %vm1943, %v1945, %v1941
  %v1947 = vmul.f32 1.0, %v1946
  %v1948 = vtanh.pop %v1928
  %v1949 = vmul.f32 %v1947, %v1479
  %1951 = vrot.lane.b32.xlu0 %v1948, 64
  %v1952 = vpop.permute.xlu0 %1951
  %v1954 = vmul.f32 %v1947, %v1952
  %1956 = vrot.lane.b32.xlu0 %v1954, 32
  %v1957 = vpop.permute.xlu0 %1956
  %v1959 = vadd.f32 %v1949, %v1957
  %v1960 = vtanh.pop %v1959
  %1962 = vrot.lane.b32.xlu0 %v1960, 64
  %v1963 = vpop.permute.xlu0 %1962
  %v1965 = vmul.f32 %v1947, %v1963
  %1967 = vrot.lane.b32.xlu0 %v1965, 32
  %v1968 = vpop.permute.xlu0 %1967
  %v1969 = vsel %vm79, %v1968, 0
  %1971 = vmatpush.msra.mxu0 0.0
  %1972 = vmatpush.msra.mxu0 0.0
  %1973 = vmatpush.msra.mxu0 0.0
  %1974 = vmatpush.msra.mxu0 0.0
  %1975 = vmatpush.msra.mxu0 0.0
  %1976 = vmatpush.msra.mxu0 0.0
  %1977 = vmatpush.msra.mxu0 0.0
  %1978 = vmatpush.msra.mxu0 0.0
  %1979 = vmatpush.msra.mxu0 0.0
  %1980 = vmatpush.msra.mxu0 0.0
  %1981 = vmatpush.msra.mxu0 0.0
  %1982 = vmatpush.msra.mxu0 0.0
  %1983 = vmatpush.msra.mxu0 %v63
  %1984 = vmatpush.msra.mxu0 %v62
  %1985 = vmatpush.msra.mxu0 %v61
  %1986 = vmatpush.msra.mxu0 %v60
  %1987 = vmatmul.f32.gmra.mxu0 %v1969
  %v1988 = vpop.f32.mrf.mxu0
  %v1989 = vadd.f32 %v173, %v1988
  %1990 = vdwg.mxu0
  %1992 = vrot.lane.b32.xlu0 %v1643, 16
  %v1993 = vpop.permute.xlu0 %1992
  %1996 = vrot.lane.b32.xlu0 %v1726, 32
  %v1997 = vpop.permute.xlu0 %1996
  %2000 = vrot.lane.b32.xlu0 %v1809, 48
  %v2001 = vpop.permute.xlu0 %2000
  %2004 = vrot.lane.b32.xlu0 %v1892, 64
  %v2005 = vpop.permute.xlu0 %2004
  %v2007 = vsel %vm565, %v1989, %v1993
  %v2008 = vsel %vm79, %v2007, %v1997
  %v2009 = vsel %vm568, %v2008, %v2001
  %v2010 = vsel %vm84, %v2009, %v2005
  %v2011 = vsel %vm571, %v2010, 0.0
  %s2012 = scalar_lea.vmem %s12, 24
  %2013 = vst [vmem:[%s2012] sm:$0xff] %v2011
  %v2015 = vsel %vm79, %v1968, %v1959
  %v2017 = vsel %vm84, %v2015, 0
  %2019 = vmatpush.msra.mxu0 0.0
  %2020 = vmatpush.msra.mxu0 0.0
  %2021 = vmatpush.msra.mxu0 0.0
  %2022 = vmatpush.msra.mxu0 0.0
  %2023 = vmatpush.msra.mxu0 0.0
  %2024 = vmatpush.msra.mxu0 0.0
  %2025 = vmatpush.msra.mxu0 0.0
  %2026 = vmatpush.msra.mxu0 0.0
  %2027 = vmatpush.msra.mxu0 %v48
  %2028 = vmatpush.msra.mxu0 %v47
  %2029 = vmatpush.msra.mxu0 %v46
  %2030 = vmatpush.msra.mxu0 %v45
  %2031 = vmatpush.msra.mxu0 %v44
  %2032 = vmatpush.msra.mxu0 %v43
  %2033 = vmatpush.msra.mxu0 %v42
  %2034 = vmatpush.msra.mxu0 %v41
  %2035 = vmatmul.f32.gmra.mxu0 %v2017
  %v2036 = vpop.f32.mrf.mxu0
  %v2037 = vadd.f32 %v82, %v2036
  %2038 = vdwg.mxu0
  %v2039 = vmax.f32 %v2037, 0.0
  %v2041 = vsel %vm79, %v2039, 0
  %2043 = vmatpush.msra.mxu0 0.0
  %2044 = vmatpush.msra.mxu0 0.0
  %2045 = vmatpush.msra.mxu0 0.0
  %2046 = vmatpush.msra.mxu0 0.0
  %2047 = vmatpush.msra.mxu0 0.0
  %2048 = vmatpush.msra.mxu0 0.0
  %2049 = vmatpush.msra.mxu0 0.0
  %2050 = vmatpush.msra.mxu0 0.0
  %2051 = vmatpush.msra.mxu0 0.0
  %2052 = vmatpush.msra.mxu0 0.0
  %2053 = vmatpush.msra.mxu0 0.0
  %2054 = vmatpush.msra.mxu0 0.0
  %2055 = vmatpush.msra.mxu0 %v53
  %2056 = vmatpush.msra.mxu0 %v52
  %2057 = vmatpush.msra.mxu0 %v51
  %2058 = vmatpush.msra.mxu0 %v50
  %2059 = vmatmul.f32.gmra.mxu0 %v2041
  %v2060 = vpop.f32.mrf.mxu0
  %v2061 = vadd.f32 %v110, %v2060
  %2062 = vdwg.mxu0
  %v2063 = vxor.u32 %v2061, 2147483648
  %v2064 = vmul.f32 %v2063, 1.442695
  %v2065 = vpow.pop %v2064
  %v2066 = vadd.f32 %v2065, 1.0
  %v2067 = vrcp.pop %v2066
  %v2068 = vmul.f32 %v2066, %v2067
  %v2069 = vsub.f32 1.0, %v2068
  %v2070 = vmul.f32 %v2067, %v2069
  %v2071 = vadd.f32 %v2067, %v2070
  %vm2072 = vweird.f32 %v2066
  %vm2073 = vweird.f32 %v2067
  %vm2074 = vmor %vm2072, %vm2073
  %v2075 = vsel %vm2074, %v2067, %v2071
  %v2076 = vand.u32 2147483647, %v2066
  %vm2077 = vcmp.eq.f32.partialorder %v2076, 8.507059e+37
  %v2078 = vand.u32 %v2066, 2147483648
  %v2079 = vor.u32 1.1754944e-38, %v2078
  %v2080 = vsel %vm2077, %v2079, %v2075
  %v2081 = vmul.f32 1.0, %v2080
  %v2082 = vtanh.pop %v2061
  %v2083 = vmul.f32 %v2081, %v2039
  %2085 = vrot.lane.b32.xlu0 %v2082, 64
  %v2086 = vpop.permute.xlu0 %2085
  %v2088 = vmul.f32 %v2081, %v2086
  %2090 = vrot.lane.b32.xlu0 %v2088, 32
  %v2091 = vpop.permute.xlu0 %2090
  %v2093 = vadd.f32 %v2083, %v2091
  %v2094 = vtanh.pop %v2093
  %2096 = vrot.lane.b32.xlu0 %v2094, 64
  %v2097 = vpop.permute.xlu0 %2096
  %v2099 = vmul.f32 %v2081, %v2097
  %2101 = vrot.lane.b32.xlu0 %v2099, 32
  %v2102 = vpop.permute.xlu0 %2101
  %v2103 = vsel %vm79, %v2102, 0
  %2105 = vmatpush.msra.mxu0 0.0
  %2106 = vmatpush.msra.mxu0 0.0
  %2107 = vmatpush.msra.mxu0 0.0
  %2108 = vmatpush.msra.mxu0 0.0
  %2109 = vmatpush.msra.mxu0 0.0
  %2110 = vmatpush.msra.mxu0 0.0
  %2111 = vmatpush.msra.mxu0 0.0
  %2112 = vmatpush.msra.mxu0 0.0
  %2113 = vmatpush.msra.mxu0 0.0
  %2114 = vmatpush.msra.mxu0 0.0
  %2115 = vmatpush.msra.mxu0 0.0
  %2116 = vmatpush.msra.mxu0 0.0
  %2117 = vmatpush.msra.mxu0 %v63
  %2118 = vmatpush.msra.mxu0 %v62
  %2119 = vmatpush.msra.mxu0 %v61
  %2120 = vmatpush.msra.mxu0 %v60
  %2121 = vmatmul.f32.gmra.mxu0 %v2103
  %v2122 = vpop.f32.mrf.mxu0
  %v2123 = vadd.f32 %v173, %v2122
  %2124 = vdwg.mxu0
  %v2125 = vadd.f32 %v2123, 0.0
  %2126 = vmatpush.msra.mxu0 0.0
  %2127 = vmatpush.msra.mxu0 0.0
  %2128 = vmatpush.msra.mxu0 0.0
  %2129 = vmatpush.msra.mxu0 0.0
  %2130 = vmatpush.msra.mxu0 0.0
  %2131 = vmatpush.msra.mxu0 0.0
  %2132 = vmatpush.msra.mxu0 0.0
  %2133 = vmatpush.msra.mxu0 0.0
  %2134 = vmatpush.msra.mxu0 0.0
  %2135 = vmatpush.msra.mxu0 0.0
  %2136 = vmatpush.msra.mxu0 0.0
  %2137 = vmatpush.msra.mxu0 0.0
  %2138 = vmatpush.msra.mxu0 %v58
  %2139 = vmatpush.msra.mxu0 %v57
  %2140 = vmatpush.msra.mxu0 %v56
  %2141 = vmatpush.msra.mxu0 %v55
  %2142 = vmatmul.f32.gmra.mxu0 %v2103
  %v2143 = vpop.f32.mrf.mxu0
  %v2144 = vadd.f32 %v202, %v2143
  %2145 = vdwg.mxu0
  %v2146 = vxor.u32 %v2144, 2147483648
  %v2147 = vmul.f32 %v2146, 1.442695
  %v2148 = vpow.pop %v2147
  %v2149 = vadd.f32 %v2148, 1.0
  %v2150 = vrcp.pop %v2149
  %v2151 = vmul.f32 %v2149, %v2150
  %v2152 = vsub.f32 1.0, %v2151
  %v2153 = vmul.f32 %v2150, %v2152
  %v2154 = vadd.f32 %v2150, %v2153
  %vm2155 = vweird.f32 %v2149
  %vm2156 = vweird.f32 %v2150
  %vm2157 = vmor %vm2155, %vm2156
  %v2158 = vsel %vm2157, %v2150, %v2154
  %v2159 = vand.u32 2147483647, %v2149
  %vm2160 = vcmp.eq.f32.partialorder %v2159, 8.507059e+37
  %v2161 = vand.u32 %v2149, 2147483648
  %v2162 = vor.u32 1.1754944e-38, %v2161
  %v2163 = vsel %vm2160, %v2162, %v2158
  %v2164 = vmul.f32 1.0, %v2163
  %v2165 = vtanh.pop %v2144
  %v2166 = vmul.f32 %v2164, %v2093
  %2168 = vrot.lane.b32.xlu0 %v2165, 64
  %v2169 = vpop.permute.xlu0 %2168
  %v2171 = vmul.f32 %v2164, %v2169
  %2173 = vrot.lane.b32.xlu0 %v2171, 32
  %v2174 = vpop.permute.xlu0 %2173
  %v2176 = vadd.f32 %v2166, %v2174
  %v2177 = vtanh.pop %v2176
  %2179 = vrot.lane.b32.xlu0 %v2177, 64
  %v2180 = vpop.permute.xlu0 %2179
  %v2182 = vmul.f32 %v2164, %v2180
  %2184 = vrot.lane.b32.xlu0 %v2182, 32
  %v2185 = vpop.permute.xlu0 %2184
  %v2186 = vsel %vm79, %v2185, 0
  %2188 = vmatpush.msra.mxu0 0.0
  %2189 = vmatpush.msra.mxu0 0.0
  %2190 = vmatpush.msra.mxu0 0.0
  %2191 = vmatpush.msra.mxu0 0.0
  %2192 = vmatpush.msra.mxu0 0.0
  %2193 = vmatpush.msra.mxu0 0.0
  %2194 = vmatpush.msra.mxu0 0.0
  %2195 = vmatpush.msra.mxu0 0.0
  %2196 = vmatpush.msra.mxu0 0.0
  %2197 = vmatpush.msra.mxu0 0.0
  %2198 = vmatpush.msra.mxu0 0.0
  %2199 = vmatpush.msra.mxu0 0.0
  %2200 = vmatpush.msra.mxu0 %v63
  %2201 = vmatpush.msra.mxu0 %v62
  %2202 = vmatpush.msra.mxu0 %v61
  %2203 = vmatpush.msra.mxu0 %v60
  %2204 = vmatmul.f32.gmra.mxu0 %v2186
  %v2205 = vpop.f32.mrf.mxu0
  %v2206 = vadd.f32 %v173, %v2205
  %2207 = vdwg.mxu0
  %v2208 = vadd.f32 %v2125, %v2206
  %2209 = vmatpush.msra.mxu0 0.0
  %2210 = vmatpush.msra.mxu0 0.0
  %2211 = vmatpush.msra.mxu0 0.0
  %2212 = vmatpush.msra.mxu0 0.0
  %2213 = vmatpush.msra.mxu0 0.0
  %2214 = vmatpush.msra.mxu0 0.0
  %2215 = vmatpush.msra.mxu0 0.0
  %2216 = vmatpush.msra.mxu0 0.0
  %2217 = vmatpush.msra.mxu0 0.0
  %2218 = vmatpush.msra.mxu0 0.0
  %2219 = vmatpush.msra.mxu0 0.0
  %2220 = vmatpush.msra.mxu0 0.0
  %2221 = vmatpush.msra.mxu0 %v58
  %2222 = vmatpush.msra.mxu0 %v57
  %2223 = vmatpush.msra.mxu0 %v56
  %2224 = vmatpush.msra.mxu0 %v55
  %2225 = vmatmul.f32.gmra.mxu0 %v2186
  %v2226 = vpop.f32.mrf.mxu0
  %v2227 = vadd.f32 %v202, %v2226
  %2228 = vdwg.mxu0
  %v2229 = vxor.u32 %v2227, 2147483648
  %v2230 = vmul.f32 %v2229, 1.442695
  %v2231 = vpow.pop %v2230
  %v2232 = vadd.f32 %v2231, 1.0
  %v2233 = vrcp.pop %v2232
  %v2234 = vmul.f32 %v2232, %v2233
  %v2235 = vsub.f32 1.0, %v2234
  %v2236 = vmul.f32 %v2233, %v2235
  %v2237 = vadd.f32 %v2233, %v2236
  %vm2238 = vweird.f32 %v2232
  %vm2239 = vweird.f32 %v2233
  %vm2240 = vmor %vm2238, %vm2239
  %v2241 = vsel %vm2240, %v2233, %v2237
  %v2242 = vand.u32 2147483647, %v2232
  %vm2243 = vcmp.eq.f32.partialorder %v2242, 8.507059e+37
  %v2244 = vand.u32 %v2232, 2147483648
  %v2245 = vor.u32 1.1754944e-38, %v2244
  %v2246 = vsel %vm2243, %v2245, %v2241
  %v2247 = vmul.f32 1.0, %v2246
  %v2248 = vtanh.pop %v2227
  %v2249 = vmul.f32 %v2247, %v2176
  %2251 = vrot.lane.b32.xlu0 %v2248, 64
  %v2252 = vpop.permute.xlu0 %2251
  %v2254 = vmul.f32 %v2247, %v2252
  %2256 = vrot.lane.b32.xlu0 %v2254, 32
  %v2257 = vpop.permute.xlu0 %2256
  %v2259 = vadd.f32 %v2249, %v2257
  %v2260 = vtanh.pop %v2259
  %2262 = vrot.lane.b32.xlu0 %v2260, 64
  %v2263 = vpop.permute.xlu0 %2262
  %v2265 = vmul.f32 %v2247, %v2263
  %2267 = vrot.lane.b32.xlu0 %v2265, 32
  %v2268 = vpop.permute.xlu0 %2267
  %v2269 = vsel %vm79, %v2268, 0
  %2271 = vmatpush.msra.mxu0 0.0
  %2272 = vmatpush.msra.mxu0 0.0
  %2273 = vmatpush.msra.mxu0 0.0
  %2274 = vmatpush.msra.mxu0 0.0
  %2275 = vmatpush.msra.mxu0 0.0
  %2276 = vmatpush.msra.mxu0 0.0
  %2277 = vmatpush.msra.mxu0 0.0
  %2278 = vmatpush.msra.mxu0 0.0
  %2279 = vmatpush.msra.mxu0 0.0
  %2280 = vmatpush.msra.mxu0 0.0
  %2281 = vmatpush.msra.mxu0 0.0
  %2282 = vmatpush.msra.mxu0 0.0
  %2283 = vmatpush.msra.mxu0 %v63
  %2284 = vmatpush.msra.mxu0 %v62
  %2285 = vmatpush.msra.mxu0 %v61
  %2286 = vmatpush.msra.mxu0 %v60
  %2287 = vmatmul.f32.gmra.mxu0 %v2269
  %v2288 = vpop.f32.mrf.mxu0
  %v2289 = vadd.f32 %v173, %v2288
  %2290 = vdwg.mxu0
  %v2291 = vadd.f32 %v2208, %v2289
  %2292 = vmatpush.msra.mxu0 0.0
  %2293 = vmatpush.msra.mxu0 0.0
  %2294 = vmatpush.msra.mxu0 0.0
  %2295 = vmatpush.msra.mxu0 0.0
  %2296 = vmatpush.msra.mxu0 0.0
  %2297 = vmatpush.msra.mxu0 0.0
  %2298 = vmatpush.msra.mxu0 0.0
  %2299 = vmatpush.msra.mxu0 0.0
  %2300 = vmatpush.msra.mxu0 0.0
  %2301 = vmatpush.msra.mxu0 0.0
  %2302 = vmatpush.msra.mxu0 0.0
  %2303 = vmatpush.msra.mxu0 0.0
  %2304 = vmatpush.msra.mxu0 %v58
  %2305 = vmatpush.msra.mxu0 %v57
  %2306 = vmatpush.msra.mxu0 %v56
  %2307 = vmatpush.msra.mxu0 %v55
  %2308 = vmatmul.f32.gmra.mxu0 %v2269
  %v2309 = vpop.f32.mrf.mxu0
  %v2310 = vadd.f32 %v202, %v2309
  %2311 = vdwg.mxu0
  %v2312 = vxor.u32 %v2310, 2147483648
  %v2313 = vmul.f32 %v2312, 1.442695
  %v2314 = vpow.pop %v2313
  %v2315 = vadd.f32 %v2314, 1.0
  %v2316 = vrcp.pop %v2315
  %v2317 = vmul.f32 %v2315, %v2316
  %v2318 = vsub.f32 1.0, %v2317
  %v2319 = vmul.f32 %v2316, %v2318
  %v2320 = vadd.f32 %v2316, %v2319
  %vm2321 = vweird.f32 %v2315
  %vm2322 = vweird.f32 %v2316
  %vm2323 = vmor %vm2321, %vm2322
  %v2324 = vsel %vm2323, %v2316, %v2320
  %v2325 = vand.u32 2147483647, %v2315
  %vm2326 = vcmp.eq.f32.partialorder %v2325, 8.507059e+37
  %v2327 = vand.u32 %v2315, 2147483648
  %v2328 = vor.u32 1.1754944e-38, %v2327
  %v2329 = vsel %vm2326, %v2328, %v2324
  %v2330 = vmul.f32 1.0, %v2329
  %v2331 = vtanh.pop %v2310
  %v2332 = vmul.f32 %v2330, %v2259
  %2334 = vrot.lane.b32.xlu0 %v2331, 64
  %v2335 = vpop.permute.xlu0 %2334
  %v2337 = vmul.f32 %v2330, %v2335
  %2339 = vrot.lane.b32.xlu0 %v2337, 32
  %v2340 = vpop.permute.xlu0 %2339
  %v2342 = vadd.f32 %v2332, %v2340
  %v2343 = vtanh.pop %v2342
  %2345 = vrot.lane.b32.xlu0 %v2343, 64
  %v2346 = vpop.permute.xlu0 %2345
  %v2348 = vmul.f32 %v2330, %v2346
  %2350 = vrot.lane.b32.xlu0 %v2348, 32
  %v2351 = vpop.permute.xlu0 %2350
  %v2352 = vsel %vm79, %v2351, 0
  %2354 = vmatpush.msra.mxu0 0.0
  %2355 = vmatpush.msra.mxu0 0.0
  %2356 = vmatpush.msra.mxu0 0.0
  %2357 = vmatpush.msra.mxu0 0.0
  %2358 = vmatpush.msra.mxu0 0.0
  %2359 = vmatpush.msra.mxu0 0.0
  %2360 = vmatpush.msra.mxu0 0.0
  %2361 = vmatpush.msra.mxu0 0.0
  %2362 = vmatpush.msra.mxu0 0.0
  %2363 = vmatpush.msra.mxu0 0.0
  %2364 = vmatpush.msra.mxu0 0.0
  %2365 = vmatpush.msra.mxu0 0.0
  %2366 = vmatpush.msra.mxu0 %v63
  %2367 = vmatpush.msra.mxu0 %v62
  %2368 = vmatpush.msra.mxu0 %v61
  %2369 = vmatpush.msra.mxu0 %v60
  %2370 = vmatmul.f32.gmra.mxu0 %v2352
  %v2371 = vpop.f32.mrf.mxu0
  %v2372 = vadd.f32 %v173, %v2371
  %2373 = vdwg.mxu0
  %v2374 = vadd.f32 %v2291, %v2372
  %2376 = vrot.lane.b32.xlu0 %v2374, 112
  %v2377 = vpop.permute.xlu0 %2376
  %2379 = vrot.lane.b32.xlu0 %v1965, 64
  %v2380 = vpop.permute.xlu0 %2379
  %v2382 = vsel %vm79, %v2377, %v2380
  %s2383 = scalar_lea.vmem %s0, 32
  %v2384 = vld [vmem:[%s2383] sm:$0xff]
  %v2386 = vsel %vm84, %v2382, 0
  %2388 = vmatpush.msra.mxu0 0.0
  %2389 = vmatpush.msra.mxu0 0.0
  %2390 = vmatpush.msra.mxu0 0.0
  %2391 = vmatpush.msra.mxu0 0.0
  %2392 = vmatpush.msra.mxu0 0.0
  %2393 = vmatpush.msra.mxu0 0.0
  %2394 = vmatpush.msra.mxu0 0.0
  %2395 = vmatpush.msra.mxu0 0.0
  %2396 = vmatpush.msra.mxu0 %v72
  %2397 = vmatpush.msra.mxu0 %v71
  %2398 = vmatpush.msra.mxu0 %v70
  %2399 = vmatpush.msra.mxu0 %v69
  %2400 = vmatpush.msra.mxu0 %v68
  %2401 = vmatpush.msra.mxu0 %v67
  %2402 = vmatpush.msra.mxu0 %v66
  %2403 = vmatpush.msra.mxu0 %v65
  %2404 = vmatmul.f32.gmra.mxu0 %v2386
  %v2405 = vpop.f32.mrf.mxu0
  %v2406 = vadd.f32 0.0, %v2405
  %2407 = vdwg.mxu0
  %v2408 = vadd.f32 %v2384, %v2406
  %v2409 = vxor.u32 %v2408, 2147483648
  %v2410 = vmul.f32 %v2409, 1.442695
  %v2411 = vpow.pop %v2410
  %v2412 = vadd.f32 %v2411, 1.0
  %v2413 = vrcp.pop %v2412
  %v2414 = vmul.f32 %v2412, %v2413
  %v2415 = vsub.f32 1.0, %v2414
  %v2416 = vmul.f32 %v2413, %v2415
  %v2417 = vadd.f32 %v2413, %v2416
  %vm2418 = vweird.f32 %v2412
  %vm2419 = vweird.f32 %v2413
  %vm2420 = vmor %vm2418, %vm2419
  %v2421 = vsel %vm2420, %v2413, %v2417
  %v2422 = vand.u32 2147483647, %v2412
  %vm2423 = vcmp.eq.f32.partialorder %v2422, 8.507059e+37
  %v2424 = vand.u32 %v2412, 2147483648
  %v2425 = vor.u32 1.1754944e-38, %v2424
  %v2426 = vsel %vm2423, %v2425, %v2421
  %v2427 = vmul.f32 1.0, %v2426
  %v2428 = vtanh.pop %v2408
  %v2429 = vmul.f32 %v2427, %v1959
  %2431 = vrot.lane.b32.xlu0 %v2428, 64
  %v2432 = vpop.permute.xlu0 %2431
  %v2434 = vmul.f32 %v2427, %v2432
  %2436 = vrot.lane.b32.xlu0 %v2434, 32
  %v2437 = vpop.permute.xlu0 %2436
  %v2439 = vadd.f32 %v2429, %v2437
  %v2440 = vtanh.pop %v2439
  %2442 = vrot.lane.b32.xlu0 %v2440, 64
  %v2443 = vpop.permute.xlu0 %2442
  %v2445 = vmul.f32 %v2427, %v2443
  %2447 = vrot.lane.b32.xlu0 %v2445, 32
  %v2448 = vpop.permute.xlu0 %2447
  %v2449 = vsel %vm79, %v2448, 0
  %2451 = vmatpush.msra.mxu0 0.0
  %2452 = vmatpush.msra.mxu0 0.0
  %2453 = vmatpush.msra.mxu0 0.0
  %2454 = vmatpush.msra.mxu0 0.0
  %2455 = vmatpush.msra.mxu0 0.0
  %2456 = vmatpush.msra.mxu0 0.0
  %2457 = vmatpush.msra.mxu0 0.0
  %2458 = vmatpush.msra.mxu0 0.0
  %2459 = vmatpush.msra.mxu0 0.0
  %2460 = vmatpush.msra.mxu0 0.0
  %2461 = vmatpush.msra.mxu0 0.0
  %2462 = vmatpush.msra.mxu0 0.0
  %2463 = vmatpush.msra.mxu0 %v63
  %2464 = vmatpush.msra.mxu0 %v62
  %2465 = vmatpush.msra.mxu0 %v61
  %2466 = vmatpush.msra.mxu0 %v60
  %2467 = vmatmul.f32.gmra.mxu0 %v2449
  %v2468 = vpop.f32.mrf.mxu0
  %v2469 = vadd.f32 %v173, %v2468
  %2470 = vdwg.mxu0
  %2472 = vrot.lane.b32.xlu0 %v2123, 16
  %v2473 = vpop.permute.xlu0 %2472
  %2476 = vrot.lane.b32.xlu0 %v2206, 32
  %v2477 = vpop.permute.xlu0 %2476
  %2480 = vrot.lane.b32.xlu0 %v2289, 48
  %v2481 = vpop.permute.xlu0 %2480
  %2484 = vrot.lane.b32.xlu0 %v2372, 64
  %v2485 = vpop.permute.xlu0 %2484
  %v2487 = vsel %vm565, %v2469, %v2473
  %v2488 = vsel %vm79, %v2487, %v2477
  %v2489 = vsel %vm568, %v2488, %v2481
  %v2490 = vsel %vm84, %v2489, %v2485
  %v2491 = vsel %vm571, %v2490, 0.0
  %s2492 = scalar_lea.vmem %s12, 32
  %2493 = vst [vmem:[%s2492] sm:$0xff] %v2491
  %v2495 = vsel %vm79, %v2448, %v2439
  %v2497 = vsel %vm84, %v2495, 0
  %2499 = vmatpush.msra.mxu0 0.0
  %2500 = vmatpush.msra.mxu0 0.0
  %2501 = vmatpush.msra.mxu0 0.0
  %2502 = vmatpush.msra.mxu0 0.0
  %2503 = vmatpush.msra.mxu0 0.0
  %2504 = vmatpush.msra.mxu0 0.0
  %2505 = vmatpush.msra.mxu0 0.0
  %2506 = vmatpush.msra.mxu0 0.0
  %2507 = vmatpush.msra.mxu0 %v48
  %2508 = vmatpush.msra.mxu0 %v47
  %2509 = vmatpush.msra.mxu0 %v46
  %2510 = vmatpush.msra.mxu0 %v45
  %2511 = vmatpush.msra.mxu0 %v44
  %2512 = vmatpush.msra.mxu0 %v43
  %2513 = vmatpush.msra.mxu0 %v42
  %2514 = vmatpush.msra.mxu0 %v41
  %2515 = vmatmul.f32.gmra.mxu0 %v2497
  %v2516 = vpop.f32.mrf.mxu0
  %v2517 = vadd.f32 %v82, %v2516
  %2518 = vdwg.mxu0
  %v2519 = vmax.f32 %v2517, 0.0
  %v2521 = vsel %vm79, %v2519, 0
  %2523 = vmatpush.msra.mxu0 0.0
  %2524 = vmatpush.msra.mxu0 0.0
  %2525 = vmatpush.msra.mxu0 0.0
  %2526 = vmatpush.msra.mxu0 0.0
  %2527 = vmatpush.msra.mxu0 0.0
  %2528 = vmatpush.msra.mxu0 0.0
  %2529 = vmatpush.msra.mxu0 0.0
  %2530 = vmatpush.msra.mxu0 0.0
  %2531 = vmatpush.msra.mxu0 0.0
  %2532 = vmatpush.msra.mxu0 0.0
  %2533 = vmatpush.msra.mxu0 0.0
  %2534 = vmatpush.msra.mxu0 0.0
  %2535 = vmatpush.msra.mxu0 %v53
  %2536 = vmatpush.msra.mxu0 %v52
  %2537 = vmatpush.msra.mxu0 %v51
  %2538 = vmatpush.msra.mxu0 %v50
  %2539 = vmatmul.f32.gmra.mxu0 %v2521
  %v2540 = vpop.f32.mrf.mxu0
  %v2541 = vadd.f32 %v110, %v2540
  %2542 = vdwg.mxu0
  %v2543 = vxor.u32 %v2541, 2147483648
  %v2544 = vmul.f32 %v2543, 1.442695
  %v2545 = vpow.pop %v2544
  %v2546 = vadd.f32 %v2545, 1.0
  %v2547 = vrcp.pop %v2546
  %v2548 = vmul.f32 %v2546, %v2547
  %v2549 = vsub.f32 1.0, %v2548
  %v2550 = vmul.f32 %v2547, %v2549
  %v2551 = vadd.f32 %v2547, %v2550
  %vm2552 = vweird.f32 %v2546
  %vm2553 = vweird.f32 %v2547
  %vm2554 = vmor %vm2552, %vm2553
  %v2555 = vsel %vm2554, %v2547, %v2551
  %v2556 = vand.u32 2147483647, %v2546
  %vm2557 = vcmp.eq.f32.partialorder %v2556, 8.507059e+37
  %v2558 = vand.u32 %v2546, 2147483648
  %v2559 = vor.u32 1.1754944e-38, %v2558
  %v2560 = vsel %vm2557, %v2559, %v2555
  %v2561 = vmul.f32 1.0, %v2560
  %v2562 = vtanh.pop %v2541
  %v2563 = vmul.f32 %v2561, %v2519
  %2565 = vrot.lane.b32.xlu0 %v2562, 64
  %v2566 = vpop.permute.xlu0 %2565
  %v2568 = vmul.f32 %v2561, %v2566
  %2570 = vrot.lane.b32.xlu0 %v2568, 32
  %v2571 = vpop.permute.xlu0 %2570
  %v2573 = vadd.f32 %v2563, %v2571
  %v2574 = vtanh.pop %v2573
  %2576 = vrot.lane.b32.xlu0 %v2574, 64
  %v2577 = vpop.permute.xlu0 %2576
  %v2579 = vmul.f32 %v2561, %v2577
  %2581 = vrot.lane.b32.xlu0 %v2579, 32
  %v2582 = vpop.permute.xlu0 %2581
  %v2583 = vsel %vm79, %v2582, 0
  %2585 = vmatpush.msra.mxu0 0.0
  %2586 = vmatpush.msra.mxu0 0.0
  %2587 = vmatpush.msra.mxu0 0.0
  %2588 = vmatpush.msra.mxu0 0.0
  %2589 = vmatpush.msra.mxu0 0.0
  %2590 = vmatpush.msra.mxu0 0.0
  %2591 = vmatpush.msra.mxu0 0.0
  %2592 = vmatpush.msra.mxu0 0.0
  %2593 = vmatpush.msra.mxu0 0.0
  %2594 = vmatpush.msra.mxu0 0.0
  %2595 = vmatpush.msra.mxu0 0.0
  %2596 = vmatpush.msra.mxu0 0.0
  %2597 = vmatpush.msra.mxu0 %v63
  %2598 = vmatpush.msra.mxu0 %v62
  %2599 = vmatpush.msra.mxu0 %v61
  %2600 = vmatpush.msra.mxu0 %v60
  %2601 = vmatmul.f32.gmra.mxu0 %v2583
  %v2602 = vpop.f32.mrf.mxu0
  %v2603 = vadd.f32 %v173, %v2602
  %2604 = vdwg.mxu0
  %v2605 = vadd.f32 %v2603, 0.0
  %2606 = vmatpush.msra.mxu0 0.0
  %2607 = vmatpush.msra.mxu0 0.0
  %2608 = vmatpush.msra.mxu0 0.0
  %2609 = vmatpush.msra.mxu0 0.0
  %2610 = vmatpush.msra.mxu0 0.0
  %2611 = vmatpush.msra.mxu0 0.0
  %2612 = vmatpush.msra.mxu0 0.0
  %2613 = vmatpush.msra.mxu0 0.0
  %2614 = vmatpush.msra.mxu0 0.0
  %2615 = vmatpush.msra.mxu0 0.0
  %2616 = vmatpush.msra.mxu0 0.0
  %2617 = vmatpush.msra.mxu0 0.0
  %2618 = vmatpush.msra.mxu0 %v58
  %2619 = vmatpush.msra.mxu0 %v57
  %2620 = vmatpush.msra.mxu0 %v56
  %2621 = vmatpush.msra.mxu0 %v55
  %2622 = vmatmul.f32.gmra.mxu0 %v2583
  %v2623 = vpop.f32.mrf.mxu0
  %v2624 = vadd.f32 %v202, %v2623
  %2625 = vdwg.mxu0
  %v2626 = vxor.u32 %v2624, 2147483648
  %v2627 = vmul.f32 %v2626, 1.442695
  %v2628 = vpow.pop %v2627
  %v2629 = vadd.f32 %v2628, 1.0
  %v2630 = vrcp.pop %v2629
  %v2631 = vmul.f32 %v2629, %v2630
  %v2632 = vsub.f32 1.0, %v2631
  %v2633 = vmul.f32 %v2630, %v2632
  %v2634 = vadd.f32 %v2630, %v2633
  %vm2635 = vweird.f32 %v2629
  %vm2636 = vweird.f32 %v2630
  %vm2637 = vmor %vm2635, %vm2636
  %v2638 = vsel %vm2637, %v2630, %v2634
  %v2639 = vand.u32 2147483647, %v2629
  %vm2640 = vcmp.eq.f32.partialorder %v2639, 8.507059e+37
  %v2641 = vand.u32 %v2629, 2147483648
  %v2642 = vor.u32 1.1754944e-38, %v2641
  %v2643 = vsel %vm2640, %v2642, %v2638
  %v2644 = vmul.f32 1.0, %v2643
  %v2645 = vtanh.pop %v2624
  %v2646 = vmul.f32 %v2644, %v2573
  %2648 = vrot.lane.b32.xlu0 %v2645, 64
  %v2649 = vpop.permute.xlu0 %2648
  %v2651 = vmul.f32 %v2644, %v2649
  %2653 = vrot.lane.b32.xlu0 %v2651, 32
  %v2654 = vpop.permute.xlu0 %2653
  %v2656 = vadd.f32 %v2646, %v2654
  %v2657 = vtanh.pop %v2656
  %2659 = vrot.lane.b32.xlu0 %v2657, 64
  %v2660 = vpop.permute.xlu0 %2659
  %v2662 = vmul.f32 %v2644, %v2660
  %2664 = vrot.lane.b32.xlu0 %v2662, 32
  %v2665 = vpop.permute.xlu0 %2664
  %v2666 = vsel %vm79, %v2665, 0
  %2668 = vmatpush.msra.mxu0 0.0
  %2669 = vmatpush.msra.mxu0 0.0
  %2670 = vmatpush.msra.mxu0 0.0
  %2671 = vmatpush.msra.mxu0 0.0
  %2672 = vmatpush.msra.mxu0 0.0
  %2673 = vmatpush.msra.mxu0 0.0
  %2674 = vmatpush.msra.mxu0 0.0
  %2675 = vmatpush.msra.mxu0 0.0
  %2676 = vmatpush.msra.mxu0 0.0
  %2677 = vmatpush.msra.mxu0 0.0
  %2678 = vmatpush.msra.mxu0 0.0
  %2679 = vmatpush.msra.mxu0 0.0
  %2680 = vmatpush.msra.mxu0 %v63
  %2681 = vmatpush.msra.mxu0 %v62
  %2682 = vmatpush.msra.mxu0 %v61
  %2683 = vmatpush.msra.mxu0 %v60
  %2684 = vmatmul.f32.gmra.mxu0 %v2666
  %v2685 = vpop.f32.mrf.mxu0
  %v2686 = vadd.f32 %v173, %v2685
  %2687 = vdwg.mxu0
  %v2688 = vadd.f32 %v2605, %v2686
  %2689 = vmatpush.msra.mxu0 0.0
  %2690 = vmatpush.msra.mxu0 0.0
  %2691 = vmatpush.msra.mxu0 0.0
  %2692 = vmatpush.msra.mxu0 0.0
  %2693 = vmatpush.msra.mxu0 0.0
  %2694 = vmatpush.msra.mxu0 0.0
  %2695 = vmatpush.msra.mxu0 0.0
  %2696 = vmatpush.msra.mxu0 0.0
  %2697 = vmatpush.msra.mxu0 0.0
  %2698 = vmatpush.msra.mxu0 0.0
  %2699 = vmatpush.msra.mxu0 0.0
  %2700 = vmatpush.msra.mxu0 0.0
  %2701 = vmatpush.msra.mxu0 %v58
  %2702 = vmatpush.msra.mxu0 %v57
  %2703 = vmatpush.msra.mxu0 %v56
  %2704 = vmatpush.msra.mxu0 %v55
  %2705 = vmatmul.f32.gmra.mxu0 %v2666
  %v2706 = vpop.f32.mrf.mxu0
  %v2707 = vadd.f32 %v202, %v2706
  %2708 = vdwg.mxu0
  %v2709 = vxor.u32 %v2707, 2147483648
  %v2710 = vmul.f32 %v2709, 1.442695
  %v2711 = vpow.pop %v2710
  %v2712 = vadd.f32 %v2711, 1.0
  %v2713 = vrcp.pop %v2712
  %v2714 = vmul.f32 %v2712, %v2713
  %v2715 = vsub.f32 1.0, %v2714
  %v2716 = vmul.f32 %v2713, %v2715
  %v2717 = vadd.f32 %v2713, %v2716
  %vm2718 = vweird.f32 %v2712
  %vm2719 = vweird.f32 %v2713
  %vm2720 = vmor %vm2718, %vm2719
  %v2721 = vsel %vm2720, %v2713, %v2717
  %v2722 = vand.u32 2147483647, %v2712
  %vm2723 = vcmp.eq.f32.partialorder %v2722, 8.507059e+37
  %v2724 = vand.u32 %v2712, 2147483648
  %v2725 = vor.u32 1.1754944e-38, %v2724
  %v2726 = vsel %vm2723, %v2725, %v2721
  %v2727 = vmul.f32 1.0, %v2726
  %v2728 = vtanh.pop %v2707
  %v2729 = vmul.f32 %v2727, %v2656
  %2731 = vrot.lane.b32.xlu0 %v2728, 64
  %v2732 = vpop.permute.xlu0 %2731
  %v2734 = vmul.f32 %v2727, %v2732
  %2736 = vrot.lane.b32.xlu0 %v2734, 32
  %v2737 = vpop.permute.xlu0 %2736
  %v2739 = vadd.f32 %v2729, %v2737
  %v2740 = vtanh.pop %v2739
  %2742 = vrot.lane.b32.xlu0 %v2740, 64
  %v2743 = vpop.permute.xlu0 %2742
  %v2745 = vmul.f32 %v2727, %v2743
  %2747 = vrot.lane.b32.xlu0 %v2745, 32
  %v2748 = vpop.permute.xlu0 %2747
  %v2749 = vsel %vm79, %v2748, 0
  %2751 = vmatpush.msra.mxu0 0.0
  %2752 = vmatpush.msra.mxu0 0.0
  %2753 = vmatpush.msra.mxu0 0.0
  %2754 = vmatpush.msra.mxu0 0.0
  %2755 = vmatpush.msra.mxu0 0.0
  %2756 = vmatpush.msra.mxu0 0.0
  %2757 = vmatpush.msra.mxu0 0.0
  %2758 = vmatpush.msra.mxu0 0.0
  %2759 = vmatpush.msra.mxu0 0.0
  %2760 = vmatpush.msra.mxu0 0.0
  %2761 = vmatpush.msra.mxu0 0.0
  %2762 = vmatpush.msra.mxu0 0.0
  %2763 = vmatpush.msra.mxu0 %v63
  %2764 = vmatpush.msra.mxu0 %v62
  %2765 = vmatpush.msra.mxu0 %v61
  %2766 = vmatpush.msra.mxu0 %v60
  %2767 = vmatmul.f32.gmra.mxu0 %v2749
  %v2768 = vpop.f32.mrf.mxu0
  %v2769 = vadd.f32 %v173, %v2768
  %2770 = vdwg.mxu0
  %v2771 = vadd.f32 %v2688, %v2769
  %2772 = vmatpush.msra.mxu0 0.0
  %2773 = vmatpush.msra.mxu0 0.0
  %2774 = vmatpush.msra.mxu0 0.0
  %2775 = vmatpush.msra.mxu0 0.0
  %2776 = vmatpush.msra.mxu0 0.0
  %2777 = vmatpush.msra.mxu0 0.0
  %2778 = vmatpush.msra.mxu0 0.0
  %2779 = vmatpush.msra.mxu0 0.0
  %2780 = vmatpush.msra.mxu0 0.0
  %2781 = vmatpush.msra.mxu0 0.0
  %2782 = vmatpush.msra.mxu0 0.0
  %2783 = vmatpush.msra.mxu0 0.0
  %2784 = vmatpush.msra.mxu0 %v58
  %2785 = vmatpush.msra.mxu0 %v57
  %2786 = vmatpush.msra.mxu0 %v56
  %2787 = vmatpush.msra.mxu0 %v55
  %2788 = vmatmul.f32.gmra.mxu0 %v2749
  %v2789 = vpop.f32.mrf.mxu0
  %v2790 = vadd.f32 %v202, %v2789
  %2791 = vdwg.mxu0
  %v2792 = vxor.u32 %v2790, 2147483648
  %v2793 = vmul.f32 %v2792, 1.442695
  %v2794 = vpow.pop %v2793
  %v2795 = vadd.f32 %v2794, 1.0
  %v2796 = vrcp.pop %v2795
  %v2797 = vmul.f32 %v2795, %v2796
  %v2798 = vsub.f32 1.0, %v2797
  %v2799 = vmul.f32 %v2796, %v2798
  %v2800 = vadd.f32 %v2796, %v2799
  %vm2801 = vweird.f32 %v2795
  %vm2802 = vweird.f32 %v2796
  %vm2803 = vmor %vm2801, %vm2802
  %v2804 = vsel %vm2803, %v2796, %v2800
  %v2805 = vand.u32 2147483647, %v2795
  %vm2806 = vcmp.eq.f32.partialorder %v2805, 8.507059e+37
  %v2807 = vand.u32 %v2795, 2147483648
  %v2808 = vor.u32 1.1754944e-38, %v2807
  %v2809 = vsel %vm2806, %v2808, %v2804
  %v2810 = vmul.f32 1.0, %v2809
  %v2811 = vtanh.pop %v2790
  %v2812 = vmul.f32 %v2810, %v2739
  %2814 = vrot.lane.b32.xlu0 %v2811, 64
  %v2815 = vpop.permute.xlu0 %2814
  %v2817 = vmul.f32 %v2810, %v2815
  %2819 = vrot.lane.b32.xlu0 %v2817, 32
  %v2820 = vpop.permute.xlu0 %2819
  %v2822 = vadd.f32 %v2812, %v2820
  %v2823 = vtanh.pop %v2822
  %2825 = vrot.lane.b32.xlu0 %v2823, 64
  %v2826 = vpop.permute.xlu0 %2825
  %v2828 = vmul.f32 %v2810, %v2826
  %2830 = vrot.lane.b32.xlu0 %v2828, 32
  %v2831 = vpop.permute.xlu0 %2830
  %v2832 = vsel %vm79, %v2831, 0
  %2834 = vmatpush.msra.mxu0 0.0
  %2835 = vmatpush.msra.mxu0 0.0
  %2836 = vmatpush.msra.mxu0 0.0
  %2837 = vmatpush.msra.mxu0 0.0
  %2838 = vmatpush.msra.mxu0 0.0
  %2839 = vmatpush.msra.mxu0 0.0
  %2840 = vmatpush.msra.mxu0 0.0
  %2841 = vmatpush.msra.mxu0 0.0
  %2842 = vmatpush.msra.mxu0 0.0
  %2843 = vmatpush.msra.mxu0 0.0
  %2844 = vmatpush.msra.mxu0 0.0
  %2845 = vmatpush.msra.mxu0 0.0
  %2846 = vmatpush.msra.mxu0 %v63
  %2847 = vmatpush.msra.mxu0 %v62
  %2848 = vmatpush.msra.mxu0 %v61
  %2849 = vmatpush.msra.mxu0 %v60
  %2850 = vmatmul.f32.gmra.mxu0 %v2832
  %v2851 = vpop.f32.mrf.mxu0
  %v2852 = vadd.f32 %v173, %v2851
  %2853 = vdwg.mxu0
  %v2854 = vadd.f32 %v2771, %v2852
  %2856 = vrot.lane.b32.xlu0 %v2854, 112
  %v2857 = vpop.permute.xlu0 %2856
  %2859 = vrot.lane.b32.xlu0 %v2445, 64
  %v2860 = vpop.permute.xlu0 %2859
  %v2862 = vsel %vm79, %v2857, %v2860
  %s2863 = scalar_lea.vmem %s0, 40
  %v2864 = vld [vmem:[%s2863] sm:$0xff]
  %v2866 = vsel %vm84, %v2862, 0
  %2868 = vmatpush.msra.mxu0 0.0
  %2869 = vmatpush.msra.mxu0 0.0
  %2870 = vmatpush.msra.mxu0 0.0
  %2871 = vmatpush.msra.mxu0 0.0
  %2872 = vmatpush.msra.mxu0 0.0
  %2873 = vmatpush.msra.mxu0 0.0
  %2874 = vmatpush.msra.mxu0 0.0
  %2875 = vmatpush.msra.mxu0 0.0
  %2876 = vmatpush.msra.mxu0 %v72
  %2877 = vmatpush.msra.mxu0 %v71
  %2878 = vmatpush.msra.mxu0 %v70
  %2879 = vmatpush.msra.mxu0 %v69
  %2880 = vmatpush.msra.mxu0 %v68
  %2881 = vmatpush.msra.mxu0 %v67
  %2882 = vmatpush.msra.mxu0 %v66
  %2883 = vmatpush.msra.mxu0 %v65
  %2884 = vmatmul.f32.gmra.mxu0 %v2866
  %v2885 = vpop.f32.mrf.mxu0
  %v2886 = vadd.f32 0.0, %v2885
  %2887 = vdwg.mxu0
  %v2888 = vadd.f32 %v2864, %v2886
  %v2889 = vxor.u32 %v2888, 2147483648
  %v2890 = vmul.f32 %v2889, 1.442695
  %v2891 = vpow.pop %v2890
  %v2892 = vadd.f32 %v2891, 1.0
  %v2893 = vrcp.pop %v2892
  %v2894 = vmul.f32 %v2892, %v2893
  %v2895 = vsub.f32 1.0, %v2894
  %v2896 = vmul.f32 %v2893, %v2895
  %v2897 = vadd.f32 %v2893, %v2896
  %vm2898 = vweird.f32 %v2892
  %vm2899 = vweird.f32 %v2893
  %vm2900 = vmor %vm2898, %vm2899
  %v2901 = vsel %vm2900, %v2893, %v2897
  %v2902 = vand.u32 2147483647, %v2892
  %vm2903 = vcmp.eq.f32.partialorder %v2902, 8.507059e+37
  %v2904 = vand.u32 %v2892, 2147483648
  %v2905 = vor.u32 1.1754944e-38, %v2904
  %v2906 = vsel %vm2903, %v2905, %v2901
  %v2907 = vmul.f32 1.0, %v2906
  %v2908 = vtanh.pop %v2888
  %v2909 = vmul.f32 %v2907, %v2439
  %2911 = vrot.lane.b32.xlu0 %v2908, 64
  %v2912 = vpop.permute.xlu0 %2911
  %v2914 = vmul.f32 %v2907, %v2912
  %2916 = vrot.lane.b32.xlu0 %v2914, 32
  %v2917 = vpop.permute.xlu0 %2916
  %v2919 = vadd.f32 %v2909, %v2917
  %v2920 = vtanh.pop %v2919
  %2922 = vrot.lane.b32.xlu0 %v2920, 64
  %v2923 = vpop.permute.xlu0 %2922
  %v2925 = vmul.f32 %v2907, %v2923
  %2927 = vrot.lane.b32.xlu0 %v2925, 32
  %v2928 = vpop.permute.xlu0 %2927
  %v2929 = vsel %vm79, %v2928, 0
  %2931 = vmatpush.msra.mxu0 0.0
  %2932 = vmatpush.msra.mxu0 0.0
  %2933 = vmatpush.msra.mxu0 0.0
  %2934 = vmatpush.msra.mxu0 0.0
  %2935 = vmatpush.msra.mxu0 0.0
  %2936 = vmatpush.msra.mxu0 0.0
  %2937 = vmatpush.msra.mxu0 0.0
  %2938 = vmatpush.msra.mxu0 0.0
  %2939 = vmatpush.msra.mxu0 0.0
  %2940 = vmatpush.msra.mxu0 0.0
  %2941 = vmatpush.msra.mxu0 0.0
  %2942 = vmatpush.msra.mxu0 0.0
  %2943 = vmatpush.msra.mxu0 %v63
  %2944 = vmatpush.msra.mxu0 %v62
  %2945 = vmatpush.msra.mxu0 %v61
  %2946 = vmatpush.msra.mxu0 %v60
  %2947 = vmatmul.f32.gmra.mxu0 %v2929
  %v2948 = vpop.f32.mrf.mxu0
  %v2949 = vadd.f32 %v173, %v2948
  %2950 = vdwg.mxu0
  %2952 = vrot.lane.b32.xlu0 %v2603, 16
  %v2953 = vpop.permute.xlu0 %2952
  %2956 = vrot.lane.b32.xlu0 %v2686, 32
  %v2957 = vpop.permute.xlu0 %2956
  %2960 = vrot.lane.b32.xlu0 %v2769, 48
  %v2961 = vpop.permute.xlu0 %2960
  %2964 = vrot.lane.b32.xlu0 %v2852, 64
  %v2965 = vpop.permute.xlu0 %2964
  %v2967 = vsel %vm565, %v2949, %v2953
  %v2968 = vsel %vm79, %v2967, %v2957
  %v2969 = vsel %vm568, %v2968, %v2961
  %v2970 = vsel %vm84, %v2969, %v2965
  %v2971 = vsel %vm571, %v2970, 0.0
  %s2972 = scalar_lea.vmem %s12, 40
  %2973 = vst [vmem:[%s2972] sm:$0xff] %v2971
  %v2975 = vsel %vm79, %v2928, %v2919
  %v2977 = vsel %vm84, %v2975, 0
  %2979 = vmatpush.msra.mxu0 0.0
  %2980 = vmatpush.msra.mxu0 0.0
  %2981 = vmatpush.msra.mxu0 0.0
  %2982 = vmatpush.msra.mxu0 0.0
  %2983 = vmatpush.msra.mxu0 0.0
  %2984 = vmatpush.msra.mxu0 0.0
  %2985 = vmatpush.msra.mxu0 0.0
  %2986 = vmatpush.msra.mxu0 0.0
  %2987 = vmatpush.msra.mxu0 %v48
  %2988 = vmatpush.msra.mxu0 %v47
  %2989 = vmatpush.msra.mxu0 %v46
  %2990 = vmatpush.msra.mxu0 %v45
  %2991 = vmatpush.msra.mxu0 %v44
  %2992 = vmatpush.msra.mxu0 %v43
  %2993 = vmatpush.msra.mxu0 %v42
  %2994 = vmatpush.msra.mxu0 %v41
  %2995 = vmatmul.f32.gmra.mxu0 %v2977
  %v2996 = vpop.f32.mrf.mxu0
  %v2997 = vadd.f32 %v82, %v2996
  %2998 = vdwg.mxu0
  %v2999 = vmax.f32 %v2997, 0.0
  %v3001 = vsel %vm79, %v2999, 0
  %3003 = vmatpush.msra.mxu0 0.0
  %3004 = vmatpush.msra.mxu0 0.0
  %3005 = vmatpush.msra.mxu0 0.0
  %3006 = vmatpush.msra.mxu0 0.0
  %3007 = vmatpush.msra.mxu0 0.0
  %3008 = vmatpush.msra.mxu0 0.0
  %3009 = vmatpush.msra.mxu0 0.0
  %3010 = vmatpush.msra.mxu0 0.0
  %3011 = vmatpush.msra.mxu0 0.0
  %3012 = vmatpush.msra.mxu0 0.0
  %3013 = vmatpush.msra.mxu0 0.0
  %3014 = vmatpush.msra.mxu0 0.0
  %3015 = vmatpush.msra.mxu0 %v53
  %3016 = vmatpush.msra.mxu0 %v52
  %3017 = vmatpush.msra.mxu0 %v51
  %3018 = vmatpush.msra.mxu0 %v50
  %3019 = vmatmul.f32.gmra.mxu0 %v3001
  %v3020 = vpop.f32.mrf.mxu0
  %v3021 = vadd.f32 %v110, %v3020
  %3022 = vdwg.mxu0
  %v3023 = vxor.u32 %v3021, 2147483648
  %v3024 = vmul.f32 %v3023, 1.442695
  %v3025 = vpow.pop %v3024
  %v3026 = vadd.f32 %v3025, 1.0
  %v3027 = vrcp.pop %v3026
  %v3028 = vmul.f32 %v3026, %v3027
  %v3029 = vsub.f32 1.0, %v3028
  %v3030 = vmul.f32 %v3027, %v3029
  %v3031 = vadd.f32 %v3027, %v3030
  %vm3032 = vweird.f32 %v3026
  %vm3033 = vweird.f32 %v3027
  %vm3034 = vmor %vm3032, %vm3033
  %v3035 = vsel %vm3034, %v3027, %v3031
  %v3036 = vand.u32 2147483647, %v3026
  %vm3037 = vcmp.eq.f32.partialorder %v3036, 8.507059e+37
  %v3038 = vand.u32 %v3026, 2147483648
  %v3039 = vor.u32 1.1754944e-38, %v3038
  %v3040 = vsel %vm3037, %v3039, %v3035
  %v3041 = vmul.f32 1.0, %v3040
  %v3042 = vtanh.pop %v3021
  %v3043 = vmul.f32 %v3041, %v2999
  %3045 = vrot.lane.b32.xlu0 %v3042, 64
  %v3046 = vpop.permute.xlu0 %3045
  %v3048 = vmul.f32 %v3041, %v3046
  %3050 = vrot.lane.b32.xlu0 %v3048, 32
  %v3051 = vpop.permute.xlu0 %3050
  %v3053 = vadd.f32 %v3043, %v3051
  %v3054 = vtanh.pop %v3053
  %3056 = vrot.lane.b32.xlu0 %v3054, 64
  %v3057 = vpop.permute.xlu0 %3056
  %v3059 = vmul.f32 %v3041, %v3057
  %3061 = vrot.lane.b32.xlu0 %v3059, 32
  %v3062 = vpop.permute.xlu0 %3061
  %v3063 = vsel %vm79, %v3062, 0
  %3065 = vmatpush.msra.mxu0 0.0
  %3066 = vmatpush.msra.mxu0 0.0
  %3067 = vmatpush.msra.mxu0 0.0
  %3068 = vmatpush.msra.mxu0 0.0
  %3069 = vmatpush.msra.mxu0 0.0
  %3070 = vmatpush.msra.mxu0 0.0
  %3071 = vmatpush.msra.mxu0 0.0
  %3072 = vmatpush.msra.mxu0 0.0
  %3073 = vmatpush.msra.mxu0 0.0
  %3074 = vmatpush.msra.mxu0 0.0
  %3075 = vmatpush.msra.mxu0 0.0
  %3076 = vmatpush.msra.mxu0 0.0
  %3077 = vmatpush.msra.mxu0 %v63
  %3078 = vmatpush.msra.mxu0 %v62
  %3079 = vmatpush.msra.mxu0 %v61
  %3080 = vmatpush.msra.mxu0 %v60
  %3081 = vmatmul.f32.gmra.mxu0 %v3063
  %v3082 = vpop.f32.mrf.mxu0
  %v3083 = vadd.f32 %v173, %v3082
  %3084 = vdwg.mxu0
  %v3085 = vadd.f32 %v3083, 0.0
  %3086 = vmatpush.msra.mxu0 0.0
  %3087 = vmatpush.msra.mxu0 0.0
  %3088 = vmatpush.msra.mxu0 0.0
  %3089 = vmatpush.msra.mxu0 0.0
  %3090 = vmatpush.msra.mxu0 0.0
  %3091 = vmatpush.msra.mxu0 0.0
  %3092 = vmatpush.msra.mxu0 0.0
  %3093 = vmatpush.msra.mxu0 0.0
  %3094 = vmatpush.msra.mxu0 0.0
  %3095 = vmatpush.msra.mxu0 0.0
  %3096 = vmatpush.msra.mxu0 0.0
  %3097 = vmatpush.msra.mxu0 0.0
  %3098 = vmatpush.msra.mxu0 %v58
  %3099 = vmatpush.msra.mxu0 %v57
  %3100 = vmatpush.msra.mxu0 %v56
  %3101 = vmatpush.msra.mxu0 %v55
  %3102 = vmatmul.f32.gmra.mxu0 %v3063
  %v3103 = vpop.f32.mrf.mxu0
  %v3104 = vadd.f32 %v202, %v3103
  %3105 = vdwg.mxu0
  %v3106 = vxor.u32 %v3104, 2147483648
  %v3107 = vmul.f32 %v3106, 1.442695
  %v3108 = vpow.pop %v3107
  %v3109 = vadd.f32 %v3108, 1.0
  %v3110 = vrcp.pop %v3109
  %v3111 = vmul.f32 %v3109, %v3110
  %v3112 = vsub.f32 1.0, %v3111
  %v3113 = vmul.f32 %v3110, %v3112
  %v3114 = vadd.f32 %v3110, %v3113
  %vm3115 = vweird.f32 %v3109
  %vm3116 = vweird.f32 %v3110
  %vm3117 = vmor %vm3115, %vm3116
  %v3118 = vsel %vm3117, %v3110, %v3114
  %v3119 = vand.u32 2147483647, %v3109
  %vm3120 = vcmp.eq.f32.partialorder %v3119, 8.507059e+37
  %v3121 = vand.u32 %v3109, 2147483648
  %v3122 = vor.u32 1.1754944e-38, %v3121
  %v3123 = vsel %vm3120, %v3122, %v3118
  %v3124 = vmul.f32 1.0, %v3123
  %v3125 = vtanh.pop %v3104
  %v3126 = vmul.f32 %v3124, %v3053
  %3128 = vrot.lane.b32.xlu0 %v3125, 64
  %v3129 = vpop.permute.xlu0 %3128
  %v3131 = vmul.f32 %v3124, %v3129
  %3133 = vrot.lane.b32.xlu0 %v3131, 32
  %v3134 = vpop.permute.xlu0 %3133
  %v3136 = vadd.f32 %v3126, %v3134
  %v3137 = vtanh.pop %v3136
  %3139 = vrot.lane.b32.xlu0 %v3137, 64
  %v3140 = vpop.permute.xlu0 %3139
  %v3142 = vmul.f32 %v3124, %v3140
  %3144 = vrot.lane.b32.xlu0 %v3142, 32
  %v3145 = vpop.permute.xlu0 %3144
  %v3146 = vsel %vm79, %v3145, 0
  %3148 = vmatpush.msra.mxu0 0.0
  %3149 = vmatpush.msra.mxu0 0.0
  %3150 = vmatpush.msra.mxu0 0.0
  %3151 = vmatpush.msra.mxu0 0.0
  %3152 = vmatpush.msra.mxu0 0.0
  %3153 = vmatpush.msra.mxu0 0.0
  %3154 = vmatpush.msra.mxu0 0.0
  %3155 = vmatpush.msra.mxu0 0.0
  %3156 = vmatpush.msra.mxu0 0.0
  %3157 = vmatpush.msra.mxu0 0.0
  %3158 = vmatpush.msra.mxu0 0.0
  %3159 = vmatpush.msra.mxu0 0.0
  %3160 = vmatpush.msra.mxu0 %v63
  %3161 = vmatpush.msra.mxu0 %v62
  %3162 = vmatpush.msra.mxu0 %v61
  %3163 = vmatpush.msra.mxu0 %v60
  %3164 = vmatmul.f32.gmra.mxu0 %v3146
  %v3165 = vpop.f32.mrf.mxu0
  %v3166 = vadd.f32 %v173, %v3165
  %3167 = vdwg.mxu0
  %v3168 = vadd.f32 %v3085, %v3166
  %3169 = vmatpush.msra.mxu0 0.0
  %3170 = vmatpush.msra.mxu0 0.0
  %3171 = vmatpush.msra.mxu0 0.0
  %3172 = vmatpush.msra.mxu0 0.0
  %3173 = vmatpush.msra.mxu0 0.0
  %3174 = vmatpush.msra.mxu0 0.0
  %3175 = vmatpush.msra.mxu0 0.0
  %3176 = vmatpush.msra.mxu0 0.0
  %3177 = vmatpush.msra.mxu0 0.0
  %3178 = vmatpush.msra.mxu0 0.0
  %3179 = vmatpush.msra.mxu0 0.0
  %3180 = vmatpush.msra.mxu0 0.0
  %3181 = vmatpush.msra.mxu0 %v58
  %3182 = vmatpush.msra.mxu0 %v57
  %3183 = vmatpush.msra.mxu0 %v56
  %3184 = vmatpush.msra.mxu0 %v55
  %3185 = vmatmul.f32.gmra.mxu0 %v3146
  %v3186 = vpop.f32.mrf.mxu0
  %v3187 = vadd.f32 %v202, %v3186
  %3188 = vdwg.mxu0
  %v3189 = vxor.u32 %v3187, 2147483648
  %v3190 = vmul.f32 %v3189, 1.442695
  %v3191 = vpow.pop %v3190
  %v3192 = vadd.f32 %v3191, 1.0
  %v3193 = vrcp.pop %v3192
  %v3194 = vmul.f32 %v3192, %v3193
  %v3195 = vsub.f32 1.0, %v3194
  %v3196 = vmul.f32 %v3193, %v3195
  %v3197 = vadd.f32 %v3193, %v3196
  %vm3198 = vweird.f32 %v3192
  %vm3199 = vweird.f32 %v3193
  %vm3200 = vmor %vm3198, %vm3199
  %v3201 = vsel %vm3200, %v3193, %v3197
  %v3202 = vand.u32 2147483647, %v3192
  %vm3203 = vcmp.eq.f32.partialorder %v3202, 8.507059e+37
  %v3204 = vand.u32 %v3192, 2147483648
  %v3205 = vor.u32 1.1754944e-38, %v3204
  %v3206 = vsel %vm3203, %v3205, %v3201
  %v3207 = vmul.f32 1.0, %v3206
  %v3208 = vtanh.pop %v3187
  %v3209 = vmul.f32 %v3207, %v3136
  %3211 = vrot.lane.b32.xlu0 %v3208, 64
  %v3212 = vpop.permute.xlu0 %3211
  %v3214 = vmul.f32 %v3207, %v3212
  %3216 = vrot.lane.b32.xlu0 %v3214, 32
  %v3217 = vpop.permute.xlu0 %3216
  %v3219 = vadd.f32 %v3209, %v3217
  %v3220 = vtanh.pop %v3219
  %3222 = vrot.lane.b32.xlu0 %v3220, 64
  %v3223 = vpop.permute.xlu0 %3222
  %v3225 = vmul.f32 %v3207, %v3223
  %3227 = vrot.lane.b32.xlu0 %v3225, 32
  %v3228 = vpop.permute.xlu0 %3227
  %v3229 = vsel %vm79, %v3228, 0
  %3231 = vmatpush.msra.mxu0 0.0
  %3232 = vmatpush.msra.mxu0 0.0
  %3233 = vmatpush.msra.mxu0 0.0
  %3234 = vmatpush.msra.mxu0 0.0
  %3235 = vmatpush.msra.mxu0 0.0
  %3236 = vmatpush.msra.mxu0 0.0
  %3237 = vmatpush.msra.mxu0 0.0
  %3238 = vmatpush.msra.mxu0 0.0
  %3239 = vmatpush.msra.mxu0 0.0
  %3240 = vmatpush.msra.mxu0 0.0
  %3241 = vmatpush.msra.mxu0 0.0
  %3242 = vmatpush.msra.mxu0 0.0
  %3243 = vmatpush.msra.mxu0 %v63
  %3244 = vmatpush.msra.mxu0 %v62
  %3245 = vmatpush.msra.mxu0 %v61
  %3246 = vmatpush.msra.mxu0 %v60
  %3247 = vmatmul.f32.gmra.mxu0 %v3229
  %v3248 = vpop.f32.mrf.mxu0
  %v3249 = vadd.f32 %v173, %v3248
  %3250 = vdwg.mxu0
  %v3251 = vadd.f32 %v3168, %v3249
  %3252 = vmatpush.msra.mxu0 0.0
  %3253 = vmatpush.msra.mxu0 0.0
  %3254 = vmatpush.msra.mxu0 0.0
  %3255 = vmatpush.msra.mxu0 0.0
  %3256 = vmatpush.msra.mxu0 0.0
  %3257 = vmatpush.msra.mxu0 0.0
  %3258 = vmatpush.msra.mxu0 0.0
  %3259 = vmatpush.msra.mxu0 0.0
  %3260 = vmatpush.msra.mxu0 0.0
  %3261 = vmatpush.msra.mxu0 0.0
  %3262 = vmatpush.msra.mxu0 0.0
  %3263 = vmatpush.msra.mxu0 0.0
  %3264 = vmatpush.msra.mxu0 %v58
  %3265 = vmatpush.msra.mxu0 %v57
  %3266 = vmatpush.msra.mxu0 %v56
  %3267 = vmatpush.msra.mxu0 %v55
  %3268 = vmatmul.f32.gmra.mxu0 %v3229
  %v3269 = vpop.f32.mrf.mxu0
  %v3270 = vadd.f32 %v202, %v3269
  %3271 = vdwg.mxu0
  %v3272 = vxor.u32 %v3270, 2147483648
  %v3273 = vmul.f32 %v3272, 1.442695
  %v3274 = vpow.pop %v3273
  %v3275 = vadd.f32 %v3274, 1.0
  %v3276 = vrcp.pop %v3275
  %v3277 = vmul.f32 %v3275, %v3276
  %v3278 = vsub.f32 1.0, %v3277
  %v3279 = vmul.f32 %v3276, %v3278
  %v3280 = vadd.f32 %v3276, %v3279
  %vm3281 = vweird.f32 %v3275
  %vm3282 = vweird.f32 %v3276
  %vm3283 = vmor %vm3281, %vm3282
  %v3284 = vsel %vm3283, %v3276, %v3280
  %v3285 = vand.u32 2147483647, %v3275
  %vm3286 = vcmp.eq.f32.partialorder %v3285, 8.507059e+37
  %v3287 = vand.u32 %v3275, 2147483648
  %v3288 = vor.u32 1.1754944e-38, %v3287
  %v3289 = vsel %vm3286, %v3288, %v3284
  %v3290 = vmul.f32 1.0, %v3289
  %v3291 = vtanh.pop %v3270
  %v3292 = vmul.f32 %v3290, %v3219
  %3294 = vrot.lane.b32.xlu0 %v3291, 64
  %v3295 = vpop.permute.xlu0 %3294
  %v3297 = vmul.f32 %v3290, %v3295
  %3299 = vrot.lane.b32.xlu0 %v3297, 32
  %v3300 = vpop.permute.xlu0 %3299
  %v3302 = vadd.f32 %v3292, %v3300
  %v3303 = vtanh.pop %v3302
  %3305 = vrot.lane.b32.xlu0 %v3303, 64
  %v3306 = vpop.permute.xlu0 %3305
  %v3308 = vmul.f32 %v3290, %v3306
  %3310 = vrot.lane.b32.xlu0 %v3308, 32
  %v3311 = vpop.permute.xlu0 %3310
  %v3312 = vsel %vm79, %v3311, 0
  %3314 = vmatpush.msra.mxu0 0.0
  %3315 = vmatpush.msra.mxu0 0.0
  %3316 = vmatpush.msra.mxu0 0.0
  %3317 = vmatpush.msra.mxu0 0.0
  %3318 = vmatpush.msra.mxu0 0.0
  %3319 = vmatpush.msra.mxu0 0.0
  %3320 = vmatpush.msra.mxu0 0.0
  %3321 = vmatpush.msra.mxu0 0.0
  %3322 = vmatpush.msra.mxu0 0.0
  %3323 = vmatpush.msra.mxu0 0.0
  %3324 = vmatpush.msra.mxu0 0.0
  %3325 = vmatpush.msra.mxu0 0.0
  %3326 = vmatpush.msra.mxu0 %v63
  %3327 = vmatpush.msra.mxu0 %v62
  %3328 = vmatpush.msra.mxu0 %v61
  %3329 = vmatpush.msra.mxu0 %v60
  %3330 = vmatmul.f32.gmra.mxu0 %v3312
  %v3331 = vpop.f32.mrf.mxu0
  %v3332 = vadd.f32 %v173, %v3331
  %3333 = vdwg.mxu0
  %v3334 = vadd.f32 %v3251, %v3332
  %3336 = vrot.lane.b32.xlu0 %v3334, 112
  %v3337 = vpop.permute.xlu0 %3336
  %3339 = vrot.lane.b32.xlu0 %v2925, 64
  %v3340 = vpop.permute.xlu0 %3339
  %v3342 = vsel %vm79, %v3337, %v3340
  %s3343 = scalar_lea.vmem %s0, 48
  %v3344 = vld [vmem:[%s3343] sm:$0xff]
  %v3346 = vsel %vm84, %v3342, 0
  %3348 = vmatpush.msra.mxu0 0.0
  %3349 = vmatpush.msra.mxu0 0.0
  %3350 = vmatpush.msra.mxu0 0.0
  %3351 = vmatpush.msra.mxu0 0.0
  %3352 = vmatpush.msra.mxu0 0.0
  %3353 = vmatpush.msra.mxu0 0.0
  %3354 = vmatpush.msra.mxu0 0.0
  %3355 = vmatpush.msra.mxu0 0.0
  %3356 = vmatpush.msra.mxu0 %v72
  %3357 = vmatpush.msra.mxu0 %v71
  %3358 = vmatpush.msra.mxu0 %v70
  %3359 = vmatpush.msra.mxu0 %v69
  %3360 = vmatpush.msra.mxu0 %v68
  %3361 = vmatpush.msra.mxu0 %v67
  %3362 = vmatpush.msra.mxu0 %v66
  %3363 = vmatpush.msra.mxu0 %v65
  %3364 = vmatmul.f32.gmra.mxu0 %v3346
  %v3365 = vpop.f32.mrf.mxu0
  %v3366 = vadd.f32 0.0, %v3365
  %3367 = vdwg.mxu0
  %v3368 = vadd.f32 %v3344, %v3366
  %v3369 = vxor.u32 %v3368, 2147483648
  %v3370 = vmul.f32 %v3369, 1.442695
  %v3371 = vpow.pop %v3370
  %v3372 = vadd.f32 %v3371, 1.0
  %v3373 = vrcp.pop %v3372
  %v3374 = vmul.f32 %v3372, %v3373
  %v3375 = vsub.f32 1.0, %v3374
  %v3376 = vmul.f32 %v3373, %v3375
  %v3377 = vadd.f32 %v3373, %v3376
  %vm3378 = vweird.f32 %v3372
  %vm3379 = vweird.f32 %v3373
  %vm3380 = vmor %vm3378, %vm3379
  %v3381 = vsel %vm3380, %v3373, %v3377
  %v3382 = vand.u32 2147483647, %v3372
  %vm3383 = vcmp.eq.f32.partialorder %v3382, 8.507059e+37
  %v3384 = vand.u32 %v3372, 2147483648
  %v3385 = vor.u32 1.1754944e-38, %v3384
  %v3386 = vsel %vm3383, %v3385, %v3381
  %v3387 = vmul.f32 1.0, %v3386
  %v3388 = vtanh.pop %v3368
  %v3389 = vmul.f32 %v3387, %v2919
  %3391 = vrot.lane.b32.xlu0 %v3388, 64
  %v3392 = vpop.permute.xlu0 %3391
  %v3394 = vmul.f32 %v3387, %v3392
  %3396 = vrot.lane.b32.xlu0 %v3394, 32
  %v3397 = vpop.permute.xlu0 %3396
  %v3399 = vadd.f32 %v3389, %v3397
  %v3400 = vtanh.pop %v3399
  %3402 = vrot.lane.b32.xlu0 %v3400, 64
  %v3403 = vpop.permute.xlu0 %3402
  %v3405 = vmul.f32 %v3387, %v3403
  %3407 = vrot.lane.b32.xlu0 %v3405, 32
  %v3408 = vpop.permute.xlu0 %3407
  %v3409 = vsel %vm79, %v3408, 0
  %3411 = vmatpush.msra.mxu0 0.0
  %3412 = vmatpush.msra.mxu0 0.0
  %3413 = vmatpush.msra.mxu0 0.0
  %3414 = vmatpush.msra.mxu0 0.0
  %3415 = vmatpush.msra.mxu0 0.0
  %3416 = vmatpush.msra.mxu0 0.0
  %3417 = vmatpush.msra.mxu0 0.0
  %3418 = vmatpush.msra.mxu0 0.0
  %3419 = vmatpush.msra.mxu0 0.0
  %3420 = vmatpush.msra.mxu0 0.0
  %3421 = vmatpush.msra.mxu0 0.0
  %3422 = vmatpush.msra.mxu0 0.0
  %3423 = vmatpush.msra.mxu0 %v63
  %3424 = vmatpush.msra.mxu0 %v62
  %3425 = vmatpush.msra.mxu0 %v61
  %3426 = vmatpush.msra.mxu0 %v60
  %3427 = vmatmul.f32.gmra.mxu0 %v3409
  %v3428 = vpop.f32.mrf.mxu0
  %v3429 = vadd.f32 %v173, %v3428
  %3430 = vdwg.mxu0
  %3432 = vrot.lane.b32.xlu0 %v3083, 16
  %v3433 = vpop.permute.xlu0 %3432
  %3436 = vrot.lane.b32.xlu0 %v3166, 32
  %v3437 = vpop.permute.xlu0 %3436
  %3440 = vrot.lane.b32.xlu0 %v3249, 48
  %v3441 = vpop.permute.xlu0 %3440
  %3444 = vrot.lane.b32.xlu0 %v3332, 64
  %v3445 = vpop.permute.xlu0 %3444
  %v3447 = vsel %vm565, %v3429, %v3433
  %v3448 = vsel %vm79, %v3447, %v3437
  %v3449 = vsel %vm568, %v3448, %v3441
  %v3450 = vsel %vm84, %v3449, %v3445
  %v3451 = vsel %vm571, %v3450, 0.0
  %s3452 = scalar_lea.vmem %s12, 48
  %3453 = vst [vmem:[%s3452] sm:$0xff] %v3451
  %v3455 = vsel %vm79, %v3408, %v3399
  %v3457 = vsel %vm84, %v3455, 0
  %3459 = vmatpush.msra.mxu0 0.0
  %3460 = vmatpush.msra.mxu0 0.0
  %3461 = vmatpush.msra.mxu0 0.0
  %3462 = vmatpush.msra.mxu0 0.0
  %3463 = vmatpush.msra.mxu0 0.0
  %3464 = vmatpush.msra.mxu0 0.0
  %3465 = vmatpush.msra.mxu0 0.0
  %3466 = vmatpush.msra.mxu0 0.0
  %3467 = vmatpush.msra.mxu0 %v48
  %3468 = vmatpush.msra.mxu0 %v47
  %3469 = vmatpush.msra.mxu0 %v46
  %3470 = vmatpush.msra.mxu0 %v45
  %3471 = vmatpush.msra.mxu0 %v44
  %3472 = vmatpush.msra.mxu0 %v43
  %3473 = vmatpush.msra.mxu0 %v42
  %3474 = vmatpush.msra.mxu0 %v41
  %3475 = vmatmul.f32.gmra.mxu0 %v3457
  %v3476 = vpop.f32.mrf.mxu0
  %v3477 = vadd.f32 %v82, %v3476
  %3478 = vdwg.mxu0
  %v3479 = vmax.f32 %v3477, 0.0
  %v3481 = vsel %vm79, %v3479, 0
  %3483 = vmatpush.msra.mxu0 0.0
  %3484 = vmatpush.msra.mxu0 0.0
  %3485 = vmatpush.msra.mxu0 0.0
  %3486 = vmatpush.msra.mxu0 0.0
  %3487 = vmatpush.msra.mxu0 0.0
  %3488 = vmatpush.msra.mxu0 0.0
  %3489 = vmatpush.msra.mxu0 0.0
  %3490 = vmatpush.msra.mxu0 0.0
  %3491 = vmatpush.msra.mxu0 0.0
  %3492 = vmatpush.msra.mxu0 0.0
  %3493 = vmatpush.msra.mxu0 0.0
  %3494 = vmatpush.msra.mxu0 0.0
  %3495 = vmatpush.msra.mxu0 %v53
  %3496 = vmatpush.msra.mxu0 %v52
  %3497 = vmatpush.msra.mxu0 %v51
  %3498 = vmatpush.msra.mxu0 %v50
  %3499 = vmatmul.f32.gmra.mxu0 %v3481
  %v3500 = vpop.f32.mrf.mxu0
  %v3501 = vadd.f32 %v110, %v3500
  %3502 = vdwg.mxu0
  %v3503 = vxor.u32 %v3501, 2147483648
  %v3504 = vmul.f32 %v3503, 1.442695
  %v3505 = vpow.pop %v3504
  %v3506 = vadd.f32 %v3505, 1.0
  %v3507 = vrcp.pop %v3506
  %v3508 = vmul.f32 %v3506, %v3507
  %v3509 = vsub.f32 1.0, %v3508
  %v3510 = vmul.f32 %v3507, %v3509
  %v3511 = vadd.f32 %v3507, %v3510
  %vm3512 = vweird.f32 %v3506
  %vm3513 = vweird.f32 %v3507
  %vm3514 = vmor %vm3512, %vm3513
  %v3515 = vsel %vm3514, %v3507, %v3511
  %v3516 = vand.u32 2147483647, %v3506
  %vm3517 = vcmp.eq.f32.partialorder %v3516, 8.507059e+37
  %v3518 = vand.u32 %v3506, 2147483648
  %v3519 = vor.u32 1.1754944e-38, %v3518
  %v3520 = vsel %vm3517, %v3519, %v3515
  %v3521 = vmul.f32 1.0, %v3520
  %v3522 = vtanh.pop %v3501
  %v3523 = vmul.f32 %v3521, %v3479
  %3525 = vrot.lane.b32.xlu0 %v3522, 64
  %v3526 = vpop.permute.xlu0 %3525
  %v3528 = vmul.f32 %v3521, %v3526
  %3530 = vrot.lane.b32.xlu0 %v3528, 32
  %v3531 = vpop.permute.xlu0 %3530
  %v3533 = vadd.f32 %v3523, %v3531
  %v3534 = vtanh.pop %v3533
  %3536 = vrot.lane.b32.xlu0 %v3534, 64
  %v3537 = vpop.permute.xlu0 %3536
  %v3539 = vmul.f32 %v3521, %v3537
  %3541 = vrot.lane.b32.xlu0 %v3539, 32
  %v3542 = vpop.permute.xlu0 %3541
  %v3543 = vsel %vm79, %v3542, 0
  %3545 = vmatpush.msra.mxu0 0.0
  %3546 = vmatpush.msra.mxu0 0.0
  %3547 = vmatpush.msra.mxu0 0.0
  %3548 = vmatpush.msra.mxu0 0.0
  %3549 = vmatpush.msra.mxu0 0.0
  %3550 = vmatpush.msra.mxu0 0.0
  %3551 = vmatpush.msra.mxu0 0.0
  %3552 = vmatpush.msra.mxu0 0.0
  %3553 = vmatpush.msra.mxu0 0.0
  %3554 = vmatpush.msra.mxu0 0.0
  %3555 = vmatpush.msra.mxu0 0.0
  %3556 = vmatpush.msra.mxu0 0.0
  %3557 = vmatpush.msra.mxu0 %v63
  %3558 = vmatpush.msra.mxu0 %v62
  %3559 = vmatpush.msra.mxu0 %v61
  %3560 = vmatpush.msra.mxu0 %v60
  %3561 = vmatmul.f32.gmra.mxu0 %v3543
  %v3562 = vpop.f32.mrf.mxu0
  %v3563 = vadd.f32 %v173, %v3562
  %3564 = vdwg.mxu0
  %v3565 = vadd.f32 %v3563, 0.0
  %3566 = vmatpush.msra.mxu0 0.0
  %3567 = vmatpush.msra.mxu0 0.0
  %3568 = vmatpush.msra.mxu0 0.0
  %3569 = vmatpush.msra.mxu0 0.0
  %3570 = vmatpush.msra.mxu0 0.0
  %3571 = vmatpush.msra.mxu0 0.0
  %3572 = vmatpush.msra.mxu0 0.0
  %3573 = vmatpush.msra.mxu0 0.0
  %3574 = vmatpush.msra.mxu0 0.0
  %3575 = vmatpush.msra.mxu0 0.0
  %3576 = vmatpush.msra.mxu0 0.0
  %3577 = vmatpush.msra.mxu0 0.0
  %3578 = vmatpush.msra.mxu0 %v58
  %3579 = vmatpush.msra.mxu0 %v57
  %3580 = vmatpush.msra.mxu0 %v56
  %3581 = vmatpush.msra.mxu0 %v55
  %3582 = vmatmul.f32.gmra.mxu0 %v3543
  %v3583 = vpop.f32.mrf.mxu0
  %v3584 = vadd.f32 %v202, %v3583
  %3585 = vdwg.mxu0
  %v3586 = vxor.u32 %v3584, 2147483648
  %v3587 = vmul.f32 %v3586, 1.442695
  %v3588 = vpow.pop %v3587
  %v3589 = vadd.f32 %v3588, 1.0
  %v3590 = vrcp.pop %v3589
  %v3591 = vmul.f32 %v3589, %v3590
  %v3592 = vsub.f32 1.0, %v3591
  %v3593 = vmul.f32 %v3590, %v3592
  %v3594 = vadd.f32 %v3590, %v3593
  %vm3595 = vweird.f32 %v3589
  %vm3596 = vweird.f32 %v3590
  %vm3597 = vmor %vm3595, %vm3596
  %v3598 = vsel %vm3597, %v3590, %v3594
  %v3599 = vand.u32 2147483647, %v3589
  %vm3600 = vcmp.eq.f32.partialorder %v3599, 8.507059e+37
  %v3601 = vand.u32 %v3589, 2147483648
  %v3602 = vor.u32 1.1754944e-38, %v3601
  %v3603 = vsel %vm3600, %v3602, %v3598
  %v3604 = vmul.f32 1.0, %v3603
  %v3605 = vtanh.pop %v3584
  %v3606 = vmul.f32 %v3604, %v3533
  %3608 = vrot.lane.b32.xlu0 %v3605, 64
  %v3609 = vpop.permute.xlu0 %3608
  %v3611 = vmul.f32 %v3604, %v3609
  %3613 = vrot.lane.b32.xlu0 %v3611, 32
  %v3614 = vpop.permute.xlu0 %3613
  %v3616 = vadd.f32 %v3606, %v3614
  %v3617 = vtanh.pop %v3616
  %3619 = vrot.lane.b32.xlu0 %v3617, 64
  %v3620 = vpop.permute.xlu0 %3619
  %v3622 = vmul.f32 %v3604, %v3620
  %3624 = vrot.lane.b32.xlu0 %v3622, 32
  %v3625 = vpop.permute.xlu0 %3624
  %v3626 = vsel %vm79, %v3625, 0
  %3628 = vmatpush.msra.mxu0 0.0
  %3629 = vmatpush.msra.mxu0 0.0
  %3630 = vmatpush.msra.mxu0 0.0
  %3631 = vmatpush.msra.mxu0 0.0
  %3632 = vmatpush.msra.mxu0 0.0
  %3633 = vmatpush.msra.mxu0 0.0
  %3634 = vmatpush.msra.mxu0 0.0
  %3635 = vmatpush.msra.mxu0 0.0
  %3636 = vmatpush.msra.mxu0 0.0
  %3637 = vmatpush.msra.mxu0 0.0
  %3638 = vmatpush.msra.mxu0 0.0
  %3639 = vmatpush.msra.mxu0 0.0
  %3640 = vmatpush.msra.mxu0 %v63
  %3641 = vmatpush.msra.mxu0 %v62
  %3642 = vmatpush.msra.mxu0 %v61
  %3643 = vmatpush.msra.mxu0 %v60
  %3644 = vmatmul.f32.gmra.mxu0 %v3626
  %v3645 = vpop.f32.mrf.mxu0
  %v3646 = vadd.f32 %v173, %v3645
  %3647 = vdwg.mxu0
  %v3648 = vadd.f32 %v3565, %v3646
  %3649 = vmatpush.msra.mxu0 0.0
  %3650 = vmatpush.msra.mxu0 0.0
  %3651 = vmatpush.msra.mxu0 0.0
  %3652 = vmatpush.msra.mxu0 0.0
  %3653 = vmatpush.msra.mxu0 0.0
  %3654 = vmatpush.msra.mxu0 0.0
  %3655 = vmatpush.msra.mxu0 0.0
  %3656 = vmatpush.msra.mxu0 0.0
  %3657 = vmatpush.msra.mxu0 0.0
  %3658 = vmatpush.msra.mxu0 0.0
  %3659 = vmatpush.msra.mxu0 0.0
  %3660 = vmatpush.msra.mxu0 0.0
  %3661 = vmatpush.msra.mxu0 %v58
  %3662 = vmatpush.msra.mxu0 %v57
  %3663 = vmatpush.msra.mxu0 %v56
  %3664 = vmatpush.msra.mxu0 %v55
  %3665 = vmatmul.f32.gmra.mxu0 %v3626
  %v3666 = vpop.f32.mrf.mxu0
  %v3667 = vadd.f32 %v202, %v3666
  %3668 = vdwg.mxu0
  %v3669 = vxor.u32 %v3667, 2147483648
  %v3670 = vmul.f32 %v3669, 1.442695
  %v3671 = vpow.pop %v3670
  %v3672 = vadd.f32 %v3671, 1.0
  %v3673 = vrcp.pop %v3672
  %v3674 = vmul.f32 %v3672, %v3673
  %v3675 = vsub.f32 1.0, %v3674
  %v3676 = vmul.f32 %v3673, %v3675
  %v3677 = vadd.f32 %v3673, %v3676
  %vm3678 = vweird.f32 %v3672
  %vm3679 = vweird.f32 %v3673
  %vm3680 = vmor %vm3678, %vm3679
  %v3681 = vsel %vm3680, %v3673, %v3677
  %v3682 = vand.u32 2147483647, %v3672
  %vm3683 = vcmp.eq.f32.partialorder %v3682, 8.507059e+37
  %v3684 = vand.u32 %v3672, 2147483648
  %v3685 = vor.u32 1.1754944e-38, %v3684
  %v3686 = vsel %vm3683, %v3685, %v3681
  %v3687 = vmul.f32 1.0, %v3686
  %v3688 = vtanh.pop %v3667
  %v3689 = vmul.f32 %v3687, %v3616
  %3691 = vrot.lane.b32.xlu0 %v3688, 64
  %v3692 = vpop.permute.xlu0 %3691
  %v3694 = vmul.f32 %v3687, %v3692
  %3696 = vrot.lane.b32.xlu0 %v3694, 32
  %v3697 = vpop.permute.xlu0 %3696
  %v3699 = vadd.f32 %v3689, %v3697
  %v3700 = vtanh.pop %v3699
  %3702 = vrot.lane.b32.xlu0 %v3700, 64
  %v3703 = vpop.permute.xlu0 %3702
  %v3705 = vmul.f32 %v3687, %v3703
  %3707 = vrot.lane.b32.xlu0 %v3705, 32
  %v3708 = vpop.permute.xlu0 %3707
  %v3709 = vsel %vm79, %v3708, 0
  %3711 = vmatpush.msra.mxu0 0.0
  %3712 = vmatpush.msra.mxu0 0.0
  %3713 = vmatpush.msra.mxu0 0.0
  %3714 = vmatpush.msra.mxu0 0.0
  %3715 = vmatpush.msra.mxu0 0.0
  %3716 = vmatpush.msra.mxu0 0.0
  %3717 = vmatpush.msra.mxu0 0.0
  %3718 = vmatpush.msra.mxu0 0.0
  %3719 = vmatpush.msra.mxu0 0.0
  %3720 = vmatpush.msra.mxu0 0.0
  %3721 = vmatpush.msra.mxu0 0.0
  %3722 = vmatpush.msra.mxu0 0.0
  %3723 = vmatpush.msra.mxu0 %v63
  %3724 = vmatpush.msra.mxu0 %v62
  %3725 = vmatpush.msra.mxu0 %v61
  %3726 = vmatpush.msra.mxu0 %v60
  %3727 = vmatmul.f32.gmra.mxu0 %v3709
  %v3728 = vpop.f32.mrf.mxu0
  %v3729 = vadd.f32 %v173, %v3728
  %3730 = vdwg.mxu0
  %v3731 = vadd.f32 %v3648, %v3729
  %3732 = vmatpush.msra.mxu0 0.0
  %3733 = vmatpush.msra.mxu0 0.0
  %3734 = vmatpush.msra.mxu0 0.0
  %3735 = vmatpush.msra.mxu0 0.0
  %3736 = vmatpush.msra.mxu0 0.0
  %3737 = vmatpush.msra.mxu0 0.0
  %3738 = vmatpush.msra.mxu0 0.0
  %3739 = vmatpush.msra.mxu0 0.0
  %3740 = vmatpush.msra.mxu0 0.0
  %3741 = vmatpush.msra.mxu0 0.0
  %3742 = vmatpush.msra.mxu0 0.0
  %3743 = vmatpush.msra.mxu0 0.0
  %3744 = vmatpush.msra.mxu0 %v58
  %3745 = vmatpush.msra.mxu0 %v57
  %3746 = vmatpush.msra.mxu0 %v56
  %3747 = vmatpush.msra.mxu0 %v55
  %3748 = vmatmul.f32.gmra.mxu0 %v3709
  %v3749 = vpop.f32.mrf.mxu0
  %v3750 = vadd.f32 %v202, %v3749
  %3751 = vdwg.mxu0
  %v3752 = vxor.u32 %v3750, 2147483648
  %v3753 = vmul.f32 %v3752, 1.442695
  %v3754 = vpow.pop %v3753
  %v3755 = vadd.f32 %v3754, 1.0
  %v3756 = vrcp.pop %v3755
  %v3757 = vmul.f32 %v3755, %v3756
  %v3758 = vsub.f32 1.0, %v3757
  %v3759 = vmul.f32 %v3756, %v3758
  %v3760 = vadd.f32 %v3756, %v3759
  %vm3761 = vweird.f32 %v3755
  %vm3762 = vweird.f32 %v3756
  %vm3763 = vmor %vm3761, %vm3762
  %v3764 = vsel %vm3763, %v3756, %v3760
  %v3765 = vand.u32 2147483647, %v3755
  %vm3766 = vcmp.eq.f32.partialorder %v3765, 8.507059e+37
  %v3767 = vand.u32 %v3755, 2147483648
  %v3768 = vor.u32 1.1754944e-38, %v3767
  %v3769 = vsel %vm3766, %v3768, %v3764
  %v3770 = vmul.f32 1.0, %v3769
  %v3771 = vtanh.pop %v3750
  %v3772 = vmul.f32 %v3770, %v3699
  %3774 = vrot.lane.b32.xlu0 %v3771, 64
  %v3775 = vpop.permute.xlu0 %3774
  %v3777 = vmul.f32 %v3770, %v3775
  %3779 = vrot.lane.b32.xlu0 %v3777, 32
  %v3780 = vpop.permute.xlu0 %3779
  %v3782 = vadd.f32 %v3772, %v3780
  %v3783 = vtanh.pop %v3782
  %3785 = vrot.lane.b32.xlu0 %v3783, 64
  %v3786 = vpop.permute.xlu0 %3785
  %v3788 = vmul.f32 %v3770, %v3786
  %3790 = vrot.lane.b32.xlu0 %v3788, 32
  %v3791 = vpop.permute.xlu0 %3790
  %v3792 = vsel %vm79, %v3791, 0
  %3794 = vmatpush.msra.mxu0 0.0
  %3795 = vmatpush.msra.mxu0 0.0
  %3796 = vmatpush.msra.mxu0 0.0
  %3797 = vmatpush.msra.mxu0 0.0
  %3798 = vmatpush.msra.mxu0 0.0
  %3799 = vmatpush.msra.mxu0 0.0
  %3800 = vmatpush.msra.mxu0 0.0
  %3801 = vmatpush.msra.mxu0 0.0
  %3802 = vmatpush.msra.mxu0 0.0
  %3803 = vmatpush.msra.mxu0 0.0
  %3804 = vmatpush.msra.mxu0 0.0
  %3805 = vmatpush.msra.mxu0 0.0
  %3806 = vmatpush.msra.mxu0 %v63
  %3807 = vmatpush.msra.mxu0 %v62
  %3808 = vmatpush.msra.mxu0 %v61
  %3809 = vmatpush.msra.mxu0 %v60
  %3810 = vmatmul.f32.gmra.mxu0 %v3792
  %v3811 = vpop.f32.mrf.mxu0
  %v3812 = vadd.f32 %v173, %v3811
  %3813 = vdwg.mxu0
  %v3814 = vadd.f32 %v3731, %v3812
  %3816 = vrot.lane.b32.xlu0 %v3814, 112
  %v3817 = vpop.permute.xlu0 %3816
  %3819 = vrot.lane.b32.xlu0 %v3405, 64
  %v3820 = vpop.permute.xlu0 %3819
  %v3822 = vsel %vm79, %v3817, %v3820
  %s3823 = scalar_lea.vmem %s0, 56
  %v3824 = vld [vmem:[%s3823] sm:$0xff]
  %v3826 = vsel %vm84, %v3822, 0
  %3828 = vmatpush.msra.mxu0 0.0
  %3829 = vmatpush.msra.mxu0 0.0
  %3830 = vmatpush.msra.mxu0 0.0
  %3831 = vmatpush.msra.mxu0 0.0
  %3832 = vmatpush.msra.mxu0 0.0
  %3833 = vmatpush.msra.mxu0 0.0
  %3834 = vmatpush.msra.mxu0 0.0
  %3835 = vmatpush.msra.mxu0 0.0
  %3836 = vmatpush.msra.mxu0 %v72
  %3837 = vmatpush.msra.mxu0 %v71
  %3838 = vmatpush.msra.mxu0 %v70
  %3839 = vmatpush.msra.mxu0 %v69
  %3840 = vmatpush.msra.mxu0 %v68
  %3841 = vmatpush.msra.mxu0 %v67
  %3842 = vmatpush.msra.mxu0 %v66
  %3843 = vmatpush.msra.mxu0 %v65
  %3844 = vmatmul.f32.gmra.mxu0 %v3826
  %v3845 = vpop.f32.mrf.mxu0
  %v3846 = vadd.f32 0.0, %v3845
  %3847 = vdwg.mxu0
  %v3848 = vadd.f32 %v3824, %v3846
  %v3849 = vxor.u32 %v3848, 2147483648
  %v3850 = vmul.f32 %v3849, 1.442695
  %v3851 = vpow.pop %v3850
  %v3852 = vadd.f32 %v3851, 1.0
  %v3853 = vrcp.pop %v3852
  %v3854 = vmul.f32 %v3852, %v3853
  %v3855 = vsub.f32 1.0, %v3854
  %v3856 = vmul.f32 %v3853, %v3855
  %v3857 = vadd.f32 %v3853, %v3856
  %vm3858 = vweird.f32 %v3852
  %vm3859 = vweird.f32 %v3853
  %vm3860 = vmor %vm3858, %vm3859
  %v3861 = vsel %vm3860, %v3853, %v3857
  %v3862 = vand.u32 2147483647, %v3852
  %vm3863 = vcmp.eq.f32.partialorder %v3862, 8.507059e+37
  %v3864 = vand.u32 %v3852, 2147483648
  %v3865 = vor.u32 1.1754944e-38, %v3864
  %v3866 = vsel %vm3863, %v3865, %v3861
  %v3867 = vmul.f32 1.0, %v3866
  %v3868 = vtanh.pop %v3848
  %v3869 = vmul.f32 %v3867, %v3399
  %3871 = vrot.lane.b32.xlu0 %v3868, 64
  %v3872 = vpop.permute.xlu0 %3871
  %v3874 = vmul.f32 %v3867, %v3872
  %3876 = vrot.lane.b32.xlu0 %v3874, 32
  %v3877 = vpop.permute.xlu0 %3876
  %v3879 = vadd.f32 %v3869, %v3877
  %v3880 = vtanh.pop %v3879
  %3882 = vrot.lane.b32.xlu0 %v3880, 64
  %v3883 = vpop.permute.xlu0 %3882
  %v3885 = vmul.f32 %v3867, %v3883
  %3887 = vrot.lane.b32.xlu0 %v3885, 32
  %v3888 = vpop.permute.xlu0 %3887
  %v3889 = vsel %vm79, %v3888, 0
  %3891 = vmatpush.msra.mxu0 0.0
  %3892 = vmatpush.msra.mxu0 0.0
  %3893 = vmatpush.msra.mxu0 0.0
  %3894 = vmatpush.msra.mxu0 0.0
  %3895 = vmatpush.msra.mxu0 0.0
  %3896 = vmatpush.msra.mxu0 0.0
  %3897 = vmatpush.msra.mxu0 0.0
  %3898 = vmatpush.msra.mxu0 0.0
  %3899 = vmatpush.msra.mxu0 0.0
  %3900 = vmatpush.msra.mxu0 0.0
  %3901 = vmatpush.msra.mxu0 0.0
  %3902 = vmatpush.msra.mxu0 0.0
  %3903 = vmatpush.msra.mxu0 %v63
  %3904 = vmatpush.msra.mxu0 %v62
  %3905 = vmatpush.msra.mxu0 %v61
  %3906 = vmatpush.msra.mxu0 %v60
  %3907 = vmatmul.f32.gmra.mxu0 %v3889
  %v3908 = vpop.f32.mrf.mxu0
  %v3909 = vadd.f32 %v173, %v3908
  %3910 = vdwg.mxu0
  %3912 = vrot.lane.b32.xlu0 %v3563, 16
  %v3913 = vpop.permute.xlu0 %3912
  %3916 = vrot.lane.b32.xlu0 %v3646, 32
  %v3917 = vpop.permute.xlu0 %3916
  %3920 = vrot.lane.b32.xlu0 %v3729, 48
  %v3921 = vpop.permute.xlu0 %3920
  %3924 = vrot.lane.b32.xlu0 %v3812, 64
  %v3925 = vpop.permute.xlu0 %3924
  %v3927 = vsel %vm565, %v3909, %v3913
  %v3928 = vsel %vm79, %v3927, %v3917
  %v3929 = vsel %vm568, %v3928, %v3921
  %v3930 = vsel %vm84, %v3929, %v3925
  %v3931 = vsel %vm571, %v3930, 0.0
  %s3932 = scalar_lea.vmem %s12, 56
  %3933 = vst [vmem:[%s3932] sm:$0xff] %v3931
  // Predicated region
  $region50: #{trn_pallas.1} parent=0 // pred_check
    _
  $region51: #{trn_pallas.1} parent=0 // pred_check_branch
    %3935 = sbr.rel (0) target = $region53
  $region52: #{trn_pallas.1} parent=0 // pred_region
    _
  $region53: #{trn_pallas.1} parent=0 // pred_fallthru
    _
  // Predicated region
  $region54: #{trn_pallas.1} parent=0 // pred_check
    _
  $region55: #{trn_pallas.1} parent=0 // pred_check_branch
    %3937 = sbr.rel (0) target = $region57
  $region56: #{trn_pallas.1} parent=0 // pred_region
    _
  $region57: #{trn_pallas.1} parent=0 // pred_fallthru
    _

</llo_original>
